<compile_context>
chip_gen: v7x
topology: tpu7x:2x2x1
jax: 0.10.0
libtpu: 0.0.40
codegen_flags: <defaults>
</compile_context>

<pallas_src>
import numpy as np
import jax
import jax.numpy as jnp
from jax.experimental import pallas as pl
from jax.experimental.pallas import tpu as pltpu

GRU_WORD_HIDDEN = 32          # GRU_Word_Hidden_Size
GRU_SENT_HIDDEN = 64          # GRU_Sentence_Hidden_Size
NUM_CONV_CH = 100             # real conv channels per branch
CONV_CH_PAD = 128             # lane-padded channels per branch
CONV_KS = (1, 2, 3, 4, 5, 6)
CONV_PADS = (0, 0, 1, 1, 2, 2)
NUM_CONV = 6
NUM_TAPS = max(CONV_KS)                   # kernel-row taps in fused conv weight
SENT_FEAT_PAD = NUM_CONV * CONV_CH_PAD    # 768 (600 real features, lane padded)
GATE_W_PAD = 128              # 3*Hw = 96  -> 128
GATE_S_PAD = 256              # 3*Hs = 192 -> 256
MAX_SENT_TILE = 64            # 2*Ts = 128 fused GRU rows per step


def _round_up(x, m):
    return (x + m - 1) // m * m


# --------------------------------------------------------------------------- #
# Kernel 1: Ts sentences per grid step:
#   word bi-GRU (fused fwd/bwd, row-batched) -> im2col text-CNN -> masked
#   global max over positions -> sigmoid -> lane-dense [Ts, 768] features.
# --------------------------------------------------------------------------- #
def sentence_encoder_kernel(x_ref, wih_ref, whh_ref, bih_ref, bhh_ref,
                            convw_ref, convb_ref, mask_ref, out_ref,
                            hstate_ref):
    Ts, L, E = x_ref.shape
    Hw = whh_ref.shape[0]
    BE = hstate_ref.shape[0]              # state-frame rows (B + 8 tap slack)
    B = mask_ref.shape[0]                 # conv output-frame rows
    R = B * Ts

    wih_b = wih_ref[...].astype(jnp.bfloat16)
    whh_b = whh_ref[...].astype(jnp.bfloat16)
    bih = bih_ref[...]
    bhh = bhh_ref[...]

    # input projections for all (sentence, word) pairs at once (bf16 MXU, f32 acc)
    x2d = x_ref[...].reshape(Ts * L, E).astype(jnp.bfloat16)
    xproj = jnp.dot(x2d, wih_b, preferred_element_type=jnp.float32) + bih
    xp_f = jnp.transpose(xproj.reshape(Ts, L, GATE_W_PAD), (1, 0, 2))  # [L,Ts,128]

    # fused fwd/bwd per-step operands, hoisted off the serial h-dependency
    # chain (trace-time; rows [0,Ts) = fwd word i, rows [Ts,2Ts) = bwd word L-1-i)
    xp_steps = [jnp.concatenate([xp_f[i], xp_f[L - 1 - i]], axis=0)
                for i in range(L)]                                     # [2Ts,128]

    # zero the position-major state frame (padding rows stay zero)
    hstate_ref[...] = jnp.zeros_like(hstate_ref)

    # fused fwd+bwd word GRU; states scattered straight into VMEM (no list/stack)
    # TODO(synk): lax.fori_loop(..., unroll=4) for large L.
    h = jnp.zeros((2 * Ts, Hw), jnp.float32)
    for i in range(L):
        hp = jnp.dot(h.astype(jnp.bfloat16), whh_b,
                     preferred_element_type=jnp.float32) + bhh         # [2Ts,128]
        a = xp_steps[i] + hp                     # full-width gate pre-activation
        r = jax.nn.sigmoid(a[:, 0 * Hw:1 * Hw])
        z = jax.nn.sigmoid(a[:, 1 * Hw:2 * Hw])
        n = jnp.tanh(xp_steps[i][:, 2 * Hw:3 * Hw] + r * hp[:, 2 * Hw:3 * Hw])
        h = (1.0 - z) * n + z * h
        hstate_ref[2 + i] = h[:Ts]                        # fwd state of word i
        hstate_ref[2 + L + (L - 1 - i)] = h[Ts:2 * Ts]    # bwd state of word L-1-i

    # fused text-CNN as ONE im2col matmul: [R, 6*Hw] @ [6*Hw, 768].
    # Position-major ((position, sentence) row order) makes every tap shift a
    # sublane-aligned slice of j*Ts rows.
    hflat = hstate_ref[...].reshape(BE * Ts, Hw)
    cols = jnp.concatenate(
        [hflat[j * Ts:j * Ts + R, :] for j in range(NUM_TAPS)], axis=1)  # [R,192]
    acc = jnp.dot(cols.astype(jnp.bfloat16),
                  convw_ref[...].astype(jnp.bfloat16),
                  preferred_element_type=jnp.float32) + convb_ref[...]   # [R,768]

    # additive -1e30 mask on invalid output rows per branch, then the global
    # max over positions is a leading-axis (pure VPU) reduction.
    # TODO(synk): torch's F.max_pool1d(kernel_size=2L) would error on the
    # even-k convs (output length 2L-1); global max over valid positions is
    # the intended semantics and is used here.
    acc = acc.reshape(B, Ts, SENT_FEAT_PAD) + mask_ref[...]
    out_ref[...] = jax.nn.sigmoid(jnp.max(acc, axis=0))                  # [Ts,768]


# --------------------------------------------------------------------------- #
# Kernel 2: sentence-level bi-GRU (fused directions) + mean + fc1/fc2/fc3 head
# --------------------------------------------------------------------------- #
def document_kernel(feat_ref, wih_ref, whh_ref, bih_ref, bhh_ref,
                    fc1w_ref, fc1b_ref, fc2w_ref, fc2b_ref, fc3w_ref, fc3b_ref,
                    out_ref):
    S = feat_ref.shape[0]
    Hs = whh_ref.shape[0]

    whh_b = whh_ref[...].astype(jnp.bfloat16)
    bhh = bhh_ref[...]

    xproj = jnp.dot(feat_ref[...].astype(jnp.bfloat16),
                    wih_ref[...].astype(jnp.bfloat16),
                    preferred_element_type=jnp.float32) + bih_ref[...]   # [S,256]

    # hoisted fused fwd/bwd per-step operands (row 0 = fwd i, row 1 = bwd S-1-i)
    xp_steps = [jnp.concatenate([xproj[i:i + 1, :], xproj[S - 1 - i:S - i, :]],
                                axis=0) for i in range(S)]               # [2,256]

    # fused fwd+bwd recurrence; accumulate the sum of all 2S hidden states
    # TODO(synk): lax.fori_loop for very large S.
    h = jnp.zeros((2, Hs), jnp.float32)
    acc = jnp.zeros((2, Hs), jnp.float32)
    for i in range(S):
        hp = jnp.dot(h.astype(jnp.bfloat16), whh_b,
                     preferred_element_type=jnp.float32) + bhh
        a = xp_steps[i] + hp
        r = jax.nn.sigmoid(a[:, 0 * Hs:1 * Hs])
        z = jax.nn.sigmoid(a[:, 1 * Hs:2 * Hs])
        n = jnp.tanh(xp_steps[i][:, 2 * Hs:3 * Hs] + r * hp[:, 2 * Hs:3 * Hs])
        h = (1.0 - z) * n + z * h
        acc = acc + h
    h_doc = jnp.sum(acc, axis=0, keepdims=True) * (1.0 / (2.0 * S))      # [1,Hs]

    x = jax.nn.sigmoid(jnp.dot(h_doc, fc1w_ref[...],
                               preferred_element_type=jnp.float32) + fc1b_ref[...])
    x = jax.nn.sigmoid(jnp.dot(x, fc2w_ref[...],
                               preferred_element_type=jnp.float32) + fc2b_ref[...])
    x = jax.nn.sigmoid(jnp.dot(x, fc3w_ref[...],
                               preferred_element_type=jnp.float32) + fc3b_ref[...])
    out_ref[...] = x


# --------------------------------------------------------------------------- #
# Wrapper
# --------------------------------------------------------------------------- #
def _choose_sentence_tile(S, L):
    b = _round_up(2 * L + 2, 8)               # conv output-frame rows per sentence
    # cap Ts so the [B*Ts, 768] f32 conv accumulator stays ~<= 8 MiB
    # (keeps the bigger tile win safe on v7x's 64 MiB VMEM).
    cap = max(8, ((8 << 20) // (b * SENT_FEAT_PAD * 4)) // 8 * 8)
    ts = max(8, min(MAX_SENT_TILE, cap, _round_up(S, 8)))
    return ts, b


def _conv_valid_mask(L, b):
    # additive mask [B, 1, 768]: 0 on valid conv output rows of each branch,
    # -1e30 elsewhere (rows are in the max-pad-2 frame; states live at 2..2L+1)
    mask = np.zeros((b, 1, SENT_FEAT_PAD), np.float32)
    pos = np.arange(b)
    for ci, (k, p) in enumerate(zip(CONV_KS, CONV_PADS)):
        lo, hi = 2 - p, 2 * L + 3 + p - k
        bad = (pos < lo) | (pos >= hi)
        mask[bad, 0, ci * CONV_CH_PAD:(ci + 1) * CONV_CH_PAD] = -1e30
    return jnp.asarray(mask)


@jax.jit
def ha_net_forward(inputs_all, params):
    S, L, E = inputs_all.shape
    Ts, B = _choose_sentence_tile(S, L)
    num_tiles = pl.cdiv(S, Ts)
    S_pad = num_tiles * Ts
    if S_pad != S:                     # pad with dummy sentences, dropped later
        inputs_all = jnp.pad(inputs_all, ((0, S_pad - S), (0, 0), (0, 0)))
    BE = B + 8                          # + tap slack rows (all zero)

    Hw, C = GRU_WORD_HIDDEN, SENT_FEAT_PAD
    mask = _conv_valid_mask(L, B)

    sent_feats = pl.pallas_call(
        sentence_encoder_kernel,
        out_shape=jax.ShapeDtypeStruct((S_pad, C), jnp.float32),
        grid_spec=pltpu.PrefetchScalarGridSpec(
            num_scalar_prefetch=0,
            grid=(num_tiles,),
            in_specs=[
                pl.BlockSpec((Ts, L, E), lambda s: (s, 0, 0)),
                pl.BlockSpec((E, GATE_W_PAD), lambda s: (0, 0)),
                pl.BlockSpec((Hw, GATE_W_PAD), lambda s: (0, 0)),
                pl.BlockSpec((1, GATE_W_PAD), lambda s: (0, 0)),
                pl.BlockSpec((1, GATE_W_PAD), lambda s: (0, 0)),
                pl.BlockSpec((NUM_TAPS * Hw, C), lambda s: (0, 0)),
                pl.BlockSpec((1, C), lambda s: (0, 0)),
                pl.BlockSpec((B, 1, C), lambda s: (0, 0, 0)),
            ],
            out_specs=pl.BlockSpec((Ts, C), lambda s: (s, 0)),
            scratch_shapes=[pltpu.VMEM((BE, Ts, Hw), jnp.float32)],
        ),
        compiler_params=pltpu.CompilerParams(
            dimension_semantics=("parallel",),        # v7x: shard tiles over TCs
            vmem_limit_bytes=48 * 1024 * 1024),
    )(inputs_all,
      params["w_ih_w"], params["w_hh_w"], params["b_ih_w"], params["b_hh_w"],
      params["conv_w"], params["conv_b"], mask)

    sent_feats = sent_feats[:S]        # drop padded sentences
    # TODO(synk): pass S as an SMEM scalar and mask padded sentences inside the
    # document kernel instead of this small HBM-side slice.

    out = pl.pallas_call(
        document_kernel,
        out_shape=jax.ShapeDtypeStruct((1, 1), jnp.float32),
    )(sent_feats,
      params["w_ih_s"], params["w_hh_s"], params["b_ih_s"], params["b_hh_s"],
      params["fc1_w"], params["fc1_b"], params["fc2_w"], params["fc2_b"],
      params["fc3_w"], params["fc3_b"])
    return out


# --------------------------------------------------------------------------- #
# Deterministic parameter init (torch shapes, stored pre-transposed/lane-padded)
# --------------------------------------------------------------------------- #
def init_params(key, E, Hw, Hs):
    keys = jax.random.split(key, 24)

    def nrm(k, shape, scale=0.1):
        return scale * jax.random.normal(k, shape, dtype=jnp.float32)

    C = SENT_FEAT_PAD

    # word GRUCell (torch: weight_ih [3Hw, E], weight_hh [3Hw, Hw], biases [3Hw])
    w_ih_w = jnp.zeros((E, GATE_W_PAD), jnp.float32).at[:, :3 * Hw].set(
        nrm(keys[0], (3 * Hw, E)).T)
    w_hh_w = jnp.zeros((Hw, GATE_W_PAD), jnp.float32).at[:, :3 * Hw].set(
        nrm(keys[1], (3 * Hw, Hw)).T)
    b_ih_w = jnp.zeros((1, GATE_W_PAD), jnp.float32).at[0, :3 * Hw].set(
        nrm(keys[2], (3 * Hw,)))
    b_hh_w = jnp.zeros((1, GATE_W_PAD), jnp.float32).at[0, :3 * Hw].set(
        nrm(keys[3], (3 * Hw,)))

    # fused im2col conv weight [6*Hw, 768]: rows [j*Hw,(j+1)*Hw) = kernel-row j,
    # branch ci on lanes [ci*128, ci*128+100); taps j >= k_ci are zero.
    conv_w = jnp.zeros((NUM_TAPS * Hw, C), jnp.float32)
    conv_b = jnp.zeros((1, C), jnp.float32)
    for ci, k in enumerate(CONV_KS):
        w_t = nrm(keys[4 + ci], (NUM_CONV_CH, k, Hw))          # torch [100,1,k,Hw]
        w_t = jnp.transpose(w_t, (1, 2, 0)).reshape(k * Hw, NUM_CONV_CH)
        conv_w = conv_w.at[:k * Hw,
                           ci * CONV_CH_PAD:ci * CONV_CH_PAD + NUM_CONV_CH].set(w_t)
        conv_b = conv_b.at[0, ci * CONV_CH_PAD:ci * CONV_CH_PAD + NUM_CONV_CH
                           ].set(nrm(keys[10 + ci], (NUM_CONV_CH,)))

    # sentence GRUCell (torch: weight_ih [3Hs, 600]); input rows scattered to the
    # lane-padded 768 feature layout (padded channels get zero rows).
    w_ih_s_t = nrm(keys[16], (3 * Hs, NUM_CONV * NUM_CONV_CH))  # [192, 600]
    w_ih_s = jnp.zeros((C, GATE_S_PAD), jnp.float32)
    for ci in range(NUM_CONV):
        w_ih_s = w_ih_s.at[ci * CONV_CH_PAD:ci * CONV_CH_PAD + NUM_CONV_CH,
                           :3 * Hs].set(
            w_ih_s_t[:, ci * NUM_CONV_CH:(ci + 1) * NUM_CONV_CH].T)
    w_hh_s = jnp.zeros((Hs, GATE_S_PAD), jnp.float32).at[:, :3 * Hs].set(
        nrm(keys[17], (3 * Hs, Hs)).T)
    b_ih_s = jnp.zeros((1, GATE_S_PAD), jnp.float32).at[0, :3 * Hs].set(
        nrm(keys[18], (3 * Hs,)))
    b_hh_s = jnp.zeros((1, GATE_S_PAD), jnp.float32).at[0, :3 * Hs].set(
        nrm(keys[19], (3 * Hs,)))

    return dict(
        w_ih_w=w_ih_w, w_hh_w=w_hh_w, b_ih_w=b_ih_w, b_hh_w=b_hh_w,
        conv_w=conv_w, conv_b=conv_b,
        w_ih_s=w_ih_s, w_hh_s=w_hh_s, b_ih_s=b_ih_s, b_hh_s=b_hh_s,
        # fc head (torch [out, in] weights; zero biases per norm_col_init/fill_(0))
        fc1_w=nrm(keys[20], (128, Hs)).T, fc1_b=jnp.zeros((1, 128), jnp.float32),
        fc2_w=nrm(keys[21], (32, 128)).T, fc2_b=jnp.zeros((1, 32), jnp.float32),
        fc3_w=nrm(keys[22], (1, 32)).T, fc3_b=jnp.zeros((1, 1), jnp.float32),
    )


if __name__ == "__main__":
    # small shapes: 3 sentences, 8 words per sentence, embedding_length = 16
    S, L, E = 3, 8, 16
    inputs_all = jax.random.normal(jax.random.PRNGKey(0), (S, L, E),
                                   dtype=jnp.float32)
    params = init_params(jax.random.PRNGKey(1), E, GRU_WORD_HIDDEN,
                         GRU_SENT_HIDDEN)

    out = ha_net_forward(inputs_all, params)
    out = jax.block_until_ready(out)
    assert out.shape == (1, 1) and out.dtype == jnp.float32
    assert bool(jnp.isfinite(out).all())
    print("KERNEL_OK")
</pallas_src>

<mosaic_0001>
module attributes {stable_mosaic.version = 11 : i64} {
  func.func @sentence_encoder_kernel(%arg0: i32, %arg1: memref<8x8x16xf32, #tpu.memory_space<vmem>>, %arg2: memref<16x128xf32, #tpu.memory_space<vmem>>, %arg3: memref<32x128xf32, #tpu.memory_space<vmem>>, %arg4: memref<1x128xf32, #tpu.memory_space<vmem>>, %arg5: memref<1x128xf32, #tpu.memory_space<vmem>>, %arg6: memref<192x768xf32, #tpu.memory_space<vmem>>, %arg7: memref<1x768xf32, #tpu.memory_space<vmem>>, %arg8: memref<24x1x768xf32, #tpu.memory_space<vmem>>, %arg9: memref<8x768xf32, #tpu.memory_space<vmem>>, %arg10: memref<32x8x32xf32, #tpu.memory_space<vmem>>) attributes {dimension_semantics = [#tpu.dimension_semantics<parallel>], iteration_bounds = array<i64: 1>, scalar_prefetch = 0 : i64, scratch_operands = 1 : i64, tpu.core_type = #tpu.core_type<tc>, window_params = [{transform_indices = @transform_0, window_bounds = array<i64: 8, 8, 16>}, {pipeline_mode = #tpu.pipeline_mode<synchronous>, transform_indices = @transform_1, window_bounds = array<i64: 16, 128>}, {pipeline_mode = #tpu.pipeline_mode<synchronous>, transform_indices = @transform_2, window_bounds = array<i64: 32, 128>}, {pipeline_mode = #tpu.pipeline_mode<synchronous>, transform_indices = @transform_3, window_bounds = array<i64: 1, 128>}, {pipeline_mode = #tpu.pipeline_mode<synchronous>, transform_indices = @transform_4, window_bounds = array<i64: 1, 128>}, {pipeline_mode = #tpu.pipeline_mode<synchronous>, transform_indices = @transform_5, window_bounds = array<i64: 192, 768>}, {pipeline_mode = #tpu.pipeline_mode<synchronous>, transform_indices = @transform_6, window_bounds = array<i64: 1, 768>}, {pipeline_mode = #tpu.pipeline_mode<synchronous>, transform_indices = @transform_7, window_bounds = array<i64: 24, 1, 768>}, {transform_indices = @transform_8, window_bounds = array<i64: 8, 768>}]} {
    %c0 = arith.constant 0 : index
    %c0_0 = arith.constant 0 : index
    %0 = vector.load %arg2[%c0, %c0_0] : memref<16x128xf32, #tpu.memory_space<vmem>>, vector<16x128xf32>
    %1 = arith.truncf %0 : vector<16x128xf32> to vector<16x128xbf16>
    %c0_1 = arith.constant 0 : index
    %c0_2 = arith.constant 0 : index
    %2 = vector.load %arg3[%c0_1, %c0_2] : memref<32x128xf32, #tpu.memory_space<vmem>>, vector<32x128xf32>
    %3 = arith.truncf %2 : vector<32x128xf32> to vector<32x128xbf16>
    %c0_3 = arith.constant 0 : index
    %c0_4 = arith.constant 0 : index
    %4 = vector.load %arg4[%c0_3, %c0_4] : memref<1x128xf32, #tpu.memory_space<vmem>>, vector<1x128xf32>
    %c0_5 = arith.constant 0 : index
    %c0_6 = arith.constant 0 : index
    %5 = vector.load %arg5[%c0_5, %c0_6] : memref<1x128xf32, #tpu.memory_space<vmem>>, vector<1x128xf32>
    %c0_7 = arith.constant 0 : index
    %c0_8 = arith.constant 0 : index
    %c0_9 = arith.constant 0 : index
    %6 = vector.load %arg1[%c0_7, %c0_8, %c0_9] : memref<8x8x16xf32, #tpu.memory_space<vmem>>, vector<8x8x16xf32>
    %7 = vector.shape_cast %6 : vector<8x8x16xf32> to vector<64x16xf32>
    %8 = arith.truncf %7 : vector<64x16xf32> to vector<64x16xbf16>
    %cst = arith.constant dense<0.000000e+00> : vector<64x128xf32>
    %9 = tpu.matmul %8, %1, %cst {dimension_numbers = #tpu.dot_dimension_numbers<[1], [0], [0], [1], [0, 0, 1, 1], [], []>} : vector<64x16xbf16>, vector<16x128xbf16>, vector<64x128xf32> -> vector<64x128xf32>
    %10 = vector.broadcast %4 : vector<1x128xf32> to vector<64x128xf32>
    %11 = arith.addf %9, %10 : vector<64x128xf32>
    %12 = vector.shape_cast %11 : vector<64x128xf32> to vector<8x8x128xf32>
    %13 = tpu.transpose %12, [1, 0, 2] : vector<8x8x128xf32> -> vector<8x8x128xf32>
    %14 = vector.extract_strided_slice %13 {offsets = [0, 0, 0], sizes = [1, 8, 128], strides = [1, 1, 1]} : vector<8x8x128xf32> to vector<1x8x128xf32>
    %15 = vector.shape_cast %14 : vector<1x8x128xf32> to vector<8x128xf32>
    %16 = vector.extract_strided_slice %13 {offsets = [7, 0, 0], sizes = [1, 8, 128], strides = [1, 1, 1]} : vector<8x8x128xf32> to vector<1x8x128xf32>
    %17 = vector.shape_cast %16 : vector<1x8x128xf32> to vector<8x128xf32>
    %18 = tpu.concatenate %15, %17 in 0 : vector<8x128xf32>, vector<8x128xf32> -> vector<16x128xf32>
    %19 = vector.extract_strided_slice %13 {offsets = [1, 0, 0], sizes = [1, 8, 128], strides = [1, 1, 1]} : vector<8x8x128xf32> to vector<1x8x128xf32>
    %20 = vector.shape_cast %19 : vector<1x8x128xf32> to vector<8x128xf32>
    %21 = vector.extract_strided_slice %13 {offsets = [6, 0, 0], sizes = [1, 8, 128], strides = [1, 1, 1]} : vector<8x8x128xf32> to vector<1x8x128xf32>
    %22 = vector.shape_cast %21 : vector<1x8x128xf32> to vector<8x128xf32>
    %23 = tpu.concatenate %20, %22 in 0 : vector<8x128xf32>, vector<8x128xf32> -> vector<16x128xf32>
    %24 = vector.extract_strided_slice %13 {offsets = [2, 0, 0], sizes = [1, 8, 128], strides = [1, 1, 1]} : vector<8x8x128xf32> to vector<1x8x128xf32>
    %25 = vector.shape_cast %24 : vector<1x8x128xf32> to vector<8x128xf32>
    %26 = vector.extract_strided_slice %13 {offsets = [5, 0, 0], sizes = [1, 8, 128], strides = [1, 1, 1]} : vector<8x8x128xf32> to vector<1x8x128xf32>
    %27 = vector.shape_cast %26 : vector<1x8x128xf32> to vector<8x128xf32>
    %28 = tpu.concatenate %25, %27 in 0 : vector<8x128xf32>, vector<8x128xf32> -> vector<16x128xf32>
    %29 = vector.extract_strided_slice %13 {offsets = [3, 0, 0], sizes = [1, 8, 128], strides = [1, 1, 1]} : vector<8x8x128xf32> to vector<1x8x128xf32>
    %30 = vector.shape_cast %29 : vector<1x8x128xf32> to vector<8x128xf32>
    %31 = vector.extract_strided_slice %13 {offsets = [4, 0, 0], sizes = [1, 8, 128], strides = [1, 1, 1]} : vector<8x8x128xf32> to vector<1x8x128xf32>
    %32 = vector.shape_cast %31 : vector<1x8x128xf32> to vector<8x128xf32>
    %33 = tpu.concatenate %30, %32 in 0 : vector<8x128xf32>, vector<8x128xf32> -> vector<16x128xf32>
    %34 = vector.extract_strided_slice %13 {offsets = [4, 0, 0], sizes = [1, 8, 128], strides = [1, 1, 1]} : vector<8x8x128xf32> to vector<1x8x128xf32>
    %35 = vector.shape_cast %34 : vector<1x8x128xf32> to vector<8x128xf32>
    %36 = vector.extract_strided_slice %13 {offsets = [3, 0, 0], sizes = [1, 8, 128], strides = [1, 1, 1]} : vector<8x8x128xf32> to vector<1x8x128xf32>
    %37 = vector.shape_cast %36 : vector<1x8x128xf32> to vector<8x128xf32>
    %38 = tpu.concatenate %35, %37 in 0 : vector<8x128xf32>, vector<8x128xf32> -> vector<16x128xf32>
    %39 = vector.extract_strided_slice %13 {offsets = [5, 0, 0], sizes = [1, 8, 128], strides = [1, 1, 1]} : vector<8x8x128xf32> to vector<1x8x128xf32>
    %40 = vector.shape_cast %39 : vector<1x8x128xf32> to vector<8x128xf32>
    %41 = vector.extract_strided_slice %13 {offsets = [2, 0, 0], sizes = [1, 8, 128], strides = [1, 1, 1]} : vector<8x8x128xf32> to vector<1x8x128xf32>
    %42 = vector.shape_cast %41 : vector<1x8x128xf32> to vector<8x128xf32>
    %43 = tpu.concatenate %40, %42 in 0 : vector<8x128xf32>, vector<8x128xf32> -> vector<16x128xf32>
    %44 = vector.extract_strided_slice %13 {offsets = [6, 0, 0], sizes = [1, 8, 128], strides = [1, 1, 1]} : vector<8x8x128xf32> to vector<1x8x128xf32>
    %45 = vector.shape_cast %44 : vector<1x8x128xf32> to vector<8x128xf32>
    %46 = vector.extract_strided_slice %13 {offsets = [1, 0, 0], sizes = [1, 8, 128], strides = [1, 1, 1]} : vector<8x8x128xf32> to vector<1x8x128xf32>
    %47 = vector.shape_cast %46 : vector<1x8x128xf32> to vector<8x128xf32>
    %48 = tpu.concatenate %45, %47 in 0 : vector<8x128xf32>, vector<8x128xf32> -> vector<16x128xf32>
    %49 = vector.extract_strided_slice %13 {offsets = [7, 0, 0], sizes = [1, 8, 128], strides = [1, 1, 1]} : vector<8x8x128xf32> to vector<1x8x128xf32>
    %50 = vector.shape_cast %49 : vector<1x8x128xf32> to vector<8x128xf32>
    %51 = vector.extract_strided_slice %13 {offsets = [0, 0, 0], sizes = [1, 8, 128], strides = [1, 1, 1]} : vector<8x8x128xf32> to vector<1x8x128xf32>
    %52 = vector.shape_cast %51 : vector<1x8x128xf32> to vector<8x128xf32>
    %53 = tpu.concatenate %50, %52 in 0 : vector<8x128xf32>, vector<8x128xf32> -> vector<16x128xf32>
    %cst_10 = arith.constant 0.000000e+00 : f32
    %54 = vector.broadcast %cst_10 : f32 to vector<32x8x32xf32>
    %c0_11 = arith.constant 0 : index
    %c0_12 = arith.constant 0 : index
    %c0_13 = arith.constant 0 : index
    %55 = vector.load %arg10[%c0_11, %c0_12, %c0_13] : memref<32x8x32xf32, #tpu.memory_space<vmem>>, vector<32x8x32xf32>
    tpu.vector_store %arg10[%c0_11, %c0_12, %c0_13], %54 {strides = array<i32>} : memref<32x8x32xf32, #tpu.memory_space<vmem>>, vector<32x8x32xf32>,
    %cst_14 = arith.constant 0.000000e+00 : f32
    %56 = vector.broadcast %cst_14 : f32 to vector<16x32xf32>
    %57 = arith.truncf %56 : vector<16x32xf32> to vector<16x32xbf16>
    %cst_15 = arith.constant dense<0.000000e+00> : vector<16x128xf32>
    %58 = tpu.matmul %57, %3, %cst_15 {dimension_numbers = #tpu.dot_dimension_numbers<[1], [0], [0], [1], [0, 0, 1, 1], [], []>} : vector<16x32xbf16>, vector<32x128xbf16>, vector<16x128xf32> -> vector<16x128xf32>
    %59 = vector.broadcast %5 : vector<1x128xf32> to vector<16x128xf32>
    %60 = arith.addf %58, %59 : vector<16x128xf32>
    %61 = arith.addf %18, %60 : vector<16x128xf32>
    %62 = vector.extract_strided_slice %61 {offsets = [0, 0], sizes = [16, 32], strides = [1, 1]} : vector<16x128xf32> to vector<16x32xf32>
    %63 = arith.negf %62 : vector<16x32xf32>
    %64 = math.exp %63 : vector<16x32xf32>
    %cst_16 = arith.constant 1.000000e+00 : f32
    %65 = vector.broadcast %cst_16 : f32 to vector<16x32xf32>
    %66 = arith.addf %65, %64 : vector<16x32xf32>
    %67 = arith.divf %65, %66 : vector<16x32xf32>
    %68 = vector.extract_strided_slice %61 {offsets = [0, 32], sizes = [16, 32], strides = [1, 1]} : vector<16x128xf32> to vector<16x32xf32>
    %69 = arith.negf %68 : vector<16x32xf32>
    %70 = math.exp %69 : vector<16x32xf32>
    %cst_17 = arith.constant 1.000000e+00 : f32
    %71 = vector.broadcast %cst_17 : f32 to vector<16x32xf32>
    %72 = arith.addf %71, %70 : vector<16x32xf32>
    %73 = arith.divf %71, %72 : vector<16x32xf32>
    %74 = vector.extract_strided_slice %18 {offsets = [0, 64], sizes = [16, 32], strides = [1, 1]} : vector<16x128xf32> to vector<16x32xf32>
    %75 = vector.extract_strided_slice %60 {offsets = [0, 64], sizes = [16, 32], strides = [1, 1]} : vector<16x128xf32> to vector<16x32xf32>
    %76 = arith.mulf %67, %75 : vector<16x32xf32>
    %77 = arith.addf %74, %76 : vector<16x32xf32>
    %78 = math.tanh %77 : vector<16x32xf32>
    %cst_18 = arith.constant 1.000000e+00 : f32
    %79 = vector.broadcast %cst_18 : f32 to vector<16x32xf32>
    %80 = arith.subf %79, %73 : vector<16x32xf32>
    %81 = arith.mulf %80, %78 : vector<16x32xf32>
    %82 = arith.mulf %73, %56 : vector<16x32xf32>
    %83 = arith.addf %81, %82 : vector<16x32xf32>
    %84 = vector.extract_strided_slice %83 {offsets = [0, 0], sizes = [8, 32], strides = [1, 1]} : vector<16x32xf32> to vector<8x32xf32>
    %c2 = arith.constant 2 : index
    %c0_19 = arith.constant 0 : index
    %c0_20 = arith.constant 0 : index
    %85 = vector.load %arg10[%c2, %c0_19, %c0_20] : memref<32x8x32xf32, #tpu.memory_space<vmem>>, vector<1x8x32xf32>
    %86 = vector.shape_cast %85 : vector<1x8x32xf32> to vector<8x32xf32>
    %87 = vector.shape_cast %84 : vector<8x32xf32> to vector<1x8x32xf32>
    tpu.vector_store %arg10[%c2, %c0_19, %c0_20], %87 {strides = array<i32>} : memref<32x8x32xf32, #tpu.memory_space<vmem>>, vector<1x8x32xf32>,
    %88 = vector.extract_strided_slice %83 {offsets = [8, 0], sizes = [8, 32], strides = [1, 1]} : vector<16x32xf32> to vector<8x32xf32>
    %c17 = arith.constant 17 : index
    %c0_21 = arith.constant 0 : index
    %c0_22 = arith.constant 0 : index
    %89 = vector.load %arg10[%c17, %c0_21, %c0_22] : memref<32x8x32xf32, #tpu.memory_space<vmem>>, vector<1x8x32xf32>
    %90 = vector.shape_cast %89 : vector<1x8x32xf32> to vector<8x32xf32>
    %91 = vector.shape_cast %88 : vector<8x32xf32> to vector<1x8x32xf32>
    tpu.vector_store %arg10[%c17, %c0_21, %c0_22], %91 {strides = array<i32>} : memref<32x8x32xf32, #tpu.memory_space<vmem>>, vector<1x8x32xf32>,
    %92 = arith.truncf %83 : vector<16x32xf32> to vector<16x32xbf16>
    %cst_23 = arith.constant dense<0.000000e+00> : vector<16x128xf32>
    %93 = tpu.matmul %92, %3, %cst_23 {dimension_numbers = #tpu.dot_dimension_numbers<[1], [0], [0], [1], [0, 0, 1, 1], [], []>} : vector<16x32xbf16>, vector<32x128xbf16>, vector<16x128xf32> -> vector<16x128xf32>
    %94 = vector.broadcast %5 : vector<1x128xf32> to vector<16x128xf32>
    %95 = arith.addf %93, %94 : vector<16x128xf32>
    %96 = arith.addf %23, %95 : vector<16x128xf32>
    %97 = vector.extract_strided_slice %96 {offsets = [0, 0], sizes = [16, 32], strides = [1, 1]} : vector<16x128xf32> to vector<16x32xf32>
    %98 = arith.negf %97 : vector<16x32xf32>
    %99 = math.exp %98 : vector<16x32xf32>
    %cst_24 = arith.constant 1.000000e+00 : f32
    %100 = vector.broadcast %cst_24 : f32 to vector<16x32xf32>
    %101 = arith.addf %100, %99 : vector<16x32xf32>
    %102 = arith.divf %100, %101 : vector<16x32xf32>
    %103 = vector.extract_strided_slice %96 {offsets = [0, 32], sizes = [16, 32], strides = [1, 1]} : vector<16x128xf32> to vector<16x32xf32>
    %104 = arith.negf %103 : vector<16x32xf32>
    %105 = math.exp %104 : vector<16x32xf32>
    %cst_25 = arith.constant 1.000000e+00 : f32
    %106 = vector.broadcast %cst_25 : f32 to vector<16x32xf32>
    %107 = arith.addf %106, %105 : vector<16x32xf32>
    %108 = arith.divf %106, %107 : vector<16x32xf32>
    %109 = vector.extract_strided_slice %23 {offsets = [0, 64], sizes = [16, 32], strides = [1, 1]} : vector<16x128xf32> to vector<16x32xf32>
    %110 = vector.extract_strided_slice %95 {offsets = [0, 64], sizes = [16, 32], strides = [1, 1]} : vector<16x128xf32> to vector<16x32xf32>
    %111 = arith.mulf %102, %110 : vector<16x32xf32>
    %112 = arith.addf %109, %111 : vector<16x32xf32>
    %113 = math.tanh %112 : vector<16x32xf32>
    %cst_26 = arith.constant 1.000000e+00 : f32
    %114 = vector.broadcast %cst_26 : f32 to vector<16x32xf32>
    %115 = arith.subf %114, %108 : vector<16x32xf32>
    %116 = arith.mulf %115, %113 : vector<16x32xf32>
    %117 = arith.mulf %108, %83 : vector<16x32xf32>
    %118 = arith.addf %116, %117 : vector<16x32xf32>
    %119 = vector.extract_strided_slice %118 {offsets = [0, 0], sizes = [8, 32], strides = [1, 1]} : vector<16x32xf32> to vector<8x32xf32>
    %c3 = arith.constant 3 : index
    %c0_27 = arith.constant 0 : index
    %c0_28 = arith.constant 0 : index
    %120 = vector.load %arg10[%c3, %c0_27, %c0_28] : memref<32x8x32xf32, #tpu.memory_space<vmem>>, vector<1x8x32xf32>
    %121 = vector.shape_cast %120 : vector<1x8x32xf32> to vector<8x32xf32>
    %122 = vector.shape_cast %119 : vector<8x32xf32> to vector<1x8x32xf32>
    tpu.vector_store %arg10[%c3, %c0_27, %c0_28], %122 {strides = array<i32>} : memref<32x8x32xf32, #tpu.memory_space<vmem>>, vector<1x8x32xf32>,
    %123 = vector.extract_strided_slice %118 {offsets = [8, 0], sizes = [8, 32], strides = [1, 1]} : vector<16x32xf32> to vector<8x32xf32>
    %c16 = arith.constant 16 : index
    %c0_29 = arith.constant 0 : index
    %c0_30 = arith.constant 0 : index
    %124 = vector.load %arg10[%c16, %c0_29, %c0_30] : memref<32x8x32xf32, #tpu.memory_space<vmem>>, vector<1x8x32xf32>
    %125 = vector.shape_cast %124 : vector<1x8x32xf32> to vector<8x32xf32>
    %126 = vector.shape_cast %123 : vector<8x32xf32> to vector<1x8x32xf32>
    tpu.vector_store %arg10[%c16, %c0_29, %c0_30], %126 {strides = array<i32>} : memref<32x8x32xf32, #tpu.memory_space<vmem>>, vector<1x8x32xf32>,
    %127 = arith.truncf %118 : vector<16x32xf32> to vector<16x32xbf16>
    %cst_31 = arith.constant dense<0.000000e+00> : vector<16x128xf32>
    %128 = tpu.matmul %127, %3, %cst_31 {dimension_numbers = #tpu.dot_dimension_numbers<[1], [0], [0], [1], [0, 0, 1, 1], [], []>} : vector<16x32xbf16>, vector<32x128xbf16>, vector<16x128xf32> -> vector<16x128xf32>
    %129 = vector.broadcast %5 : vector<1x128xf32> to vector<16x128xf32>
    %130 = arith.addf %128, %129 : vector<16x128xf32>
    %131 = arith.addf %28, %130 : vector<16x128xf32>
    %132 = vector.extract_strided_slice %131 {offsets = [0, 0], sizes = [16, 32], strides = [1, 1]} : vector<16x128xf32> to vector<16x32xf32>
    %133 = arith.negf %132 : vector<16x32xf32>
    %134 = math.exp %133 : vector<16x32xf32>
    %cst_32 = arith.constant 1.000000e+00 : f32
    %135 = vector.broadcast %cst_32 : f32 to vector<16x32xf32>
    %136 = arith.addf %135, %134 : vector<16x32xf32>
    %137 = arith.divf %135, %136 : vector<16x32xf32>
    %138 = vector.extract_strided_slice %131 {offsets = [0, 32], sizes = [16, 32], strides = [1, 1]} : vector<16x128xf32> to vector<16x32xf32>
    %139 = arith.negf %138 : vector<16x32xf32>
    %140 = math.exp %139 : vector<16x32xf32>
    %cst_33 = arith.constant 1.000000e+00 : f32
    %141 = vector.broadcast %cst_33 : f32 to vector<16x32xf32>
    %142 = arith.addf %141, %140 : vector<16x32xf32>
    %143 = arith.divf %141, %142 : vector<16x32xf32>
    %144 = vector.extract_strided_slice %28 {offsets = [0, 64], sizes = [16, 32], strides = [1, 1]} : vector<16x128xf32> to vector<16x32xf32>
    %145 = vector.extract_strided_slice %130 {offsets = [0, 64], sizes = [16, 32], strides = [1, 1]} : vector<16x128xf32> to vector<16x32xf32>
    %146 = arith.mulf %137, %145 : vector<16x32xf32>
    %147 = arith.addf %144, %146 : vector<16x32xf32>
    %148 = math.tanh %147 : vector<16x32xf32>
    %cst_34 = arith.constant 1.000000e+00 : f32
    %149 = vector.broadcast %cst_34 : f32 to vector<16x32xf32>
    %150 = arith.subf %149, %143 : vector<16x32xf32>
    %151 = arith.mulf %150, %148 : vector<16x32xf32>
    %152 = arith.mulf %143, %118 : vector<16x32xf32>
    %153 = arith.addf %151, %152 : vector<16x32xf32>
    %154 = vector.extract_strided_slice %153 {offsets = [0, 0], sizes = [8, 32], strides = [1, 1]} : vector<16x32xf32> to vector<8x32xf32>
    %c4 = arith.constant 4 : index
    %c0_35 = arith.constant 0 : index
    %c0_36 = arith.constant 0 : index
    %155 = vector.load %arg10[%c4, %c0_35, %c0_36] : memref<32x8x32xf32, #tpu.memory_space<vmem>>, vector<1x8x32xf32>
    %156 = vector.shape_cast %155 : vector<1x8x32xf32> to vector<8x32xf32>
    %157 = vector.shape_cast %154 : vector<8x32xf32> to vector<1x8x32xf32>
    tpu.vector_store %arg10[%c4, %c0_35, %c0_36], %157 {strides = array<i32>} : memref<32x8x32xf32, #tpu.memory_space<vmem>>, vector<1x8x32xf32>,
    %158 = vector.extract_strided_slice %153 {offsets = [8, 0], sizes = [8, 32], strides = [1, 1]} : vector<16x32xf32> to vector<8x32xf32>
    %c15 = arith.constant 15 : index
    %c0_37 = arith.constant 0 : index
    %c0_38 = arith.constant 0 : index
    %159 = vector.load %arg10[%c15, %c0_37, %c0_38] : memref<32x8x32xf32, #tpu.memory_space<vmem>>, vector<1x8x32xf32>
    %160 = vector.shape_cast %159 : vector<1x8x32xf32> to vector<8x32xf32>
    %161 = vector.shape_cast %158 : vector<8x32xf32> to vector<1x8x32xf32>
    tpu.vector_store %arg10[%c15, %c0_37, %c0_38], %161 {strides = array<i32>} : memref<32x8x32xf32, #tpu.memory_space<vmem>>, vector<1x8x32xf32>,
    %162 = arith.truncf %153 : vector<16x32xf32> to vector<16x32xbf16>
    %cst_39 = arith.constant dense<0.000000e+00> : vector<16x128xf32>
    %163 = tpu.matmul %162, %3, %cst_39 {dimension_numbers = #tpu.dot_dimension_numbers<[1], [0], [0], [1], [0, 0, 1, 1], [], []>} : vector<16x32xbf16>, vector<32x128xbf16>, vector<16x128xf32> -> vector<16x128xf32>
    %164 = vector.broadcast %5 : vector<1x128xf32> to vector<16x128xf32>
    %165 = arith.addf %163, %164 : vector<16x128xf32>
    %166 = arith.addf %33, %165 : vector<16x128xf32>
    %167 = vector.extract_strided_slice %166 {offsets = [0, 0], sizes = [16, 32], strides = [1, 1]} : vector<16x128xf32> to vector<16x32xf32>
    %168 = arith.negf %167 : vector<16x32xf32>
    %169 = math.exp %168 : vector<16x32xf32>
    %cst_40 = arith.constant 1.000000e+00 : f32
    %170 = vector.broadcast %cst_40 : f32 to vector<16x32xf32>
    %171 = arith.addf %170, %169 : vector<16x32xf32>
    %172 = arith.divf %170, %171 : vector<16x32xf32>
    %173 = vector.extract_strided_slice %166 {offsets = [0, 32], sizes = [16, 32], strides = [1, 1]} : vector<16x128xf32> to vector<16x32xf32>
    %174 = arith.negf %173 : vector<16x32xf32>
    %175 = math.exp %174 : vector<16x32xf32>
    %cst_41 = arith.constant 1.000000e+00 : f32
    %176 = vector.broadcast %cst_41 : f32 to vector<16x32xf32>
    %177 = arith.addf %176, %175 : vector<16x32xf32>
    %178 = arith.divf %176, %177 : vector<16x32xf32>
    %179 = vector.extract_strided_slice %33 {offsets = [0, 64], sizes = [16, 32], strides = [1, 1]} : vector<16x128xf32> to vector<16x32xf32>
    %180 = vector.extract_strided_slice %165 {offsets = [0, 64], sizes = [16, 32], strides = [1, 1]} : vector<16x128xf32> to vector<16x32xf32>
    %181 = arith.mulf %172, %180 : vector<16x32xf32>
    %182 = arith.addf %179, %181 : vector<16x32xf32>
    %183 = math.tanh %182 : vector<16x32xf32>
    %cst_42 = arith.constant 1.000000e+00 : f32
    %184 = vector.broadcast %cst_42 : f32 to vector<16x32xf32>
    %185 = arith.subf %184, %178 : vector<16x32xf32>
    %186 = arith.mulf %185, %183 : vector<16x32xf32>
    %187 = arith.mulf %178, %153 : vector<16x32xf32>
    %188 = arith.addf %186, %187 : vector<16x32xf32>
    %189 = vector.extract_strided_slice %188 {offsets = [0, 0], sizes = [8, 32], strides = [1, 1]} : vector<16x32xf32> to vector<8x32xf32>
    %c5 = arith.constant 5 : index
    %c0_43 = arith.constant 0 : index
    %c0_44 = arith.constant 0 : index
    %190 = vector.load %arg10[%c5, %c0_43, %c0_44] : memref<32x8x32xf32, #tpu.memory_space<vmem>>, vector<1x8x32xf32>
    %191 = vector.shape_cast %190 : vector<1x8x32xf32> to vector<8x32xf32>
    %192 = vector.shape_cast %189 : vector<8x32xf32> to vector<1x8x32xf32>
    tpu.vector_store %arg10[%c5, %c0_43, %c0_44], %192 {strides = array<i32>} : memref<32x8x32xf32, #tpu.memory_space<vmem>>, vector<1x8x32xf32>,
    %193 = vector.extract_strided_slice %188 {offsets = [8, 0], sizes = [8, 32], strides = [1, 1]} : vector<16x32xf32> to vector<8x32xf32>
    %c14 = arith.constant 14 : index
    %c0_45 = arith.constant 0 : index
    %c0_46 = arith.constant 0 : index
    %194 = vector.load %arg10[%c14, %c0_45, %c0_46] : memref<32x8x32xf32, #tpu.memory_space<vmem>>, vector<1x8x32xf32>
    %195 = vector.shape_cast %194 : vector<1x8x32xf32> to vector<8x32xf32>
    %196 = vector.shape_cast %193 : vector<8x32xf32> to vector<1x8x32xf32>
    tpu.vector_store %arg10[%c14, %c0_45, %c0_46], %196 {strides = array<i32>} : memref<32x8x32xf32, #tpu.memory_space<vmem>>, vector<1x8x32xf32>,
    %197 = arith.truncf %188 : vector<16x32xf32> to vector<16x32xbf16>
    %cst_47 = arith.constant dense<0.000000e+00> : vector<16x128xf32>
    %198 = tpu.matmul %197, %3, %cst_47 {dimension_numbers = #tpu.dot_dimension_numbers<[1], [0], [0], [1], [0, 0, 1, 1], [], []>} : vector<16x32xbf16>, vector<32x128xbf16>, vector<16x128xf32> -> vector<16x128xf32>
    %199 = vector.broadcast %5 : vector<1x128xf32> to vector<16x128xf32>
    %200 = arith.addf %198, %199 : vector<16x128xf32>
    %201 = arith.addf %38, %200 : vector<16x128xf32>
    %202 = vector.extract_strided_slice %201 {offsets = [0, 0], sizes = [16, 32], strides = [1, 1]} : vector<16x128xf32> to vector<16x32xf32>
    %203 = arith.negf %202 : vector<16x32xf32>
    %204 = math.exp %203 : vector<16x32xf32>
    %cst_48 = arith.constant 1.000000e+00 : f32
    %205 = vector.broadcast %cst_48 : f32 to vector<16x32xf32>
    %206 = arith.addf %205, %204 : vector<16x32xf32>
    %207 = arith.divf %205, %206 : vector<16x32xf32>
    %208 = vector.extract_strided_slice %201 {offsets = [0, 32], sizes = [16, 32], strides = [1, 1]} : vector<16x128xf32> to vector<16x32xf32>
    %209 = arith.negf %208 : vector<16x32xf32>
    %210 = math.exp %209 : vector<16x32xf32>
    %cst_49 = arith.constant 1.000000e+00 : f32
    %211 = vector.broadcast %cst_49 : f32 to vector<16x32xf32>
    %212 = arith.addf %211, %210 : vector<16x32xf32>
    %213 = arith.divf %211, %212 : vector<16x32xf32>
    %214 = vector.extract_strided_slice %38 {offsets = [0, 64], sizes = [16, 32], strides = [1, 1]} : vector<16x128xf32> to vector<16x32xf32>
    %215 = vector.extract_strided_slice %200 {offsets = [0, 64], sizes = [16, 32], strides = [1, 1]} : vector<16x128xf32> to vector<16x32xf32>
    %216 = arith.mulf %207, %215 : vector<16x32xf32>
    %217 = arith.addf %214, %216 : vector<16x32xf32>
    %218 = math.tanh %217 : vector<16x32xf32>
    %cst_50 = arith.constant 1.000000e+00 : f32
    %219 = vector.broadcast %cst_50 : f32 to vector<16x32xf32>
    %220 = arith.subf %219, %213 : vector<16x32xf32>
    %221 = arith.mulf %220, %218 : vector<16x32xf32>
    %222 = arith.mulf %213, %188 : vector<16x32xf32>
    %223 = arith.addf %221, %222 : vector<16x32xf32>
    %224 = vector.extract_strided_slice %223 {offsets = [0, 0], sizes = [8, 32], strides = [1, 1]} : vector<16x32xf32> to vector<8x32xf32>
    %c6 = arith.constant 6 : index
    %c0_51 = arith.constant 0 : index
    %c0_52 = arith.constant 0 : index
    %225 = vector.load %arg10[%c6, %c0_51, %c0_52] : memref<32x8x32xf32, #tpu.memory_space<vmem>>, vector<1x8x32xf32>
    %226 = vector.shape_cast %225 : vector<1x8x32xf32> to vector<8x32xf32>
    %227 = vector.shape_cast %224 : vector<8x32xf32> to vector<1x8x32xf32>
    tpu.vector_store %arg10[%c6, %c0_51, %c0_52], %227 {strides = array<i32>} : memref<32x8x32xf32, #tpu.memory_space<vmem>>, vector<1x8x32xf32>,
    %228 = vector.extract_strided_slice %223 {offsets = [8, 0], sizes = [8, 32], strides = [1, 1]} : vector<16x32xf32> to vector<8x32xf32>
    %c13 = arith.constant 13 : index
    %c0_53 = arith.constant 0 : index
    %c0_54 = arith.constant 0 : index
    %229 = vector.load %arg10[%c13, %c0_53, %c0_54] : memref<32x8x32xf32, #tpu.memory_space<vmem>>, vector<1x8x32xf32>
    %230 = vector.shape_cast %229 : vector<1x8x32xf32> to vector<8x32xf32>
    %231 = vector.shape_cast %228 : vector<8x32xf32> to vector<1x8x32xf32>
    tpu.vector_store %arg10[%c13, %c0_53, %c0_54], %231 {strides = array<i32>} : memref<32x8x32xf32, #tpu.memory_space<vmem>>, vector<1x8x32xf32>,
    %232 = arith.truncf %223 : vector<16x32xf32> to vector<16x32xbf16>
    %cst_55 = arith.constant dense<0.000000e+00> : vector<16x128xf32>
    %233 = tpu.matmul %232, %3, %cst_55 {dimension_numbers = #tpu.dot_dimension_numbers<[1], [0], [0], [1], [0, 0, 1, 1], [], []>} : vector<16x32xbf16>, vector<32x128xbf16>, vector<16x128xf32> -> vector<16x128xf32>
    %234 = vector.broadcast %5 : vector<1x128xf32> to vector<16x128xf32>
    %235 = arith.addf %233, %234 : vector<16x128xf32>
    %236 = arith.addf %43, %235 : vector<16x128xf32>
    %237 = vector.extract_strided_slice %236 {offsets = [0, 0], sizes = [16, 32], strides = [1, 1]} : vector<16x128xf32> to vector<16x32xf32>
    %238 = arith.negf %237 : vector<16x32xf32>
    %239 = math.exp %238 : vector<16x32xf32>
    %cst_56 = arith.constant 1.000000e+00 : f32
    %240 = vector.broadcast %cst_56 : f32 to vector<16x32xf32>
    %241 = arith.addf %240, %239 : vector<16x32xf32>
    %242 = arith.divf %240, %241 : vector<16x32xf32>
    %243 = vector.extract_strided_slice %236 {offsets = [0, 32], sizes = [16, 32], strides = [1, 1]} : vector<16x128xf32> to vector<16x32xf32>
    %244 = arith.negf %243 : vector<16x32xf32>
    %245 = math.exp %244 : vector<16x32xf32>
    %cst_57 = arith.constant 1.000000e+00 : f32
    %246 = vector.broadcast %cst_57 : f32 to vector<16x32xf32>
    %247 = arith.addf %246, %245 : vector<16x32xf32>
    %248 = arith.divf %246, %247 : vector<16x32xf32>
    %249 = vector.extract_strided_slice %43 {offsets = [0, 64], sizes = [16, 32], strides = [1, 1]} : vector<16x128xf32> to vector<16x32xf32>
    %250 = vector.extract_strided_slice %235 {offsets = [0, 64], sizes = [16, 32], strides = [1, 1]} : vector<16x128xf32> to vector<16x32xf32>
    %251 = arith.mulf %242, %250 : vector<16x32xf32>
    %252 = arith.addf %249, %251 : vector<16x32xf32>
    %253 = math.tanh %252 : vector<16x32xf32>
    %cst_58 = arith.constant 1.000000e+00 : f32
    %254 = vector.broadcast %cst_58 : f32 to vector<16x32xf32>
    %255 = arith.subf %254, %248 : vector<16x32xf32>
    %256 = arith.mulf %255, %253 : vector<16x32xf32>
    %257 = arith.mulf %248, %223 : vector<16x32xf32>
    %258 = arith.addf %256, %257 : vector<16x32xf32>
    %259 = vector.extract_strided_slice %258 {offsets = [0, 0], sizes = [8, 32], strides = [1, 1]} : vector<16x32xf32> to vector<8x32xf32>
    %c7 = arith.constant 7 : index
    %c0_59 = arith.constant 0 : index
    %c0_60 = arith.constant 0 : index
    %260 = vector.load %arg10[%c7, %c0_59, %c0_60] : memref<32x8x32xf32, #tpu.memory_space<vmem>>, vector<1x8x32xf32>
    %261 = vector.shape_cast %260 : vector<1x8x32xf32> to vector<8x32xf32>
    %262 = vector.shape_cast %259 : vector<8x32xf32> to vector<1x8x32xf32>
    tpu.vector_store %arg10[%c7, %c0_59, %c0_60], %262 {strides = array<i32>} : memref<32x8x32xf32, #tpu.memory_space<vmem>>, vector<1x8x32xf32>,
    %263 = vector.extract_strided_slice %258 {offsets = [8, 0], sizes = [8, 32], strides = [1, 1]} : vector<16x32xf32> to vector<8x32xf32>
    %c12 = arith.constant 12 : index
    %c0_61 = arith.constant 0 : index
    %c0_62 = arith.constant 0 : index
    %264 = vector.load %arg10[%c12, %c0_61, %c0_62] : memref<32x8x32xf32, #tpu.memory_space<vmem>>, vector<1x8x32xf32>
    %265 = vector.shape_cast %264 : vector<1x8x32xf32> to vector<8x32xf32>
    %266 = vector.shape_cast %263 : vector<8x32xf32> to vector<1x8x32xf32>
    tpu.vector_store %arg10[%c12, %c0_61, %c0_62], %266 {strides = array<i32>} : memref<32x8x32xf32, #tpu.memory_space<vmem>>, vector<1x8x32xf32>,
    %267 = arith.truncf %258 : vector<16x32xf32> to vector<16x32xbf16>
    %cst_63 = arith.constant dense<0.000000e+00> : vector<16x128xf32>
    %268 = tpu.matmul %267, %3, %cst_63 {dimension_numbers = #tpu.dot_dimension_numbers<[1], [0], [0], [1], [0, 0, 1, 1], [], []>} : vector<16x32xbf16>, vector<32x128xbf16>, vector<16x128xf32> -> vector<16x128xf32>
    %269 = vector.broadcast %5 : vector<1x128xf32> to vector<16x128xf32>
    %270 = arith.addf %268, %269 : vector<16x128xf32>
    %271 = arith.addf %48, %270 : vector<16x128xf32>
    %272 = vector.extract_strided_slice %271 {offsets = [0, 0], sizes = [16, 32], strides = [1, 1]} : vector<16x128xf32> to vector<16x32xf32>
    %273 = arith.negf %272 : vector<16x32xf32>
    %274 = math.exp %273 : vector<16x32xf32>
    %cst_64 = arith.constant 1.000000e+00 : f32
    %275 = vector.broadcast %cst_64 : f32 to vector<16x32xf32>
    %276 = arith.addf %275, %274 : vector<16x32xf32>
    %277 = arith.divf %275, %276 : vector<16x32xf32>
    %278 = vector.extract_strided_slice %271 {offsets = [0, 32], sizes = [16, 32], strides = [1, 1]} : vector<16x128xf32> to vector<16x32xf32>
    %279 = arith.negf %278 : vector<16x32xf32>
    %280 = math.exp %279 : vector<16x32xf32>
    %cst_65 = arith.constant 1.000000e+00 : f32
    %281 = vector.broadcast %cst_65 : f32 to vector<16x32xf32>
    %282 = arith.addf %281, %280 : vector<16x32xf32>
    %283 = arith.divf %281, %282 : vector<16x32xf32>
    %284 = vector.extract_strided_slice %48 {offsets = [0, 64], sizes = [16, 32], strides = [1, 1]} : vector<16x128xf32> to vector<16x32xf32>
    %285 = vector.extract_strided_slice %270 {offsets = [0, 64], sizes = [16, 32], strides = [1, 1]} : vector<16x128xf32> to vector<16x32xf32>
    %286 = arith.mulf %277, %285 : vector<16x32xf32>
    %287 = arith.addf %284, %286 : vector<16x32xf32>
    %288 = math.tanh %287 : vector<16x32xf32>
    %cst_66 = arith.constant 1.000000e+00 : f32
    %289 = vector.broadcast %cst_66 : f32 to vector<16x32xf32>
    %290 = arith.subf %289, %283 : vector<16x32xf32>
    %291 = arith.mulf %290, %288 : vector<16x32xf32>
    %292 = arith.mulf %283, %258 : vector<16x32xf32>
    %293 = arith.addf %291, %292 : vector<16x32xf32>
    %294 = vector.extract_strided_slice %293 {offsets = [0, 0], sizes = [8, 32], strides = [1, 1]} : vector<16x32xf32> to vector<8x32xf32>
    %c8 = arith.constant 8 : index
    %c0_67 = arith.constant 0 : index
    %c0_68 = arith.constant 0 : index
    %295 = vector.load %arg10[%c8, %c0_67, %c0_68] : memref<32x8x32xf32, #tpu.memory_space<vmem>>, vector<1x8x32xf32>
    %296 = vector.shape_cast %295 : vector<1x8x32xf32> to vector<8x32xf32>
    %297 = vector.shape_cast %294 : vector<8x32xf32> to vector<1x8x32xf32>
    tpu.vector_store %arg10[%c8, %c0_67, %c0_68], %297 {strides = array<i32>} : memref<32x8x32xf32, #tpu.memory_space<vmem>>, vector<1x8x32xf32>,
    %298 = vector.extract_strided_slice %293 {offsets = [8, 0], sizes = [8, 32], strides = [1, 1]} : vector<16x32xf32> to vector<8x32xf32>
    %c11 = arith.constant 11 : index
    %c0_69 = arith.constant 0 : index
    %c0_70 = arith.constant 0 : index
    %299 = vector.load %arg10[%c11, %c0_69, %c0_70] : memref<32x8x32xf32, #tpu.memory_space<vmem>>, vector<1x8x32xf32>
    %300 = vector.shape_cast %299 : vector<1x8x32xf32> to vector<8x32xf32>
    %301 = vector.shape_cast %298 : vector<8x32xf32> to vector<1x8x32xf32>
    tpu.vector_store %arg10[%c11, %c0_69, %c0_70], %301 {strides = array<i32>} : memref<32x8x32xf32, #tpu.memory_space<vmem>>, vector<1x8x32xf32>,
    %302 = arith.truncf %293 : vector<16x32xf32> to vector<16x32xbf16>
    %cst_71 = arith.constant dense<0.000000e+00> : vector<16x128xf32>
    %303 = tpu.matmul %302, %3, %cst_71 {dimension_numbers = #tpu.dot_dimension_numbers<[1], [0], [0], [1], [0, 0, 1, 1], [], []>} : vector<16x32xbf16>, vector<32x128xbf16>, vector<16x128xf32> -> vector<16x128xf32>
    %304 = vector.broadcast %5 : vector<1x128xf32> to vector<16x128xf32>
    %305 = arith.addf %303, %304 : vector<16x128xf32>
    %306 = arith.addf %53, %305 : vector<16x128xf32>
    %307 = vector.extract_strided_slice %306 {offsets = [0, 0], sizes = [16, 32], strides = [1, 1]} : vector<16x128xf32> to vector<16x32xf32>
    %308 = arith.negf %307 : vector<16x32xf32>
    %309 = math.exp %308 : vector<16x32xf32>
    %cst_72 = arith.constant 1.000000e+00 : f32
    %310 = vector.broadcast %cst_72 : f32 to vector<16x32xf32>
    %311 = arith.addf %310, %309 : vector<16x32xf32>
    %312 = arith.divf %310, %311 : vector<16x32xf32>
    %313 = vector.extract_strided_slice %306 {offsets = [0, 32], sizes = [16, 32], strides = [1, 1]} : vector<16x128xf32> to vector<16x32xf32>
    %314 = arith.negf %313 : vector<16x32xf32>
    %315 = math.exp %314 : vector<16x32xf32>
    %cst_73 = arith.constant 1.000000e+00 : f32
    %316 = vector.broadcast %cst_73 : f32 to vector<16x32xf32>
    %317 = arith.addf %316, %315 : vector<16x32xf32>
    %318 = arith.divf %316, %317 : vector<16x32xf32>
    %319 = vector.extract_strided_slice %53 {offsets = [0, 64], sizes = [16, 32], strides = [1, 1]} : vector<16x128xf32> to vector<16x32xf32>
    %320 = vector.extract_strided_slice %305 {offsets = [0, 64], sizes = [16, 32], strides = [1, 1]} : vector<16x128xf32> to vector<16x32xf32>
    %321 = arith.mulf %312, %320 : vector<16x32xf32>
    %322 = arith.addf %319, %321 : vector<16x32xf32>
    %323 = math.tanh %322 : vector<16x32xf32>
    %cst_74 = arith.constant 1.000000e+00 : f32
    %324 = vector.broadcast %cst_74 : f32 to vector<16x32xf32>
    %325 = arith.subf %324, %318 : vector<16x32xf32>
    %326 = arith.mulf %325, %323 : vector<16x32xf32>
    %327 = arith.mulf %318, %293 : vector<16x32xf32>
    %328 = arith.addf %326, %327 : vector<16x32xf32>
    %329 = vector.extract_strided_slice %328 {offsets = [0, 0], sizes = [8, 32], strides = [1, 1]} : vector<16x32xf32> to vector<8x32xf32>
    %c9 = arith.constant 9 : index
    %c0_75 = arith.constant 0 : index
    %c0_76 = arith.constant 0 : index
    %330 = vector.load %arg10[%c9, %c0_75, %c0_76] : memref<32x8x32xf32, #tpu.memory_space<vmem>>, vector<1x8x32xf32>
    %331 = vector.shape_cast %330 : vector<1x8x32xf32> to vector<8x32xf32>
    %332 = vector.shape_cast %329 : vector<8x32xf32> to vector<1x8x32xf32>
    tpu.vector_store %arg10[%c9, %c0_75, %c0_76], %332 {strides = array<i32>} : memref<32x8x32xf32, #tpu.memory_space<vmem>>, vector<1x8x32xf32>,
    %333 = vector.extract_strided_slice %328 {offsets = [8, 0], sizes = [8, 32], strides = [1, 1]} : vector<16x32xf32> to vector<8x32xf32>
    %c10 = arith.constant 10 : index
    %c0_77 = arith.constant 0 : index
    %c0_78 = arith.constant 0 : index
    %334 = vector.load %arg10[%c10, %c0_77, %c0_78] : memref<32x8x32xf32, #tpu.memory_space<vmem>>, vector<1x8x32xf32>
    %335 = vector.shape_cast %334 : vector<1x8x32xf32> to vector<8x32xf32>
    %336 = vector.shape_cast %333 : vector<8x32xf32> to vector<1x8x32xf32>
    tpu.vector_store %arg10[%c10, %c0_77, %c0_78], %336 {strides = array<i32>} : memref<32x8x32xf32, #tpu.memory_space<vmem>>, vector<1x8x32xf32>,
    %c0_79 = arith.constant 0 : index
    %c0_80 = arith.constant 0 : index
    %c0_81 = arith.constant 0 : index
    %337 = vector.load %arg10[%c0_79, %c0_80, %c0_81] : memref<32x8x32xf32, #tpu.memory_space<vmem>>, vector<32x8x32xf32>
    %338 = vector.shape_cast %337 : vector<32x8x32xf32> to vector<256x32xf32>
    %339 = vector.extract_strided_slice %338 {offsets = [0, 0], sizes = [192, 32], strides = [1, 1]} : vector<256x32xf32> to vector<192x32xf32>
    %340 = vector.extract_strided_slice %338 {offsets = [8, 0], sizes = [192, 32], strides = [1, 1]} : vector<256x32xf32> to vector<192x32xf32>
    %341 = vector.extract_strided_slice %338 {offsets = [16, 0], sizes = [192, 32], strides = [1, 1]} : vector<256x32xf32> to vector<192x32xf32>
    %342 = vector.extract_strided_slice %338 {offsets = [24, 0], sizes = [192, 32], strides = [1, 1]} : vector<256x32xf32> to vector<192x32xf32>
    %343 = vector.extract_strided_slice %338 {offsets = [32, 0], sizes = [192, 32], strides = [1, 1]} : vector<256x32xf32> to vector<192x32xf32>
    %344 = vector.extract_strided_slice %338 {offsets = [40, 0], sizes = [192, 32], strides = [1, 1]} : vector<256x32xf32> to vector<192x32xf32>
    %345 = tpu.concatenate %339, %340, %341, %342, %343, %344 in 1 : vector<192x32xf32>, vector<192x32xf32>, vector<192x32xf32>, vector<192x32xf32>, vector<192x32xf32>, vector<192x32xf32> -> vector<192x192xf32>
    %346 = arith.truncf %345 : vector<192x192xf32> to vector<192x192xbf16>
    %c0_82 = arith.constant 0 : index
    %c0_83 = arith.constant 0 : index
    %347 = vector.load %arg6[%c0_82, %c0_83] : memref<192x768xf32, #tpu.memory_space<vmem>>, vector<192x768xf32>
    %348 = arith.truncf %347 : vector<192x768xf32> to vector<192x768xbf16>
    %cst_84 = arith.constant dense<0.000000e+00> : vector<192x768xf32>
    %349 = tpu.matmul %346, %348, %cst_84 {dimension_numbers = #tpu.dot_dimension_numbers<[1], [0], [0], [1], [0, 0, 1, 1], [], []>} : vector<192x192xbf16>, vector<192x768xbf16>, vector<192x768xf32> -> vector<192x768xf32>
    %c0_85 = arith.constant 0 : index
    %c0_86 = arith.constant 0 : index
    %350 = vector.load %arg7[%c0_85, %c0_86] : memref<1x768xf32, #tpu.memory_space<vmem>>, vector<1x768xf32>
    %351 = vector.broadcast %350 : vector<1x768xf32> to vector<192x768xf32>
    %352 = arith.addf %349, %351 : vector<192x768xf32>
    %353 = vector.shape_cast %352 : vector<192x768xf32> to vector<24x8x768xf32>
    %c0_87 = arith.constant 0 : index
    %c0_88 = arith.constant 0 : index
    %c0_89 = arith.constant 0 : index
    %354 = vector.load %arg8[%c0_87, %c0_88, %c0_89] : memref<24x1x768xf32, #tpu.memory_space<vmem>>, vector<24x1x768xf32>
    %355 = vector.broadcast %354 : vector<24x1x768xf32> to vector<24x8x768xf32>
    %356 = arith.addf %353, %355 : vector<24x8x768xf32>
    %cst_90 = arith.constant dense<0xFF800000> : vector<8x768xf32>
    %357 = vector.multi_reduction <maximumf>, %356, %cst_90 [0] : vector<24x8x768xf32> to vector<8x768xf32>
    %358 = arith.negf %357 : vector<8x768xf32>
    %359 = math.exp %358 : vector<8x768xf32>
    %cst_91 = arith.constant 1.000000e+00 : f32
    %360 = vector.broadcast %cst_91 : f32 to vector<8x768xf32>
    %361 = arith.addf %360, %359 : vector<8x768xf32>
    %362 = arith.divf %360, %361 : vector<8x768xf32>
    %c0_92 = arith.constant 0 : index
    %c0_93 = arith.constant 0 : index
    %363 = vector.load %arg9[%c0_92, %c0_93] : memref<8x768xf32, #tpu.memory_space<vmem>>, vector<8x768xf32>
    tpu.vector_store %arg9[%c0_92, %c0_93], %362 {strides = array<i32>} : memref<8x768xf32, #tpu.memory_space<vmem>>, vector<8x768xf32>,
    return
  }
  func.func @transform_0(%arg0: i32) -> (i32, i32, i32) {
    %c0_i32 = arith.constant 0 : i32
    %c0_i32_0 = arith.constant 0 : i32
    %c0_i32_1 = arith.constant 0 : i32
    return %arg0, %c0_i32, %c0_i32_0 : i32, i32, i32
  }
  func.func @transform_1(%arg0: i32) -> (i32, i32) {
    %c0_i32 = arith.constant 0 : i32
    %c0_i32_0 = arith.constant 0 : i32
    %c0_i32_1 = arith.constant 0 : i32
    return %c0_i32, %c0_i32_0 : i32, i32
  }
  func.func @transform_2(%arg0: i32) -> (i32, i32) {
    %c0_i32 = arith.constant 0 : i32
    %c0_i32_0 = arith.constant 0 : i32
    %c0_i32_1 = arith.constant 0 : i32
    return %c0_i32, %c0_i32_0 : i32, i32
  }
  func.func @transform_3(%arg0: i32) -> (i32, i32) {
    %c0_i32 = arith.constant 0 : i32
    %c0_i32_0 = arith.constant 0 : i32
    %c0_i32_1 = arith.constant 0 : i32
    return %c0_i32, %c0_i32_0 : i32, i32
  }
  func.func @transform_4(%arg0: i32) -> (i32, i32) {
    %c0_i32 = arith.constant 0 : i32
    %c0_i32_0 = arith.constant 0 : i32
    %c0_i32_1 = arith.constant 0 : i32
    return %c0_i32, %c0_i32_0 : i32, i32
  }
  func.func @transform_5(%arg0: i32) -> (i32, i32) {
    %c0_i32 = arith.constant 0 : i32
    %c0_i32_0 = arith.constant 0 : i32
    %c0_i32_1 = arith.constant 0 : i32
    return %c0_i32, %c0_i32_0 : i32, i32
  }
  func.func @transform_6(%arg0: i32) -> (i32, i32) {
    %c0_i32 = arith.constant 0 : i32
    %c0_i32_0 = arith.constant 0 : i32
    %c0_i32_1 = arith.constant 0 : i32
    return %c0_i32, %c0_i32_0 : i32, i32
  }
  func.func @transform_7(%arg0: i32) -> (i32, i32, i32) {
    %c0_i32 = arith.constant 0 : i32
    %c0_i32_0 = arith.constant 0 : i32
    %c0_i32_1 = arith.constant 0 : i32
    %c0_i32_2 = arith.constant 0 : i32
    return %c0_i32, %c0_i32_0, %c0_i32_1 : i32, i32, i32
  }
  func.func @transform_8(%arg0: i32) -> (i32, i32) {
    %c0_i32 = arith.constant 0 : i32
    %c0_i32_0 = arith.constant 0 : i32
    return %arg0, %c0_i32 : i32, i32
  }
}

module attributes {stable_mosaic.version = 11 : i64} {
  func.func @document_kernel(%arg0: memref<3x768xf32, #tpu.memory_space<vmem>>, %arg1: memref<768x256xf32, #tpu.memory_space<vmem>>, %arg2: memref<64x256xf32, #tpu.memory_space<vmem>>, %arg3: memref<1x256xf32, #tpu.memory_space<vmem>>, %arg4: memref<1x256xf32, #tpu.memory_space<vmem>>, %arg5: memref<64x128xf32, #tpu.memory_space<vmem>>, %arg6: memref<1x128xf32, #tpu.memory_space<vmem>>, %arg7: memref<128x32xf32, #tpu.memory_space<vmem>>, %arg8: memref<1x32xf32, #tpu.memory_space<vmem>>, %arg9: memref<32x1xf32, #tpu.memory_space<vmem>>, %arg10: memref<1x1xf32, #tpu.memory_space<vmem>>, %arg11: memref<1x1xf32, #tpu.memory_space<vmem>>) attributes {dimension_semantics = [], scalar_prefetch = 0 : i64, scratch_operands = 0 : i64, tpu.core_type = #tpu.core_type<tc>} {
    %c0 = arith.constant 0 : index
    %c0_0 = arith.constant 0 : index
    %0 = vector.load %arg2[%c0, %c0_0] : memref<64x256xf32, #tpu.memory_space<vmem>>, vector<64x256xf32>
    %1 = arith.truncf %0 : vector<64x256xf32> to vector<64x256xbf16>
    %c0_1 = arith.constant 0 : index
    %c0_2 = arith.constant 0 : index
    %2 = vector.load %arg4[%c0_1, %c0_2] : memref<1x256xf32, #tpu.memory_space<vmem>>, vector<1x256xf32>
    %c0_3 = arith.constant 0 : index
    %c0_4 = arith.constant 0 : index
    %3 = vector.load %arg0[%c0_3, %c0_4] : memref<3x768xf32, #tpu.memory_space<vmem>>, vector<3x768xf32>
    %4 = arith.truncf %3 : vector<3x768xf32> to vector<3x768xbf16>
    %c0_5 = arith.constant 0 : index
    %c0_6 = arith.constant 0 : index
    %5 = vector.load %arg1[%c0_5, %c0_6] : memref<768x256xf32, #tpu.memory_space<vmem>>, vector<768x256xf32>
    %6 = arith.truncf %5 : vector<768x256xf32> to vector<768x256xbf16>
    %cst = arith.constant dense<0.000000e+00> : vector<3x256xf32>
    %7 = tpu.matmul %4, %6, %cst {dimension_numbers = #tpu.dot_dimension_numbers<[1], [0], [0], [1], [0, 0, 1, 1], [], []>} : vector<3x768xbf16>, vector<768x256xbf16>, vector<3x256xf32> -> vector<3x256xf32>
    %c0_7 = arith.constant 0 : index
    %c0_8 = arith.constant 0 : index
    %8 = vector.load %arg3[%c0_7, %c0_8] : memref<1x256xf32, #tpu.memory_space<vmem>>, vector<1x256xf32>
    %9 = vector.broadcast %8 : vector<1x256xf32> to vector<3x256xf32>
    %10 = arith.addf %7, %9 : vector<3x256xf32>
    %11 = vector.extract_strided_slice %10 {offsets = [0, 0], sizes = [1, 256], strides = [1, 1]} : vector<3x256xf32> to vector<1x256xf32>
    %12 = vector.extract_strided_slice %10 {offsets = [2, 0], sizes = [1, 256], strides = [1, 1]} : vector<3x256xf32> to vector<1x256xf32>
    %13 = tpu.concatenate %11, %12 in 0 : vector<1x256xf32>, vector<1x256xf32> -> vector<2x256xf32>
    %14 = vector.extract_strided_slice %10 {offsets = [1, 0], sizes = [1, 256], strides = [1, 1]} : vector<3x256xf32> to vector<1x256xf32>
    %15 = vector.extract_strided_slice %10 {offsets = [1, 0], sizes = [1, 256], strides = [1, 1]} : vector<3x256xf32> to vector<1x256xf32>
    %16 = tpu.concatenate %14, %15 in 0 : vector<1x256xf32>, vector<1x256xf32> -> vector<2x256xf32>
    %17 = vector.extract_strided_slice %10 {offsets = [2, 0], sizes = [1, 256], strides = [1, 1]} : vector<3x256xf32> to vector<1x256xf32>
    %18 = vector.extract_strided_slice %10 {offsets = [0, 0], sizes = [1, 256], strides = [1, 1]} : vector<3x256xf32> to vector<1x256xf32>
    %19 = tpu.concatenate %17, %18 in 0 : vector<1x256xf32>, vector<1x256xf32> -> vector<2x256xf32>
    %cst_9 = arith.constant 0.000000e+00 : f32
    %20 = vector.broadcast %cst_9 : f32 to vector<2x64xf32>
    %cst_10 = arith.constant 0.000000e+00 : f32
    %21 = vector.broadcast %cst_10 : f32 to vector<2x64xf32>
    %22 = arith.truncf %20 : vector<2x64xf32> to vector<2x64xbf16>
    %cst_11 = arith.constant dense<0.000000e+00> : vector<2x256xf32>
    %23 = tpu.matmul %22, %1, %cst_11 {dimension_numbers = #tpu.dot_dimension_numbers<[1], [0], [0], [1], [0, 0, 1, 1], [], []>} : vector<2x64xbf16>, vector<64x256xbf16>, vector<2x256xf32> -> vector<2x256xf32>
    %24 = vector.broadcast %2 : vector<1x256xf32> to vector<2x256xf32>
    %25 = arith.addf %23, %24 : vector<2x256xf32>
    %26 = arith.addf %13, %25 : vector<2x256xf32>
    %27 = vector.extract_strided_slice %26 {offsets = [0, 0], sizes = [2, 64], strides = [1, 1]} : vector<2x256xf32> to vector<2x64xf32>
    %28 = arith.negf %27 : vector<2x64xf32>
    %29 = math.exp %28 : vector<2x64xf32>
    %cst_12 = arith.constant 1.000000e+00 : f32
    %30 = vector.broadcast %cst_12 : f32 to vector<2x64xf32>
    %31 = arith.addf %30, %29 : vector<2x64xf32>
    %32 = arith.divf %30, %31 : vector<2x64xf32>
    %33 = vector.extract_strided_slice %26 {offsets = [0, 64], sizes = [2, 64], strides = [1, 1]} : vector<2x256xf32> to vector<2x64xf32>
    %34 = arith.negf %33 : vector<2x64xf32>
    %35 = math.exp %34 : vector<2x64xf32>
    %cst_13 = arith.constant 1.000000e+00 : f32
    %36 = vector.broadcast %cst_13 : f32 to vector<2x64xf32>
    %37 = arith.addf %36, %35 : vector<2x64xf32>
    %38 = arith.divf %36, %37 : vector<2x64xf32>
    %39 = vector.extract_strided_slice %13 {offsets = [0, 128], sizes = [2, 64], strides = [1, 1]} : vector<2x256xf32> to vector<2x64xf32>
    %40 = vector.extract_strided_slice %25 {offsets = [0, 128], sizes = [2, 64], strides = [1, 1]} : vector<2x256xf32> to vector<2x64xf32>
    %41 = arith.mulf %32, %40 : vector<2x64xf32>
    %42 = arith.addf %39, %41 : vector<2x64xf32>
    %43 = math.tanh %42 : vector<2x64xf32>
    %cst_14 = arith.constant 1.000000e+00 : f32
    %44 = vector.broadcast %cst_14 : f32 to vector<2x64xf32>
    %45 = arith.subf %44, %38 : vector<2x64xf32>
    %46 = arith.mulf %45, %43 : vector<2x64xf32>
    %47 = arith.mulf %38, %20 : vector<2x64xf32>
    %48 = arith.addf %46, %47 : vector<2x64xf32>
    %49 = arith.addf %21, %48 : vector<2x64xf32>
    %50 = arith.truncf %48 : vector<2x64xf32> to vector<2x64xbf16>
    %cst_15 = arith.constant dense<0.000000e+00> : vector<2x256xf32>
    %51 = tpu.matmul %50, %1, %cst_15 {dimension_numbers = #tpu.dot_dimension_numbers<[1], [0], [0], [1], [0, 0, 1, 1], [], []>} : vector<2x64xbf16>, vector<64x256xbf16>, vector<2x256xf32> -> vector<2x256xf32>
    %52 = vector.broadcast %2 : vector<1x256xf32> to vector<2x256xf32>
    %53 = arith.addf %51, %52 : vector<2x256xf32>
    %54 = arith.addf %16, %53 : vector<2x256xf32>
    %55 = vector.extract_strided_slice %54 {offsets = [0, 0], sizes = [2, 64], strides = [1, 1]} : vector<2x256xf32> to vector<2x64xf32>
    %56 = arith.negf %55 : vector<2x64xf32>
    %57 = math.exp %56 : vector<2x64xf32>
    %cst_16 = arith.constant 1.000000e+00 : f32
    %58 = vector.broadcast %cst_16 : f32 to vector<2x64xf32>
    %59 = arith.addf %58, %57 : vector<2x64xf32>
    %60 = arith.divf %58, %59 : vector<2x64xf32>
    %61 = vector.extract_strided_slice %54 {offsets = [0, 64], sizes = [2, 64], strides = [1, 1]} : vector<2x256xf32> to vector<2x64xf32>
    %62 = arith.negf %61 : vector<2x64xf32>
    %63 = math.exp %62 : vector<2x64xf32>
    %cst_17 = arith.constant 1.000000e+00 : f32
    %64 = vector.broadcast %cst_17 : f32 to vector<2x64xf32>
    %65 = arith.addf %64, %63 : vector<2x64xf32>
    %66 = arith.divf %64, %65 : vector<2x64xf32>
    %67 = vector.extract_strided_slice %16 {offsets = [0, 128], sizes = [2, 64], strides = [1, 1]} : vector<2x256xf32> to vector<2x64xf32>
    %68 = vector.extract_strided_slice %53 {offsets = [0, 128], sizes = [2, 64], strides = [1, 1]} : vector<2x256xf32> to vector<2x64xf32>
    %69 = arith.mulf %60, %68 : vector<2x64xf32>
    %70 = arith.addf %67, %69 : vector<2x64xf32>
    %71 = math.tanh %70 : vector<2x64xf32>
    %cst_18 = arith.constant 1.000000e+00 : f32
    %72 = vector.broadcast %cst_18 : f32 to vector<2x64xf32>
    %73 = arith.subf %72, %66 : vector<2x64xf32>
    %74 = arith.mulf %73, %71 : vector<2x64xf32>
    %75 = arith.mulf %66, %48 : vector<2x64xf32>
    %76 = arith.addf %74, %75 : vector<2x64xf32>
    %77 = arith.addf %49, %76 : vector<2x64xf32>
    %78 = arith.truncf %76 : vector<2x64xf32> to vector<2x64xbf16>
    %cst_19 = arith.constant dense<0.000000e+00> : vector<2x256xf32>
    %79 = tpu.matmul %78, %1, %cst_19 {dimension_numbers = #tpu.dot_dimension_numbers<[1], [0], [0], [1], [0, 0, 1, 1], [], []>} : vector<2x64xbf16>, vector<64x256xbf16>, vector<2x256xf32> -> vector<2x256xf32>
    %80 = vector.broadcast %2 : vector<1x256xf32> to vector<2x256xf32>
    %81 = arith.addf %79, %80 : vector<2x256xf32>
    %82 = arith.addf %19, %81 : vector<2x256xf32>
    %83 = vector.extract_strided_slice %82 {offsets = [0, 0], sizes = [2, 64], strides = [1, 1]} : vector<2x256xf32> to vector<2x64xf32>
    %84 = arith.negf %83 : vector<2x64xf32>
    %85 = math.exp %84 : vector<2x64xf32>
    %cst_20 = arith.constant 1.000000e+00 : f32
    %86 = vector.broadcast %cst_20 : f32 to vector<2x64xf32>
    %87 = arith.addf %86, %85 : vector<2x64xf32>
    %88 = arith.divf %86, %87 : vector<2x64xf32>
    %89 = vector.extract_strided_slice %82 {offsets = [0, 64], sizes = [2, 64], strides = [1, 1]} : vector<2x256xf32> to vector<2x64xf32>
    %90 = arith.negf %89 : vector<2x64xf32>
    %91 = math.exp %90 : vector<2x64xf32>
    %cst_21 = arith.constant 1.000000e+00 : f32
    %92 = vector.broadcast %cst_21 : f32 to vector<2x64xf32>
    %93 = arith.addf %92, %91 : vector<2x64xf32>
    %94 = arith.divf %92, %93 : vector<2x64xf32>
    %95 = vector.extract_strided_slice %19 {offsets = [0, 128], sizes = [2, 64], strides = [1, 1]} : vector<2x256xf32> to vector<2x64xf32>
    %96 = vector.extract_strided_slice %81 {offsets = [0, 128], sizes = [2, 64], strides = [1, 1]} : vector<2x256xf32> to vector<2x64xf32>
    %97 = arith.mulf %88, %96 : vector<2x64xf32>
    %98 = arith.addf %95, %97 : vector<2x64xf32>
    %99 = math.tanh %98 : vector<2x64xf32>
    %cst_22 = arith.constant 1.000000e+00 : f32
    %100 = vector.broadcast %cst_22 : f32 to vector<2x64xf32>
    %101 = arith.subf %100, %94 : vector<2x64xf32>
    %102 = arith.mulf %101, %99 : vector<2x64xf32>
    %103 = arith.mulf %94, %76 : vector<2x64xf32>
    %104 = arith.addf %102, %103 : vector<2x64xf32>
    %105 = arith.addf %77, %104 : vector<2x64xf32>
    %cst_23 = arith.constant dense<0.000000e+00> : vector<64xf32>
    %106 = vector.multi_reduction <add>, %105, %cst_23 [0] : vector<2x64xf32> to vector<64xf32>
    %107 = vector.shape_cast %106 : vector<64xf32> to vector<1x64xf32>
    %cst_24 = arith.constant 0.166666672 : f32
    %108 = vector.broadcast %cst_24 : f32 to vector<1x64xf32>
    %109 = arith.mulf %107, %108 : vector<1x64xf32>
    %c0_25 = arith.constant 0 : index
    %c0_26 = arith.constant 0 : index
    %110 = vector.load %arg5[%c0_25, %c0_26] : memref<64x128xf32, #tpu.memory_space<vmem>>, vector<64x128xf32>
    %cst_27 = arith.constant dense<0.000000e+00> : vector<1x128xf32>
    %111 = tpu.matmul %109, %110, %cst_27 {dimension_numbers = #tpu.dot_dimension_numbers<[1], [0], [0], [1], [0, 0, 1, 1], [], []>} : vector<1x64xf32>, vector<64x128xf32>, vector<1x128xf32> -> vector<1x128xf32>
    %c0_28 = arith.constant 0 : index
    %c0_29 = arith.constant 0 : index
    %112 = vector.load %arg6[%c0_28, %c0_29] : memref<1x128xf32, #tpu.memory_space<vmem>>, vector<1x128xf32>
    %113 = arith.addf %111, %112 : vector<1x128xf32>
    %114 = arith.negf %113 : vector<1x128xf32>
    %115 = math.exp %114 : vector<1x128xf32>
    %cst_30 = arith.constant 1.000000e+00 : f32
    %116 = vector.broadcast %cst_30 : f32 to vector<1x128xf32>
    %117 = arith.addf %116, %115 : vector<1x128xf32>
    %118 = arith.divf %116, %117 : vector<1x128xf32>
    %c0_31 = arith.constant 0 : index
    %c0_32 = arith.constant 0 : index
    %119 = vector.load %arg7[%c0_31, %c0_32] : memref<128x32xf32, #tpu.memory_space<vmem>>, vector<128x32xf32>
    %cst_33 = arith.constant dense<0.000000e+00> : vector<1x32xf32>
    %120 = tpu.matmul %118, %119, %cst_33 {dimension_numbers = #tpu.dot_dimension_numbers<[1], [0], [0], [1], [0, 0, 1, 1], [], []>} : vector<1x128xf32>, vector<128x32xf32>, vector<1x32xf32> -> vector<1x32xf32>
    %c0_34 = arith.constant 0 : index
    %c0_35 = arith.constant 0 : index
    %121 = vector.load %arg8[%c0_34, %c0_35] : memref<1x32xf32, #tpu.memory_space<vmem>>, vector<1x32xf32>
    %122 = arith.addf %120, %121 : vector<1x32xf32>
    %123 = arith.negf %122 : vector<1x32xf32>
    %124 = math.exp %123 : vector<1x32xf32>
    %cst_36 = arith.constant 1.000000e+00 : f32
    %125 = vector.broadcast %cst_36 : f32 to vector<1x32xf32>
    %126 = arith.addf %125, %124 : vector<1x32xf32>
    %127 = arith.divf %125, %126 : vector<1x32xf32>
    %c0_37 = arith.constant 0 : index
    %c0_38 = arith.constant 0 : index
    %128 = vector.load %arg9[%c0_37, %c0_38] : memref<32x1xf32, #tpu.memory_space<vmem>>, vector<32x1xf32>
    %cst_39 = arith.constant dense<0.000000e+00> : vector<1x1xf32>
    %129 = tpu.matmul %127, %128, %cst_39 {dimension_numbers = #tpu.dot_dimension_numbers<[1], [0], [0], [1], [0, 0, 1, 1], [], []>} : vector<1x32xf32>, vector<32x1xf32>, vector<1x1xf32> -> vector<1x1xf32>
    %c0_40 = arith.constant 0 : index
    %c0_41 = arith.constant 0 : index
    %130 = vector.load %arg10[%c0_40, %c0_41] : memref<1x1xf32, #tpu.memory_space<vmem>>, vector<1x1xf32>
    %131 = arith.addf %129, %130 : vector<1x1xf32>
    %132 = arith.negf %131 : vector<1x1xf32>
    %133 = math.exp %132 : vector<1x1xf32>
    %cst_42 = arith.constant 1.000000e+00 : f32
    %134 = vector.broadcast %cst_42 : f32 to vector<1x1xf32>
    %135 = arith.addf %134, %133 : vector<1x1xf32>
    %136 = arith.divf %134, %135 : vector<1x1xf32>
    %c0_43 = arith.constant 0 : index
    %c0_44 = arith.constant 0 : index
    %137 = vector.load %arg11[%c0_43, %c0_44] : memref<1x1xf32, #tpu.memory_space<vmem>>, vector<1x1xf32>
    tpu.vector_store %arg11[%c0_43, %c0_44], %136 {strides = array<i32>} : memref<1x1xf32, #tpu.memory_space<vmem>>, vector<1x1xf32>,
    return
  }
}

</mosaic_0001>

<llo_original>
// kernel: ha_net_forward.3
$region0: #{ha_net_forward.3}
  #allocation0 [shape = 'u32[]', space=smem, size = 0x4, offset = 0x4, fixed_abs, tag = 'smem constant byte address 0x4 - core index']
  #allocation1 [shape = 'u32[144,128]{1,0:T(1,128)}', space=vmem, size = 0x12000, scoped, tag = 'internal scratch']
  #allocation2 [shape = 'f32[1,1]{1,0:T(1,128)S(1)}', space=vmem, size = 0x200, scoped, tag = 'scoped memory for ha_net_forward.3']
  %s0 = inlined_call_operand.vmem [shape: f32[3,768], index: 0, kind: input, shape index: {}]
  %s1 = inlined_call_operand.vmem [shape: f32[768,256], index: 1, kind: input, shape index: {}]
  %s2 = inlined_call_operand.vmem [shape: f32[64,256], index: 2, kind: input, shape index: {}]
  %s3 = inlined_call_operand.vmem [shape: f32[1,256], index: 3, kind: input, shape index: {}]
  %s4 = inlined_call_operand.vmem [shape: f32[1,256], index: 4, kind: input, shape index: {}]
  %s5 = inlined_call_operand.hbm [shape: f32[64,128], index: 5, kind: input, shape index: {}]
  %s6 = inlined_call_operand.vmem [shape: f32[1,128], index: 6, kind: input, shape index: {}]
  %s7 = inlined_call_operand.vmem [shape: f32[128,32], index: 7, kind: input, shape index: {}]
  %s8 = inlined_call_operand.vmem [shape: f32[1,32], index: 8, kind: input, shape index: {}]
  %s9 = inlined_call_operand.vmem [shape: f32[32,1], index: 9, kind: input, shape index: {}]
  %s10 = inlined_call_operand.<no memory space> [shape: f32[1,1], index: 10, kind: input, shape index: {}]
  %s11 = inlined_call_operand.hbm [shape: f32[1,1], index: 11, kind: output, shape index: {}]
  %s12 = sld [smem:[#allocation0]]
  $region58: #{ha_net_forward.3} parent=0
    _
  %s14 = ssub.s32 1, %s12
  %s15 = scalar_select 0, %s14, %s12
  %v16 = vstv %s10
  %17 = vst [vmem:[#allocation2] sm:$0x1] %v16
  $region1: #{ha_net_forward.3} parent=0
    #allocation3 [shape = 'u8[32768]{0}', space=vmem, size = 0x8000, scoped, tag = 'input window, operand 5, single buffered']
    #allocation4 [shape = 's32[1]{0}', space=sflag, size = 0x4, scoped, tag = 'scoped memory for ha_net_forward.3']
    #allocation5 [shape = 's32[1]{0}', space=sflag, size = 0x4, scoped, tag = 'scoped memory for ha_net_forward.3']
    #allocation6 [shape = 'u8[512]{0}', space=vmem, size = 0x400, scoped, tag = 'output window, operand 0, single buffered']
    %18 = vsyncpa [#allocation4], 0
    %19 = vsyncpa [#allocation5], 0
    // Predicated region
    $region2: #{ha_net_forward.3} parent=1 // pred_check
      _
    $region3: #{ha_net_forward.3} parent=1 // pred_check_branch
      %21 = sbr.rel (0) target = $region5
    $region4: #{ha_net_forward.3} parent=1 // pred_region
      _
    $region5: #{ha_net_forward.3} parent=1 // pred_fallthru
      _
    // Predicated region
    $region6: #{ha_net_forward.3} parent=1 // pred_check
      _
    $region7: #{ha_net_forward.3} parent=1 // pred_check_branch
      %23 = sbr.rel (0) target = $region9
    $region8: #{ha_net_forward.3} parent=1 // pred_region
      _
    $region9: #{ha_net_forward.3} parent=1 // pred_fallthru
      _
    // Predicated region
    $region10: #{ha_net_forward.3} parent=1 // pred_check
      _
    $region11: #{ha_net_forward.3} parent=1 // pred_check_branch
      %25 = sbr.rel (0) target = $region13
    $region12: #{ha_net_forward.3} parent=1 // pred_region
      _
    $region13: #{ha_net_forward.3} parent=1 // pred_fallthru
      _
    // Predicated region
    $region14: #{ha_net_forward.3} parent=1 // pred_check
      _
    $region15: #{ha_net_forward.3} parent=1 // pred_check_branch
      %27 = sbr.rel (0) target = $region17
    $region16: #{ha_net_forward.3} parent=1 // pred_region
      _
    $region17: #{ha_net_forward.3} parent=1 // pred_fallthru
      _
    // Predicated region
    $region18: #{ha_net_forward.3} parent=1 // pred_check
      _
    $region19: #{ha_net_forward.3} parent=1 // pred_check_branch
      %29 = sbr.rel (0) target = $region21
    $region20: #{ha_net_forward.3} parent=1 // pred_region
      _
    $region21: #{ha_net_forward.3} parent=1 // pred_fallthru
      _
    // Predicated region
    $region22: #{ha_net_forward.3} parent=1 // pred_check
      _
    $region23: #{ha_net_forward.3} parent=1 // pred_check_branch
      %31 = sbr.rel (0) target = $region25
    $region24: #{ha_net_forward.3} parent=1 // pred_region
      %s33 = ssub.s32 1024, 1024
      %34 = vsyncadd [#allocation4], %s33
      %s35 = sshll.u32 [#allocation3], 4
      %s36 = int_to_ptr.vmem [resolvable:$true] %s35
      %41 = dma.hbm_to_vmem [thread:$0]  %s5, 1024, %s36, [#allocation4], 128, 128, 8
    $region25: #{ha_net_forward.3} parent=1 // pred_fallthru
      _
    // Predicated region
    $region26: #{ha_net_forward.3} parent=1 // pred_check
      _
    $region27: #{ha_net_forward.3} parent=1 // pred_check_branch
      %43 = sbr.rel (0) target = $region29
    $region28: #{ha_net_forward.3} parent=1 // pred_region
      _
    $region29: #{ha_net_forward.3} parent=1 // pred_fallthru
      _
    // Predicated region
    $region30: #{ha_net_forward.3} parent=1 // pred_check
      _
    $region31: #{ha_net_forward.3} parent=1 // pred_check_branch
      %45 = sbr.rel (0) target = $region33
    $region32: #{ha_net_forward.3} parent=1 // pred_region
      _
    $region33: #{ha_net_forward.3} parent=1 // pred_fallthru
      _
    // Predicated region
    $region34: #{ha_net_forward.3} parent=1 // pred_check
      _
    $region35: #{ha_net_forward.3} parent=1 // pred_check_branch
      %47 = sbr.rel (0) target = $region37
    $region36: #{ha_net_forward.3} parent=1 // pred_region
      _
    $region37: #{ha_net_forward.3} parent=1 // pred_fallthru
      _
    // Predicated region
    $region38: #{ha_net_forward.3} parent=1 // pred_check
      _
    $region39: #{ha_net_forward.3} parent=1 // pred_check_branch
      %49 = sbr.rel (0) target = $region41
    $region40: #{ha_net_forward.3} parent=1 // pred_region
      _
    $region41: #{ha_net_forward.3} parent=1 // pred_fallthru
      _
    // Predicated region
    $region42: #{ha_net_forward.3} parent=1 // pred_check
      _
    $region43: #{ha_net_forward.3} parent=1 // pred_check_branch
      %51 = sbr.rel (0) target = $region45
    $region44: #{ha_net_forward.3} parent=1 // pred_region
      _
    $region45: #{ha_net_forward.3} parent=1 // pred_fallthru
      _
    // Predicated region
    $region46: #{ha_net_forward.3} parent=1 // pred_check
      _
    $region47: #{ha_net_forward.3} parent=1 // pred_check_branch
      %53 = sbr.rel (0) target = $region49
    $region48: #{ha_net_forward.3} parent=1 // pred_region
      %54 = dma.done [#allocation4], 1024
    $region49: #{ha_net_forward.3} parent=1 // pred_fallthru
      _
    %v56 = vld [vmem:[%s2] sm:$0xff]
    %v57 = vld [vmem:[%s2 + $0x8] sm:$0xff]
    %v58 = vld [vmem:[%s2 + $0x10] sm:$0xff]
    %v59 = vld [vmem:[%s2 + $0x18] sm:$0xff]
    %v60 = vld [vmem:[%s2 + $0x20] sm:$0xff]
    %v61 = vld [vmem:[%s2 + $0x28] sm:$0xff]
    %v62 = vld [vmem:[%s2 + $0x30] sm:$0xff]
    %v63 = vld [vmem:[%s2 + $0x38] sm:$0xff]
    %v64 = vld [vmem:[%s2 + $0x40] sm:$0xff]
    %v65 = vld [vmem:[%s2 + $0x48] sm:$0xff]
    %v66 = vld [vmem:[%s2 + $0x50] sm:$0xff]
    %v67 = vld [vmem:[%s2 + $0x58] sm:$0xff]
    %v68 = vld [vmem:[%s2 + $0x60] sm:$0xff]
    %v69 = vld [vmem:[%s2 + $0x68] sm:$0xff]
    %v70 = vld [vmem:[%s2 + $0x70] sm:$0xff]
    %v71 = vld [vmem:[%s2 + $0x78] sm:$0xff]
    %v72 = vpack.c.bf16 %v58, %v56
    %v73 = vpack.c.bf16 %v59, %v57
    %v74 = vpack.c.bf16 %v62, %v60
    %v75 = vpack.c.bf16 %v63, %v61
    %v76 = vpack.c.bf16 %v66, %v64
    %v77 = vpack.c.bf16 %v67, %v65
    %v78 = vpack.c.bf16 %v70, %v68
    %v79 = vpack.c.bf16 %v71, %v69
    %v80 = vld [vmem:[%s4] sm:$0x3]
    %v81 = vld [vmem:[%s0] sm:$0x77]
    %v82 = vld [vmem:[%s0 + $0x8] sm:$0x77]
    %v83 = vld [vmem:[%s0 + $0x10] sm:$0x77]
    %v87 = vcombine.high %v81, %v81
    %v88 = vcombine.high %v82, %v82
    %v89 = vcombine.high %v83, %v83
    %v93 = vpack.c.bf16 %v81, %v81
    %v94 = vpack.c.bf16 %v87, %v87
    %v95 = vpack.c.bf16 %v82, %v82
    %v96 = vpack.c.bf16 %v88, %v88
    %v97 = vpack.c.bf16 %v83, %v83
    %v98 = vpack.c.bf16 %v89, %v89
    %v99 = vld [vmem:[%s1] sm:$0xff]
    %v100 = vld [vmem:[%s1 + $0x8] sm:$0xff]
    %v101 = vld [vmem:[%s1 + $0x10] sm:$0xff]
    %v102 = vld [vmem:[%s1 + $0x18] sm:$0xff]
    %v103 = vld [vmem:[%s1 + $0x20] sm:$0xff]
    %v104 = vld [vmem:[%s1 + $0x28] sm:$0xff]
    %v105 = vld [vmem:[%s1 + $0x30] sm:$0xff]
    %v106 = vld [vmem:[%s1 + $0x38] sm:$0xff]
    %v107 = vld [vmem:[%s1 + $0x40] sm:$0xff]
    %v108 = vld [vmem:[%s1 + $0x48] sm:$0xff]
    %v109 = vld [vmem:[%s1 + $0x50] sm:$0xff]
    %v110 = vld [vmem:[%s1 + $0x58] sm:$0xff]
    %v111 = vld [vmem:[%s1 + $0x60] sm:$0xff]
    %v112 = vld [vmem:[%s1 + $0x68] sm:$0xff]
    %v113 = vld [vmem:[%s1 + $0x70] sm:$0xff]
    %v114 = vld [vmem:[%s1 + $0x78] sm:$0xff]
    %v115 = vld [vmem:[%s1 + $0x80] sm:$0xff]
    %v116 = vld [vmem:[%s1 + $0x88] sm:$0xff]
    %v117 = vld [vmem:[%s1 + $0x90] sm:$0xff]
    %v118 = vld [vmem:[%s1 + $0x98] sm:$0xff]
    %v119 = vld [vmem:[%s1 + $0xa0] sm:$0xff]
    %v120 = vld [vmem:[%s1 + $0xa8] sm:$0xff]
    %v121 = vld [vmem:[%s1 + $0xb0] sm:$0xff]
    %v122 = vld [vmem:[%s1 + $0xb8] sm:$0xff]
    %v123 = vld [vmem:[%s1 + $0xc0] sm:$0xff]
    %v124 = vld [vmem:[%s1 + $0xc8] sm:$0xff]
    %v125 = vld [vmem:[%s1 + $0xd0] sm:$0xff]
    %v126 = vld [vmem:[%s1 + $0xd8] sm:$0xff]
    %v127 = vld [vmem:[%s1 + $0xe0] sm:$0xff]
    %v128 = vld [vmem:[%s1 + $0xe8] sm:$0xff]
    %v129 = vld [vmem:[%s1 + $0xf0] sm:$0xff]
    %v130 = vld [vmem:[%s1 + $0xf8] sm:$0xff]
    %v131 = vld [vmem:[%s1 + $0x100] sm:$0xff]
    %v132 = vld [vmem:[%s1 + $0x108] sm:$0xff]
    %v133 = vld [vmem:[%s1 + $0x110] sm:$0xff]
    %v134 = vld [vmem:[%s1 + $0x118] sm:$0xff]
    %v135 = vld [vmem:[%s1 + $0x120] sm:$0xff]
    %v136 = vld [vmem:[%s1 + $0x128] sm:$0xff]
    %v137 = vld [vmem:[%s1 + $0x130] sm:$0xff]
    %v138 = vld [vmem:[%s1 + $0x138] sm:$0xff]
    %v139 = vld [vmem:[%s1 + $0x140] sm:$0xff]
    %v140 = vld [vmem:[%s1 + $0x148] sm:$0xff]
    %v141 = vld [vmem:[%s1 + $0x150] sm:$0xff]
    %v142 = vld [vmem:[%s1 + $0x158] sm:$0xff]
    %v143 = vld [vmem:[%s1 + $0x160] sm:$0xff]
    %v144 = vld [vmem:[%s1 + $0x168] sm:$0xff]
    %v145 = vld [vmem:[%s1 + $0x170] sm:$0xff]
    %v146 = vld [vmem:[%s1 + $0x178] sm:$0xff]
    %v147 = vld [vmem:[%s1 + $0x180] sm:$0xff]
    %v148 = vld [vmem:[%s1 + $0x188] sm:$0xff]
    %v149 = vld [vmem:[%s1 + $0x190] sm:$0xff]
    %v150 = vld [vmem:[%s1 + $0x198] sm:$0xff]
    %v151 = vld [vmem:[%s1 + $0x1a0] sm:$0xff]
    %v152 = vld [vmem:[%s1 + $0x1a8] sm:$0xff]
    %v153 = vld [vmem:[%s1 + $0x1b0] sm:$0xff]
    %v154 = vld [vmem:[%s1 + $0x1b8] sm:$0xff]
    %v155 = vld [vmem:[%s1 + $0x1c0] sm:$0xff]
    %v156 = vld [vmem:[%s1 + $0x1c8] sm:$0xff]
    %v157 = vld [vmem:[%s1 + $0x1d0] sm:$0xff]
    %v158 = vld [vmem:[%s1 + $0x1d8] sm:$0xff]
    %v159 = vld [vmem:[%s1 + $0x1e0] sm:$0xff]
    %v160 = vld [vmem:[%s1 + $0x1e8] sm:$0xff]
    %v161 = vld [vmem:[%s1 + $0x1f0] sm:$0xff]
    %v162 = vld [vmem:[%s1 + $0x1f8] sm:$0xff]
    %v163 = vld [vmem:[%s1 + $0x200] sm:$0xff]
    %v164 = vld [vmem:[%s1 + $0x208] sm:$0xff]
    %v165 = vld [vmem:[%s1 + $0x210] sm:$0xff]
    %v166 = vld [vmem:[%s1 + $0x218] sm:$0xff]
    %v167 = vld [vmem:[%s1 + $0x220] sm:$0xff]
    %v168 = vld [vmem:[%s1 + $0x228] sm:$0xff]
    %v169 = vld [vmem:[%s1 + $0x230] sm:$0xff]
    %v170 = vld [vmem:[%s1 + $0x238] sm:$0xff]
    %v171 = vld [vmem:[%s1 + $0x240] sm:$0xff]
    %v172 = vld [vmem:[%s1 + $0x248] sm:$0xff]
    %v173 = vld [vmem:[%s1 + $0x250] sm:$0xff]
    %v174 = vld [vmem:[%s1 + $0x258] sm:$0xff]
    %v175 = vld [vmem:[%s1 + $0x260] sm:$0xff]
    %v176 = vld [vmem:[%s1 + $0x268] sm:$0xff]
    %v177 = vld [vmem:[%s1 + $0x270] sm:$0xff]
    %v178 = vld [vmem:[%s1 + $0x278] sm:$0xff]
    %v179 = vld [vmem:[%s1 + $0x280] sm:$0xff]
    %v180 = vld [vmem:[%s1 + $0x288] sm:$0xff]
    %v181 = vld [vmem:[%s1 + $0x290] sm:$0xff]
    %v182 = vld [vmem:[%s1 + $0x298] sm:$0xff]
    %v183 = vld [vmem:[%s1 + $0x2a0] sm:$0xff]
    %v184 = vld [vmem:[%s1 + $0x2a8] sm:$0xff]
    %v185 = vld [vmem:[%s1 + $0x2b0] sm:$0xff]
    %v186 = vld [vmem:[%s1 + $0x2b8] sm:$0xff]
    %v187 = vld [vmem:[%s1 + $0x2c0] sm:$0xff]
    %v188 = vld [vmem:[%s1 + $0x2c8] sm:$0xff]
    %v189 = vld [vmem:[%s1 + $0x2d0] sm:$0xff]
    %v190 = vld [vmem:[%s1 + $0x2d8] sm:$0xff]
    %v191 = vld [vmem:[%s1 + $0x2e0] sm:$0xff]
    %v192 = vld [vmem:[%s1 + $0x2e8] sm:$0xff]
    %v193 = vld [vmem:[%s1 + $0x2f0] sm:$0xff]
    %v194 = vld [vmem:[%s1 + $0x2f8] sm:$0xff]
    %v195 = vld [vmem:[%s1 + $0x300] sm:$0xff]
    %v196 = vld [vmem:[%s1 + $0x308] sm:$0xff]
    %v197 = vld [vmem:[%s1 + $0x310] sm:$0xff]
    %v198 = vld [vmem:[%s1 + $0x318] sm:$0xff]
    %v199 = vld [vmem:[%s1 + $0x320] sm:$0xff]
    %v200 = vld [vmem:[%s1 + $0x328] sm:$0xff]
    %v201 = vld [vmem:[%s1 + $0x330] sm:$0xff]
    %v202 = vld [vmem:[%s1 + $0x338] sm:$0xff]
    %v203 = vld [vmem:[%s1 + $0x340] sm:$0xff]
    %v204 = vld [vmem:[%s1 + $0x348] sm:$0xff]
    %v205 = vld [vmem:[%s1 + $0x350] sm:$0xff]
    %v206 = vld [vmem:[%s1 + $0x358] sm:$0xff]
    %v207 = vld [vmem:[%s1 + $0x360] sm:$0xff]
    %v208 = vld [vmem:[%s1 + $0x368] sm:$0xff]
    %v209 = vld [vmem:[%s1 + $0x370] sm:$0xff]
    %v210 = vld [vmem:[%s1 + $0x378] sm:$0xff]
    %v211 = vld [vmem:[%s1 + $0x380] sm:$0xff]
    %v212 = vld [vmem:[%s1 + $0x388] sm:$0xff]
    %v213 = vld [vmem:[%s1 + $0x390] sm:$0xff]
    %v214 = vld [vmem:[%s1 + $0x398] sm:$0xff]
    %v215 = vld [vmem:[%s1 + $0x3a0] sm:$0xff]
    %v216 = vld [vmem:[%s1 + $0x3a8] sm:$0xff]
    %v217 = vld [vmem:[%s1 + $0x3b0] sm:$0xff]
    %v218 = vld [vmem:[%s1 + $0x3b8] sm:$0xff]
    %v219 = vld [vmem:[%s1 + $0x3c0] sm:$0xff]
    %v220 = vld [vmem:[%s1 + $0x3c8] sm:$0xff]
    %v221 = vld [vmem:[%s1 + $0x3d0] sm:$0xff]
    %v222 = vld [vmem:[%s1 + $0x3d8] sm:$0xff]
    %v223 = vld [vmem:[%s1 + $0x3e0] sm:$0xff]
    %v224 = vld [vmem:[%s1 + $0x3e8] sm:$0xff]
    %v225 = vld [vmem:[%s1 + $0x3f0] sm:$0xff]
    %v226 = vld [vmem:[%s1 + $0x3f8] sm:$0xff]
    %v227 = vld [vmem:[%s1 + $0x400] sm:$0xff]
    %v228 = vld [vmem:[%s1 + $0x408] sm:$0xff]
    %v229 = vld [vmem:[%s1 + $0x410] sm:$0xff]
    %v230 = vld [vmem:[%s1 + $0x418] sm:$0xff]
    %v231 = vld [vmem:[%s1 + $0x420] sm:$0xff]
    %v232 = vld [vmem:[%s1 + $0x428] sm:$0xff]
    %v233 = vld [vmem:[%s1 + $0x430] sm:$0xff]
    %v234 = vld [vmem:[%s1 + $0x438] sm:$0xff]
    %v235 = vld [vmem:[%s1 + $0x440] sm:$0xff]
    %v236 = vld [vmem:[%s1 + $0x448] sm:$0xff]
    %v237 = vld [vmem:[%s1 + $0x450] sm:$0xff]
    %v238 = vld [vmem:[%s1 + $0x458] sm:$0xff]
    %v239 = vld [vmem:[%s1 + $0x460] sm:$0xff]
    %v240 = vld [vmem:[%s1 + $0x468] sm:$0xff]
    %v241 = vld [vmem:[%s1 + $0x470] sm:$0xff]
    %v242 = vld [vmem:[%s1 + $0x478] sm:$0xff]
    %v243 = vld [vmem:[%s1 + $0x480] sm:$0xff]
    %v244 = vld [vmem:[%s1 + $0x488] sm:$0xff]
    %v245 = vld [vmem:[%s1 + $0x490] sm:$0xff]
    %v246 = vld [vmem:[%s1 + $0x498] sm:$0xff]
    %v247 = vld [vmem:[%s1 + $0x4a0] sm:$0xff]
    %v248 = vld [vmem:[%s1 + $0x4a8] sm:$0xff]
    %v249 = vld [vmem:[%s1 + $0x4b0] sm:$0xff]
    %v250 = vld [vmem:[%s1 + $0x4b8] sm:$0xff]
    %v251 = vld [vmem:[%s1 + $0x4c0] sm:$0xff]
    %v252 = vld [vmem:[%s1 + $0x4c8] sm:$0xff]
    %v253 = vld [vmem:[%s1 + $0x4d0] sm:$0xff]
    %v254 = vld [vmem:[%s1 + $0x4d8] sm:$0xff]
    %v255 = vld [vmem:[%s1 + $0x4e0] sm:$0xff]
    %v256 = vld [vmem:[%s1 + $0x4e8] sm:$0xff]
    %v257 = vld [vmem:[%s1 + $0x4f0] sm:$0xff]
    %v258 = vld [vmem:[%s1 + $0x4f8] sm:$0xff]
    %v259 = vld [vmem:[%s1 + $0x500] sm:$0xff]
    %v260 = vld [vmem:[%s1 + $0x508] sm:$0xff]
    %v261 = vld [vmem:[%s1 + $0x510] sm:$0xff]
    %v262 = vld [vmem:[%s1 + $0x518] sm:$0xff]
    %v263 = vld [vmem:[%s1 + $0x520] sm:$0xff]
    %v264 = vld [vmem:[%s1 + $0x528] sm:$0xff]
    %v265 = vld [vmem:[%s1 + $0x530] sm:$0xff]
    %v266 = vld [vmem:[%s1 + $0x538] sm:$0xff]
    %v267 = vld [vmem:[%s1 + $0x540] sm:$0xff]
    %v268 = vld [vmem:[%s1 + $0x548] sm:$0xff]
    %v269 = vld [vmem:[%s1 + $0x550] sm:$0xff]
    %v270 = vld [vmem:[%s1 + $0x558] sm:$0xff]
    %v271 = vld [vmem:[%s1 + $0x560] sm:$0xff]
    %v272 = vld [vmem:[%s1 + $0x568] sm:$0xff]
    %v273 = vld [vmem:[%s1 + $0x570] sm:$0xff]
    %v274 = vld [vmem:[%s1 + $0x578] sm:$0xff]
    %v275 = vld [vmem:[%s1 + $0x580] sm:$0xff]
    %v276 = vld [vmem:[%s1 + $0x588] sm:$0xff]
    %v277 = vld [vmem:[%s1 + $0x590] sm:$0xff]
    %v278 = vld [vmem:[%s1 + $0x598] sm:$0xff]
    %v279 = vld [vmem:[%s1 + $0x5a0] sm:$0xff]
    %v280 = vld [vmem:[%s1 + $0x5a8] sm:$0xff]
    %v281 = vld [vmem:[%s1 + $0x5b0] sm:$0xff]
    %v282 = vld [vmem:[%s1 + $0x5b8] sm:$0xff]
    %v283 = vld [vmem:[%s1 + $0x5c0] sm:$0xff]
    %v284 = vld [vmem:[%s1 + $0x5c8] sm:$0xff]
    %v285 = vld [vmem:[%s1 + $0x5d0] sm:$0xff]
    %v286 = vld [vmem:[%s1 + $0x5d8] sm:$0xff]
    %v287 = vld [vmem:[%s1 + $0x5e0] sm:$0xff]
    %v288 = vld [vmem:[%s1 + $0x5e8] sm:$0xff]
    %v289 = vld [vmem:[%s1 + $0x5f0] sm:$0xff]
    %v290 = vld [vmem:[%s1 + $0x5f8] sm:$0xff]
    %v291 = vpack.c.bf16 %v101, %v99
    %v292 = vpack.c.bf16 %v102, %v100
    %v293 = vpack.c.bf16 %v105, %v103
    %v294 = vpack.c.bf16 %v106, %v104
    %v295 = vpack.c.bf16 %v109, %v107
    %v296 = vpack.c.bf16 %v110, %v108
    %v297 = vpack.c.bf16 %v113, %v111
    %v298 = vpack.c.bf16 %v114, %v112
    %v299 = vpack.c.bf16 %v117, %v115
    %v300 = vpack.c.bf16 %v118, %v116
    %v301 = vpack.c.bf16 %v121, %v119
    %v302 = vpack.c.bf16 %v122, %v120
    %v303 = vpack.c.bf16 %v125, %v123
    %v304 = vpack.c.bf16 %v126, %v124
    %v305 = vpack.c.bf16 %v129, %v127
    %v306 = vpack.c.bf16 %v130, %v128
    %v307 = vpack.c.bf16 %v133, %v131
    %v308 = vpack.c.bf16 %v134, %v132
    %v309 = vpack.c.bf16 %v137, %v135
    %v310 = vpack.c.bf16 %v138, %v136
    %v311 = vpack.c.bf16 %v141, %v139
    %v312 = vpack.c.bf16 %v142, %v140
    %v313 = vpack.c.bf16 %v145, %v143
    %v314 = vpack.c.bf16 %v146, %v144
    %v315 = vpack.c.bf16 %v149, %v147
    %v316 = vpack.c.bf16 %v150, %v148
    %v317 = vpack.c.bf16 %v153, %v151
    %v318 = vpack.c.bf16 %v154, %v152
    %v319 = vpack.c.bf16 %v157, %v155
    %v320 = vpack.c.bf16 %v158, %v156
    %v321 = vpack.c.bf16 %v161, %v159
    %v322 = vpack.c.bf16 %v162, %v160
    %v323 = vpack.c.bf16 %v165, %v163
    %v324 = vpack.c.bf16 %v166, %v164
    %v325 = vpack.c.bf16 %v169, %v167
    %v326 = vpack.c.bf16 %v170, %v168
    %v327 = vpack.c.bf16 %v173, %v171
    %v328 = vpack.c.bf16 %v174, %v172
    %v329 = vpack.c.bf16 %v177, %v175
    %v330 = vpack.c.bf16 %v178, %v176
    %v331 = vpack.c.bf16 %v181, %v179
    %v332 = vpack.c.bf16 %v182, %v180
    %v333 = vpack.c.bf16 %v185, %v183
    %v334 = vpack.c.bf16 %v186, %v184
    %v335 = vpack.c.bf16 %v189, %v187
    %v336 = vpack.c.bf16 %v190, %v188
    %v337 = vpack.c.bf16 %v193, %v191
    %v338 = vpack.c.bf16 %v194, %v192
    %v339 = vpack.c.bf16 %v197, %v195
    %v340 = vpack.c.bf16 %v198, %v196
    %v341 = vpack.c.bf16 %v201, %v199
    %v342 = vpack.c.bf16 %v202, %v200
    %v343 = vpack.c.bf16 %v205, %v203
    %v344 = vpack.c.bf16 %v206, %v204
    %v345 = vpack.c.bf16 %v209, %v207
    %v346 = vpack.c.bf16 %v210, %v208
    %v347 = vpack.c.bf16 %v213, %v211
    %v348 = vpack.c.bf16 %v214, %v212
    %v349 = vpack.c.bf16 %v217, %v215
    %v350 = vpack.c.bf16 %v218, %v216
    %v351 = vpack.c.bf16 %v221, %v219
    %v352 = vpack.c.bf16 %v222, %v220
    %v353 = vpack.c.bf16 %v225, %v223
    %v354 = vpack.c.bf16 %v226, %v224
    %v355 = vpack.c.bf16 %v229, %v227
    %v356 = vpack.c.bf16 %v230, %v228
    %v357 = vpack.c.bf16 %v233, %v231
    %v358 = vpack.c.bf16 %v234, %v232
    %v359 = vpack.c.bf16 %v237, %v235
    %v360 = vpack.c.bf16 %v238, %v236
    %v361 = vpack.c.bf16 %v241, %v239
    %v362 = vpack.c.bf16 %v242, %v240
    %v363 = vpack.c.bf16 %v245, %v243
    %v364 = vpack.c.bf16 %v246, %v244
    %v365 = vpack.c.bf16 %v249, %v247
    %v366 = vpack.c.bf16 %v250, %v248
    %v367 = vpack.c.bf16 %v253, %v251
    %v368 = vpack.c.bf16 %v254, %v252
    %v369 = vpack.c.bf16 %v257, %v255
    %v370 = vpack.c.bf16 %v258, %v256
    %v371 = vpack.c.bf16 %v261, %v259
    %v372 = vpack.c.bf16 %v262, %v260
    %v373 = vpack.c.bf16 %v265, %v263
    %v374 = vpack.c.bf16 %v266, %v264
    %v375 = vpack.c.bf16 %v269, %v267
    %v376 = vpack.c.bf16 %v270, %v268
    %v377 = vpack.c.bf16 %v273, %v271
    %v378 = vpack.c.bf16 %v274, %v272
    %v379 = vpack.c.bf16 %v277, %v275
    %v380 = vpack.c.bf16 %v278, %v276
    %v381 = vpack.c.bf16 %v281, %v279
    %v382 = vpack.c.bf16 %v282, %v280
    %v383 = vpack.c.bf16 %v285, %v283
    %v384 = vpack.c.bf16 %v286, %v284
    %v385 = vpack.c.bf16 %v289, %v287
    %v386 = vpack.c.bf16 %v290, %v288
    %v387 = vld [vmem:[%s3] sm:$0x3]
    %v389 = vlaneseq
    %v390 = vshrl.u32 %v389, 7
    %v391 = vsub.s32 0, %v390
    %v392 = vrot.slane %v387, %v391
    %v393 = vlaneseq
    %v394 = vshrl.u32 %v393, 7
    %v395 = vsub.s32 1, %v394
    %v396 = vrot.slane %v387, %v395
    %399 = vmatprep.subr.bf16.mxu0 %v292
    %400 = vmatpush1.bf16.msra.mxu0 %v291
    %401 = vmatprep.subr.bf16.mxu0 %v294
    %402 = vmatpush1.bf16.msra.mxu0 %v293
    %403 = vmatprep.subr.bf16.mxu0 %v296
    %404 = vmatpush1.bf16.msra.mxu0 %v295
    %405 = vmatprep.subr.bf16.mxu0 %v298
    %406 = vmatpush1.bf16.msra.mxu0 %v297
    %407 = vmatprep.subr.bf16.mxu0 %v300
    %408 = vmatpush1.bf16.msra.mxu0 %v299
    %409 = vmatprep.subr.bf16.mxu0 %v302
    %410 = vmatpush1.bf16.msra.mxu0 %v301
    %411 = vmatprep.subr.bf16.mxu0 %v304
    %412 = vmatpush1.bf16.msra.mxu0 %v303
    %413 = vmatprep.subr.bf16.mxu0 %v306
    %414 = vmatpush1.bf16.msra.mxu0 %v305
    %415 = vmatprep.subr.bf16.mxu0 %v308
    %416 = vmatpush1.bf16.msra.mxu0 %v307
    %417 = vmatprep.subr.bf16.mxu0 %v310
    %418 = vmatpush1.bf16.msra.mxu0 %v309
    %419 = vmatprep.subr.bf16.mxu0 %v312
    %420 = vmatpush1.bf16.msra.mxu0 %v311
    %421 = vmatprep.subr.bf16.mxu0 %v314
    %422 = vmatpush1.bf16.msra.mxu0 %v313
    %423 = vmatprep.subr.bf16.mxu0 %v316
    %424 = vmatpush1.bf16.msra.mxu0 %v315
    %425 = vmatprep.subr.bf16.mxu0 %v318
    %426 = vmatpush1.bf16.msra.mxu0 %v317
    %427 = vmatprep.subr.bf16.mxu0 %v320
    %428 = vmatpush1.bf16.msra.mxu0 %v319
    %429 = vmatprep.subr.bf16.mxu0 %v322
    %430 = vmatpush1.bf16.msra.mxu0 %v321
    %431 = vmatprep.mubr.bf16.mxu0 %v94
    %432 = vmatmul.mubr.bf16.gmra.mrb[0].mxu0 %v93
    %v433 = vpop.f32.mrb[0].mxu0
    %v434 = vadd.f32 %v392, %v433
    %v435 = vpop.f32.mrb[0].mxu0
    %v436 = vadd.f32 %v396, %v435
    %v437 = vpop.f32.mrb[0].mxu0
    %v438 = vpop.f32.mrb[0].mxu0
    %439 = vdwg.mxu0
    %440 = vmatprep.subr.bf16.mxu0 %v324
    %441 = vmatpush1.bf16.msra.mxu0 %v323
    %442 = vmatprep.subr.bf16.mxu0 %v326
    %443 = vmatpush1.bf16.msra.mxu0 %v325
    %444 = vmatprep.subr.bf16.mxu0 %v328
    %445 = vmatpush1.bf16.msra.mxu0 %v327
    %446 = vmatprep.subr.bf16.mxu0 %v330
    %447 = vmatpush1.bf16.msra.mxu0 %v329
    %448 = vmatprep.subr.bf16.mxu0 %v332
    %449 = vmatpush1.bf16.msra.mxu0 %v331
    %450 = vmatprep.subr.bf16.mxu0 %v334
    %451 = vmatpush1.bf16.msra.mxu0 %v333
    %452 = vmatprep.subr.bf16.mxu0 %v336
    %453 = vmatpush1.bf16.msra.mxu0 %v335
    %454 = vmatprep.subr.bf16.mxu0 %v338
    %455 = vmatpush1.bf16.msra.mxu0 %v337
    %456 = vmatprep.subr.bf16.mxu0 %v340
    %457 = vmatpush1.bf16.msra.mxu0 %v339
    %458 = vmatprep.subr.bf16.mxu0 %v342
    %459 = vmatpush1.bf16.msra.mxu0 %v341
    %460 = vmatprep.subr.bf16.mxu0 %v344
    %461 = vmatpush1.bf16.msra.mxu0 %v343
    %462 = vmatprep.subr.bf16.mxu0 %v346
    %463 = vmatpush1.bf16.msra.mxu0 %v345
    %464 = vmatprep.subr.bf16.mxu0 %v348
    %465 = vmatpush1.bf16.msra.mxu0 %v347
    %466 = vmatprep.subr.bf16.mxu0 %v350
    %467 = vmatpush1.bf16.msra.mxu0 %v349
    %468 = vmatprep.subr.bf16.mxu0 %v352
    %469 = vmatpush1.bf16.msra.mxu0 %v351
    %470 = vmatprep.subr.bf16.mxu0 %v354
    %471 = vmatpush1.bf16.msra.mxu0 %v353
    %472 = vmatprep.mubr.bf16.mxu0 %v96
    %473 = vmatmul.mubr.bf16.gmra.mrb[0].mxu0 %v95
    %v474 = vpop.f32.mrb[0].mxu0
    %v475 = vadd.f32 %v434, %v474
    %v476 = vpop.f32.mrb[0].mxu0
    %v477 = vadd.f32 %v436, %v476
    %v478 = vpop.f32.mrb[0].mxu0
    %v479 = vpop.f32.mrb[0].mxu0
    %480 = vdwg.mxu0
    %481 = vmatprep.subr.bf16.mxu0 %v356
    %482 = vmatpush1.bf16.msra.mxu0 %v355
    %483 = vmatprep.subr.bf16.mxu0 %v358
    %484 = vmatpush1.bf16.msra.mxu0 %v357
    %485 = vmatprep.subr.bf16.mxu0 %v360
    %486 = vmatpush1.bf16.msra.mxu0 %v359
    %487 = vmatprep.subr.bf16.mxu0 %v362
    %488 = vmatpush1.bf16.msra.mxu0 %v361
    %489 = vmatprep.subr.bf16.mxu0 %v364
    %490 = vmatpush1.bf16.msra.mxu0 %v363
    %491 = vmatprep.subr.bf16.mxu0 %v366
    %492 = vmatpush1.bf16.msra.mxu0 %v365
    %493 = vmatprep.subr.bf16.mxu0 %v368
    %494 = vmatpush1.bf16.msra.mxu0 %v367
    %495 = vmatprep.subr.bf16.mxu0 %v370
    %496 = vmatpush1.bf16.msra.mxu0 %v369
    %497 = vmatprep.subr.bf16.mxu0 %v372
    %498 = vmatpush1.bf16.msra.mxu0 %v371
    %499 = vmatprep.subr.bf16.mxu0 %v374
    %500 = vmatpush1.bf16.msra.mxu0 %v373
    %501 = vmatprep.subr.bf16.mxu0 %v376
    %502 = vmatpush1.bf16.msra.mxu0 %v375
    %503 = vmatprep.subr.bf16.mxu0 %v378
    %504 = vmatpush1.bf16.msra.mxu0 %v377
    %505 = vmatprep.subr.bf16.mxu0 %v380
    %506 = vmatpush1.bf16.msra.mxu0 %v379
    %507 = vmatprep.subr.bf16.mxu0 %v382
    %508 = vmatpush1.bf16.msra.mxu0 %v381
    %509 = vmatprep.subr.bf16.mxu0 %v384
    %510 = vmatpush1.bf16.msra.mxu0 %v383
    %511 = vmatprep.subr.bf16.mxu0 %v386
    %512 = vmatpush1.bf16.msra.mxu0 %v385
    %513 = vmatprep.mubr.bf16.mxu0 %v98
    %514 = vmatmul.mubr.bf16.gmra.mrb[0].mxu0 %v97
    %v515 = vpop.f32.mrb[0].mxu0
    %v516 = vadd.f32 %v475, %v515
    %v517 = vpop.f32.mrb[0].mxu0
    %v518 = vadd.f32 %v477, %v517
    %v519 = vpop.f32.mrb[0].mxu0
    %v520 = vpop.f32.mrb[0].mxu0
    %521 = vdwg.mxu0
    %v524 = vrot.slane %v516, 1
    %v525 = vrot.slane %v518, 1
    %vm528 = vcmask 1040384
    %v529 = vsel %vm528, %v516, %v524
    %v530 = vsel %vm528, %v518, %v525
    %v531 = vsel %vm528, %v524, %v516
    %v532 = vsel %vm528, %v525, %v518
    %v533 = vrot.slane %v516, 2
    %v534 = vrot.slane %v518, 2
    %v537 = vrot.slane %v516, 7
    %v538 = vrot.slane %v518, 7
    %v541 = vsel %vm528, %v533, %v537
    %v542 = vsel %vm528, %v534, %v538
    %v544 = vlaneseq
    %v545 = vshrl.u32 %v544, 7
    %v546 = vsub.s32 0, %v545
    %v547 = vrot.slane %v80, %v546
    %v548 = vlaneseq
    %v549 = vshrl.u32 %v548, 7
    %v550 = vsub.s32 1, %v549
    %v551 = vrot.slane %v80, %v550
    %vm554 = vcmask 523264
    %v556 = vsel %vm554, 0, 0
    %558 = vmatprep.subr.bf16.mxu0 %v73
    %559 = vmatpush1.bf16.msra.mxu0 %v72
    %560 = vmatprep.subr.bf16.mxu0 %v75
    %561 = vmatpush1.bf16.msra.mxu0 %v74
    %562 = vmatprep.subr.bf16.mxu0 %v77
    %563 = vmatpush1.bf16.msra.mxu0 %v76
    %564 = vmatprep.subr.bf16.mxu0 %v79
    %565 = vmatpush1.bf16.msra.mxu0 %v78
    %566 = vmatprep.subr.bf16.mxu0 0
    %567 = vmatpush1.bf16.msra.mxu0 0
    %568 = vmatprep.subr.bf16.mxu0 0
    %569 = vmatpush1.bf16.msra.mxu0 0
    %570 = vmatprep.subr.bf16.mxu0 0
    %571 = vmatpush1.bf16.msra.mxu0 0
    %572 = vmatprep.subr.bf16.mxu0 0
    %573 = vmatpush1.bf16.msra.mxu0 0
    %574 = vmatprep.subr.bf16.mxu0 0
    %575 = vmatpush1.bf16.msra.mxu0 0
    %576 = vmatprep.subr.bf16.mxu0 0
    %577 = vmatpush1.bf16.msra.mxu0 0
    %578 = vmatprep.subr.bf16.mxu0 0
    %579 = vmatpush1.bf16.msra.mxu0 0
    %580 = vmatprep.subr.bf16.mxu0 0
    %581 = vmatpush1.bf16.msra.mxu0 0
    %582 = vmatprep.subr.bf16.mxu0 0
    %583 = vmatpush1.bf16.msra.mxu0 0
    %584 = vmatprep.subr.bf16.mxu0 0
    %585 = vmatpush1.bf16.msra.mxu0 0
    %586 = vmatprep.subr.bf16.mxu0 0
    %587 = vmatpush1.bf16.msra.mxu0 0
    %588 = vmatprep.subr.bf16.mxu0 0
    %589 = vmatpush1.bf16.msra.mxu0 0
    %590 = vmatprep.mubr.bf16.mxu0 0
    %591 = vmatmul.mubr.bf16.gmra.mrb[0].mxu0 %v556
    %v592 = vpop.f32.mrb[0].mxu0
    %v593 = vadd.f32 %v547, %v592
    %v594 = vpop.f32.mrb[0].mxu0
    %v595 = vadd.f32 %v551, %v594
    %v596 = vpop.f32.mrb[0].mxu0
    %v597 = vpop.f32.mrb[0].mxu0
    %598 = vdwg.mxu0
    %v599 = vadd.f32 %v529, %v593
    %v600 = vxor.u32 %v599, 2147483648
    %v601 = vmul.f32 %v600, 1.442695
    %v602 = vpow.pop %v601
    %v603 = vadd.f32 %v602, 1.0
    %v604 = vrcp.pop %v603
    %v605 = vmul.f32 1.0, %v604
    %v606 = vmul.f32 %v605, %v595
    %v607 = vadd.f32 %v530, %v606
    %v608 = vtanh.pop %v607
    %v609 = vsub.f32 1.0, %v605
    %611 = vrot.lane.b32.xlu0 %v608, 64
    %v612 = vpop.permute.xlu0 %611
    %v614 = vmul.f32 %v609, %v612
    %v615 = vmul.f32 %v605, 0.0
    %v616 = vadd.f32 %v614, %v615
    %v617 = vadd.f32 %v616, 0.0
    %v618 = vpack.c.bf16 %v616, %v616
    %620 = vrot.lane.b32.xlu0 %v618, 64
    %v621 = vpop.permute.xlu0 %620
    %v623 = vsel %vm554, %v621, 0
    %625 = vmatprep.subr.bf16.mxu0 %v73
    %626 = vmatpush1.bf16.msra.mxu0 %v72
    %627 = vmatprep.subr.bf16.mxu0 %v75
    %628 = vmatpush1.bf16.msra.mxu0 %v74
    %629 = vmatprep.subr.bf16.mxu0 %v77
    %630 = vmatpush1.bf16.msra.mxu0 %v76
    %631 = vmatprep.subr.bf16.mxu0 %v79
    %632 = vmatpush1.bf16.msra.mxu0 %v78
    %633 = vmatprep.subr.bf16.mxu0 0
    %634 = vmatpush1.bf16.msra.mxu0 0
    %635 = vmatprep.subr.bf16.mxu0 0
    %636 = vmatpush1.bf16.msra.mxu0 0
    %637 = vmatprep.subr.bf16.mxu0 0
    %638 = vmatpush1.bf16.msra.mxu0 0
    %639 = vmatprep.subr.bf16.mxu0 0
    %640 = vmatpush1.bf16.msra.mxu0 0
    %641 = vmatprep.subr.bf16.mxu0 0
    %642 = vmatpush1.bf16.msra.mxu0 0
    %643 = vmatprep.subr.bf16.mxu0 0
    %644 = vmatpush1.bf16.msra.mxu0 0
    %645 = vmatprep.subr.bf16.mxu0 0
    %646 = vmatpush1.bf16.msra.mxu0 0
    %647 = vmatprep.subr.bf16.mxu0 0
    %648 = vmatpush1.bf16.msra.mxu0 0
    %649 = vmatprep.subr.bf16.mxu0 0
    %650 = vmatpush1.bf16.msra.mxu0 0
    %651 = vmatprep.subr.bf16.mxu0 0
    %652 = vmatpush1.bf16.msra.mxu0 0
    %653 = vmatprep.subr.bf16.mxu0 0
    %654 = vmatpush1.bf16.msra.mxu0 0
    %655 = vmatprep.subr.bf16.mxu0 0
    %656 = vmatpush1.bf16.msra.mxu0 0
    %657 = vmatprep.mubr.bf16.mxu0 0
    %658 = vmatmul.mubr.bf16.gmra.mrb[0].mxu0 %v623
    %v659 = vpop.f32.mrb[0].mxu0
    %v660 = vadd.f32 %v547, %v659
    %v661 = vpop.f32.mrb[0].mxu0
    %v662 = vadd.f32 %v551, %v661
    %v663 = vpop.f32.mrb[0].mxu0
    %v664 = vpop.f32.mrb[0].mxu0
    %665 = vdwg.mxu0
    %v666 = vadd.f32 %v531, %v660
    %v667 = vxor.u32 %v666, 2147483648
    %v668 = vmul.f32 %v667, 1.442695
    %v669 = vpow.pop %v668
    %v670 = vadd.f32 %v669, 1.0
    %v671 = vrcp.pop %v670
    %v672 = vmul.f32 1.0, %v671
    %v673 = vmul.f32 %v672, %v662
    %v674 = vadd.f32 %v532, %v673
    %v675 = vtanh.pop %v674
    %v676 = vsub.f32 1.0, %v672
    %678 = vrot.lane.b32.xlu0 %v675, 64
    %v679 = vpop.permute.xlu0 %678
    %v681 = vmul.f32 %v676, %v679
    %v682 = vmul.f32 %v672, %v616
    %v683 = vadd.f32 %v681, %v682
    %v684 = vadd.f32 %v617, %v683
    %v685 = vpack.c.bf16 %v683, %v683
    %687 = vrot.lane.b32.xlu0 %v685, 64
    %v688 = vpop.permute.xlu0 %687
    %v690 = vsel %vm554, %v688, 0
    %692 = vmatprep.subr.bf16.mxu0 %v73
    %693 = vmatpush1.bf16.msra.mxu0 %v72
    %694 = vmatprep.subr.bf16.mxu0 %v75
    %695 = vmatpush1.bf16.msra.mxu0 %v74
    %696 = vmatprep.subr.bf16.mxu0 %v77
    %697 = vmatpush1.bf16.msra.mxu0 %v76
    %698 = vmatprep.subr.bf16.mxu0 %v79
    %699 = vmatpush1.bf16.msra.mxu0 %v78
    %700 = vmatprep.subr.bf16.mxu0 0
    %701 = vmatpush1.bf16.msra.mxu0 0
    %702 = vmatprep.subr.bf16.mxu0 0
    %703 = vmatpush1.bf16.msra.mxu0 0
    %704 = vmatprep.subr.bf16.mxu0 0
    %705 = vmatpush1.bf16.msra.mxu0 0
    %706 = vmatprep.subr.bf16.mxu0 0
    %707 = vmatpush1.bf16.msra.mxu0 0
    %708 = vmatprep.subr.bf16.mxu0 0
    %709 = vmatpush1.bf16.msra.mxu0 0
    %710 = vmatprep.subr.bf16.mxu0 0
    %711 = vmatpush1.bf16.msra.mxu0 0
    %712 = vmatprep.subr.bf16.mxu0 0
    %713 = vmatpush1.bf16.msra.mxu0 0
    %714 = vmatprep.subr.bf16.mxu0 0
    %715 = vmatpush1.bf16.msra.mxu0 0
    %716 = vmatprep.subr.bf16.mxu0 0
    %717 = vmatpush1.bf16.msra.mxu0 0
    %718 = vmatprep.subr.bf16.mxu0 0
    %719 = vmatpush1.bf16.msra.mxu0 0
    %720 = vmatprep.subr.bf16.mxu0 0
    %721 = vmatpush1.bf16.msra.mxu0 0
    %722 = vmatprep.subr.bf16.mxu0 0
    %723 = vmatpush1.bf16.msra.mxu0 0
    %724 = vmatprep.mubr.bf16.mxu0 0
    %725 = vmatmul.mubr.bf16.gmra.mrb[0].mxu0 %v690
    %v726 = vpop.f32.mrb[0].mxu0
    %v727 = vadd.f32 %v547, %v726
    %v728 = vpop.f32.mrb[0].mxu0
    %v729 = vadd.f32 %v551, %v728
    %v730 = vpop.f32.mrb[0].mxu0
    %v731 = vpop.f32.mrb[0].mxu0
    %732 = vdwg.mxu0
    %v733 = vadd.f32 %v541, %v727
    %v734 = vxor.u32 %v733, 2147483648
    %v735 = vmul.f32 %v734, 1.442695
    %v736 = vpow.pop %v735
    %v737 = vadd.f32 %v736, 1.0
    %v738 = vrcp.pop %v737
    %v739 = vmul.f32 1.0, %v738
    %v740 = vmul.f32 %v739, %v729
    %v741 = vadd.f32 %v542, %v740
    %v742 = vtanh.pop %v741
    %v743 = vsub.f32 1.0, %v739
    %745 = vrot.lane.b32.xlu0 %v742, 64
    %v746 = vpop.permute.xlu0 %745
    %v748 = vmul.f32 %v743, %v746
    %v749 = vmul.f32 %v739, %v683
    %v750 = vadd.f32 %v748, %v749
    %v751 = vadd.f32 %v684, %v750
    %vm752 = vcmask 1041920
    %v753 = vsel %vm752, %v751, 0.0
    %v754 = vrot.slane %v753, 4
    %v755 = vadd.f32 %v753, %v754
    %v756 = vrot.slane %v755, 2
    %v757 = vadd.f32 %v755, %v756
    %v758 = vrot.slane %v757, 1
    %v759 = vadd.f32 %v757, %v758
    %v760 = vmul.f32 %v759, 0.16666667
    %v761 = vld [vmem:[#allocation3] sm:$0xff]
    %v762 = vld [vmem:[#allocation3 + $0x8] sm:$0xff]
    %v763 = vld [vmem:[#allocation3 + $0x10] sm:$0xff]
    %v764 = vld [vmem:[#allocation3 + $0x18] sm:$0xff]
    %v765 = vld [vmem:[#allocation3 + $0x20] sm:$0xff]
    %v766 = vld [vmem:[#allocation3 + $0x28] sm:$0xff]
    %v767 = vld [vmem:[#allocation3 + $0x30] sm:$0xff]
    %v768 = vld [vmem:[#allocation3 + $0x38] sm:$0xff]
    %v769 = vld [vmem:[%s6] sm:$0x1]
    %771 = vrot.lane.b32.xlu0 %v760, 64
    %v772 = vpop.permute.xlu0 %771
    %v773 = vsel %vm554, %v772, 0
    %775 = vmatprep.subr.mxu0 0.0
    %776 = vmatpush1.msra.mxu0 %v761
    %777 = vmatprep.subr.mxu0 0.0
    %778 = vmatpush1.msra.mxu0 %v762
    %779 = vmatprep.subr.mxu0 0.0
    %780 = vmatpush1.msra.mxu0 %v763
    %781 = vmatprep.subr.mxu0 0.0
    %782 = vmatpush1.msra.mxu0 %v764
    %783 = vmatprep.subr.mxu0 0.0
    %784 = vmatpush1.msra.mxu0 %v765
    %785 = vmatprep.subr.mxu0 0.0
    %786 = vmatpush1.msra.mxu0 %v766
    %787 = vmatprep.subr.mxu0 0.0
    %788 = vmatpush1.msra.mxu0 %v767
    %789 = vmatprep.subr.mxu0 0.0
    %790 = vmatpush1.msra.mxu0 %v768
    %791 = vmatprep.subr.mxu0 0.0
    %792 = vmatpush1.msra.mxu0 0.0
    %793 = vmatprep.subr.mxu0 0.0
    %794 = vmatpush1.msra.mxu0 0.0
    %795 = vmatprep.subr.mxu0 0.0
    %796 = vmatpush1.msra.mxu0 0.0
    %797 = vmatprep.subr.mxu0 0.0
    %798 = vmatpush1.msra.mxu0 0.0
    %799 = vmatprep.subr.mxu0 0.0
    %800 = vmatpush1.msra.mxu0 0.0
    %801 = vmatprep.subr.mxu0 0.0
    %802 = vmatpush1.msra.mxu0 0.0
    %803 = vmatprep.subr.mxu0 0.0
    %804 = vmatpush1.msra.mxu0 0.0
    %805 = vmatprep.subr.mxu0 0.0
    %806 = vmatpush1.msra.mxu0 0.0
    %807 = vmatprep.subr.mxu0 0.0
    %808 = vmatpush1.msra.mxu0 0.0
    %809 = vmatprep.subr.mxu0 0.0
    %810 = vmatpush1.msra.mxu0 0.0
    %811 = vmatprep.subr.mxu0 0.0
    %812 = vmatpush1.msra.mxu0 0.0
    %813 = vmatprep.subr.mxu0 0.0
    %814 = vmatpush1.msra.mxu0 0.0
    %815 = vmatprep.subr.mxu0 0.0
    %816 = vmatpush1.msra.mxu0 0.0
    %817 = vmatprep.subr.mxu0 0.0
    %818 = vmatpush1.msra.mxu0 0.0
    %819 = vmatprep.subr.mxu0 0.0
    %820 = vmatpush1.msra.mxu0 0.0
    %821 = vmatprep.subr.mxu0 0.0
    %822 = vmatpush1.msra.mxu0 0.0
    %823 = vmatprep.subr.mxu0 0.0
    %824 = vmatpush1.msra.mxu0 0.0
    %825 = vmatprep.subr.mxu0 0.0
    %826 = vmatpush1.msra.mxu0 0.0
    %827 = vmatprep.subr.mxu0 0.0
    %828 = vmatpush1.msra.mxu0 0.0
    %829 = vmatprep.subr.mxu0 0.0
    %830 = vmatpush1.msra.mxu0 0.0
    %831 = vmatprep.subr.mxu0 0.0
    %832 = vmatpush1.msra.mxu0 0.0
    %833 = vmatprep.subr.mxu0 0.0
    %834 = vmatpush1.msra.mxu0 0.0
    %835 = vmatprep.subr.mxu0 0.0
    %836 = vmatpush1.msra.mxu0 0.0
    %837 = vmatprep.subr.mxu0 0.0
    %838 = vmatpush1.msra.mxu0 0.0
    %839 = vmatprep.mubr.f32.mxu0 0.0
    %840 = vmatmul.mubr.f32.gmra.mrb[0].mxu0 %v773
    %v841 = vpop.f32.mrb[0].mxu0
    %v842 = vadd.f32 %v769, %v841
    %v843 = vpop.f32.mrb[0].mxu0
    %844 = vdwg.mxu0
    %v845 = vxor.u32 %v842, 2147483648
    %v846 = vmul.f32 %v845, 1.442695
    %v847 = vpow.pop %v846
    %v848 = vadd.f32 %v847, 1.0
    %v849 = vrcp.pop %v848
    %v850 = vmul.f32 1.0, %v849
    %v851 = vld [vmem:[%s7] sm:$0xff]
    %v852 = vld [vmem:[%s7 + $0x8] sm:$0xff]
    %v853 = vld [vmem:[%s7 + $0x10] sm:$0xff]
    %v854 = vld [vmem:[%s7 + $0x18] sm:$0xff]
    %v855 = vld [vmem:[%s7 + $0x20] sm:$0xff]
    %v856 = vld [vmem:[%s7 + $0x28] sm:$0xff]
    %v857 = vld [vmem:[%s7 + $0x30] sm:$0xff]
    %v858 = vld [vmem:[%s7 + $0x38] sm:$0xff]
    %v859 = vld [vmem:[%s7 + $0x40] sm:$0xff]
    %v860 = vld [vmem:[%s7 + $0x48] sm:$0xff]
    %v861 = vld [vmem:[%s7 + $0x50] sm:$0xff]
    %v862 = vld [vmem:[%s7 + $0x58] sm:$0xff]
    %v863 = vld [vmem:[%s7 + $0x60] sm:$0xff]
    %v864 = vld [vmem:[%s7 + $0x68] sm:$0xff]
    %v865 = vld [vmem:[%s7 + $0x70] sm:$0xff]
    %v866 = vld [vmem:[%s7 + $0x78] sm:$0xff]
    %v867 = vld [vmem:[%s8] sm:$0x1]
    %868 = vmatprep.subr.mxu0 0.0
    %869 = vmatpush1.msra.mxu0 %v851
    %870 = vmatprep.subr.mxu0 0.0
    %871 = vmatpush1.msra.mxu0 %v852
    %872 = vmatprep.subr.mxu0 0.0
    %873 = vmatpush1.msra.mxu0 %v853
    %874 = vmatprep.subr.mxu0 0.0
    %875 = vmatpush1.msra.mxu0 %v854
    %876 = vmatprep.subr.mxu0 0.0
    %877 = vmatpush1.msra.mxu0 %v855
    %878 = vmatprep.subr.mxu0 0.0
    %879 = vmatpush1.msra.mxu0 %v856
    %880 = vmatprep.subr.mxu0 0.0
    %881 = vmatpush1.msra.mxu0 %v857
    %882 = vmatprep.subr.mxu0 0.0
    %883 = vmatpush1.msra.mxu0 %v858
    %884 = vmatprep.subr.mxu0 0.0
    %885 = vmatpush1.msra.mxu0 %v859
    %886 = vmatprep.subr.mxu0 0.0
    %887 = vmatpush1.msra.mxu0 %v860
    %888 = vmatprep.subr.mxu0 0.0
    %889 = vmatpush1.msra.mxu0 %v861
    %890 = vmatprep.subr.mxu0 0.0
    %891 = vmatpush1.msra.mxu0 %v862
    %892 = vmatprep.subr.mxu0 0.0
    %893 = vmatpush1.msra.mxu0 %v863
    %894 = vmatprep.subr.mxu0 0.0
    %895 = vmatpush1.msra.mxu0 %v864
    %896 = vmatprep.subr.mxu0 0.0
    %897 = vmatpush1.msra.mxu0 %v865
    %898 = vmatprep.subr.mxu0 0.0
    %899 = vmatpush1.msra.mxu0 %v866
    %900 = vmatprep.subr.mxu0 0.0
    %901 = vmatpush1.msra.mxu0 0.0
    %902 = vmatprep.subr.mxu0 0.0
    %903 = vmatpush1.msra.mxu0 0.0
    %904 = vmatprep.subr.mxu0 0.0
    %905 = vmatpush1.msra.mxu0 0.0
    %906 = vmatprep.subr.mxu0 0.0
    %907 = vmatpush1.msra.mxu0 0.0
    %908 = vmatprep.subr.mxu0 0.0
    %909 = vmatpush1.msra.mxu0 0.0
    %910 = vmatprep.subr.mxu0 0.0
    %911 = vmatpush1.msra.mxu0 0.0
    %912 = vmatprep.subr.mxu0 0.0
    %913 = vmatpush1.msra.mxu0 0.0
    %914 = vmatprep.subr.mxu0 0.0
    %915 = vmatpush1.msra.mxu0 0.0
    %916 = vmatprep.subr.mxu0 0.0
    %917 = vmatpush1.msra.mxu0 0.0
    %918 = vmatprep.subr.mxu0 0.0
    %919 = vmatpush1.msra.mxu0 0.0
    %920 = vmatprep.subr.mxu0 0.0
    %921 = vmatpush1.msra.mxu0 0.0
    %922 = vmatprep.subr.mxu0 0.0
    %923 = vmatpush1.msra.mxu0 0.0
    %924 = vmatprep.subr.mxu0 0.0
    %925 = vmatpush1.msra.mxu0 0.0
    %926 = vmatprep.subr.mxu0 0.0
    %927 = vmatpush1.msra.mxu0 0.0
    %928 = vmatprep.subr.mxu0 0.0
    %929 = vmatpush1.msra.mxu0 0.0
    %930 = vmatprep.subr.mxu0 0.0
    %931 = vmatpush1.msra.mxu0 0.0
    %932 = vmatprep.mubr.f32.mxu0 0.0
    %933 = vmatmul.mubr.f32.gmra.mrb[0].mxu0 %v850
    %v934 = vpop.f32.mrb[0].mxu0
    %v935 = vadd.f32 %v867, %v934
    %v936 = vpop.f32.mrb[0].mxu0
    %937 = vdwg.mxu0
    %v938 = vxor.u32 %v935, 2147483648
    %v939 = vmul.f32 %v938, 1.442695
    %v940 = vpow.pop %v939
    %v941 = vadd.f32 %v940, 1.0
    %v942 = vrcp.pop %v941
    %v943 = vmul.f32 1.0, %v942
    %v944 = vld [vmem:[%s9] sm:$0xff]
    %v945 = vld [vmem:[%s9 + $0x8] sm:$0xff]
    %v946 = vld [vmem:[%s9 + $0x10] sm:$0xff]
    %v947 = vld [vmem:[%s9 + $0x18] sm:$0xff]
    %v948 = vld [vmem:[#allocation2] sm:$0x1]
    %vm949 = vcmask 261120
    %v951 = vsel %vm949, %v943, 0
    %953 = vmatprep.subr.mxu0 0.0
    %954 = vmatpush1.msra.mxu0 %v944
    %955 = vmatprep.subr.mxu0 0.0
    %956 = vmatpush1.msra.mxu0 %v945
    %957 = vmatprep.subr.mxu0 0.0
    %958 = vmatpush1.msra.mxu0 %v946
    %959 = vmatprep.subr.mxu0 0.0
    %960 = vmatpush1.msra.mxu0 %v947
    %961 = vmatprep.subr.mxu0 0.0
    %962 = vmatpush1.msra.mxu0 0.0
    %963 = vmatprep.subr.mxu0 0.0
    %964 = vmatpush1.msra.mxu0 0.0
    %965 = vmatprep.subr.mxu0 0.0
    %966 = vmatpush1.msra.mxu0 0.0
    %967 = vmatprep.subr.mxu0 0.0
    %968 = vmatpush1.msra.mxu0 0.0
    %969 = vmatprep.subr.mxu0 0.0
    %970 = vmatpush1.msra.mxu0 0.0
    %971 = vmatprep.subr.mxu0 0.0
    %972 = vmatpush1.msra.mxu0 0.0
    %973 = vmatprep.subr.mxu0 0.0
    %974 = vmatpush1.msra.mxu0 0.0
    %975 = vmatprep.subr.mxu0 0.0
    %976 = vmatpush1.msra.mxu0 0.0
    %977 = vmatprep.subr.mxu0 0.0
    %978 = vmatpush1.msra.mxu0 0.0
    %979 = vmatprep.subr.mxu0 0.0
    %980 = vmatpush1.msra.mxu0 0.0
    %981 = vmatprep.subr.mxu0 0.0
    %982 = vmatpush1.msra.mxu0 0.0
    %983 = vmatprep.subr.mxu0 0.0
    %984 = vmatpush1.msra.mxu0 0.0
    %985 = vmatprep.subr.mxu0 0.0
    %986 = vmatpush1.msra.mxu0 0.0
    %987 = vmatprep.subr.mxu0 0.0
    %988 = vmatpush1.msra.mxu0 0.0
    %989 = vmatprep.subr.mxu0 0.0
    %990 = vmatpush1.msra.mxu0 0.0
    %991 = vmatprep.subr.mxu0 0.0
    %992 = vmatpush1.msra.mxu0 0.0
    %993 = vmatprep.subr.mxu0 0.0
    %994 = vmatpush1.msra.mxu0 0.0
    %995 = vmatprep.subr.mxu0 0.0
    %996 = vmatpush1.msra.mxu0 0.0
    %997 = vmatprep.subr.mxu0 0.0
    %998 = vmatpush1.msra.mxu0 0.0
    %999 = vmatprep.subr.mxu0 0.0
    %1000 = vmatpush1.msra.mxu0 0.0
    %1001 = vmatprep.subr.mxu0 0.0
    %1002 = vmatpush1.msra.mxu0 0.0
    %1003 = vmatprep.subr.mxu0 0.0
    %1004 = vmatpush1.msra.mxu0 0.0
    %1005 = vmatprep.subr.mxu0 0.0
    %1006 = vmatpush1.msra.mxu0 0.0
    %1007 = vmatprep.subr.mxu0 0.0
    %1008 = vmatpush1.msra.mxu0 0.0
    %1009 = vmatprep.subr.mxu0 0.0
    %1010 = vmatpush1.msra.mxu0 0.0
    %1011 = vmatprep.subr.mxu0 0.0
    %1012 = vmatpush1.msra.mxu0 0.0
    %1013 = vmatprep.subr.mxu0 0.0
    %1014 = vmatpush1.msra.mxu0 0.0
    %1015 = vmatprep.subr.mxu0 0.0
    %1016 = vmatpush1.msra.mxu0 0.0
    %1017 = vmatprep.mubr.f32.mxu0 0.0
    %1018 = vmatmul.mubr.f32.gmra.mrb[0].mxu0 %v951
    %v1019 = vpop.f32.mrb[0].mxu0
    %v1020 = vadd.f32 %v948, %v1019
    %v1021 = vpop.f32.mrb[0].mxu0
    %1022 = vdwg.mxu0
    %v1023 = vxor.u32 %v1020, 2147483648
    %v1024 = vmul.f32 %v1023, 1.442695
    %v1025 = vpow.pop %v1024
    %v1026 = vadd.f32 %v1025, 1.0
    %v1027 = vrcp.pop %v1026
    %v1028 = vmul.f32 1.0, %v1027
    %vm1029 = vcmask 0
    %1030 = vst.msk [vmem:[#allocation6] sm:$0x1] %vm1029, %v1028
    // Predicated region
    $region50: #{ha_net_forward.3} parent=1 // pred_check
      _
    $region51: #{ha_net_forward.3} parent=1 // pred_check_branch
      %1032 = sbr.rel (0) target = $region53
    $region52: #{ha_net_forward.3} parent=1 // pred_region
      %s1034 = ssub.s32 16, 16
      %1035 = vsyncadd [#allocation5], %s1034
      %s1037 = sshll.u32 [#allocation6], 4
      %s1038 = int_to_ptr.vmem [resolvable:$true] %s1037
      %1040 = dma.vmem_to_hbm [thread:$0]  %s1038, 16, %s11, [#allocation5]
    $region53: #{ha_net_forward.3} parent=1 // pred_fallthru
      _
    // Predicated region
    $region54: #{ha_net_forward.3} parent=1 // pred_check
      _
    $region55: #{ha_net_forward.3} parent=1 // pred_check_branch
      %1042 = sbr.rel (0) target = $region57
    $region56: #{ha_net_forward.3} parent=1 // pred_region
      %1043 = dma.done [#allocation5], 16
    $region57: #{ha_net_forward.3} parent=1 // pred_fallthru
      _
    %1044 = vsyncpa [#allocation4], 1
    %1045 = vsyncpa [#allocation5], 1

// kernel: ha_net_forward.2
$region0: #{ha_net_forward.2}
  #allocation0 [shape = 'u32[]', space=smem, size = 0x4, offset = 0x4, fixed_abs, tag = 'smem constant byte address 0x4 - core index']
  #allocation1 [shape = 'u32[144,128]{1,0:T(1,128)}', space=vmem, size = 0x12000, scoped, tag = 'internal scratch']
  #allocation2 [shape = 'f32[32,8,32]{2,1,0:T(8,128)}', space=vmem, size = 0x20000, scoped, tag = 'scratch operand']
  %s0 = inlined_call_operand.vmem [shape: f32[8,8,16], index: 0, kind: input, shape index: {}]
  %s1 = inlined_call_operand.vmem [shape: f32[16,128], index: 1, kind: input, shape index: {}]
  %s2 = inlined_call_operand.hbm [shape: f32[32,128], index: 2, kind: input, shape index: {}]
  %s3 = inlined_call_operand.hbm [shape: f32[1,128], index: 3, kind: input, shape index: {}]
  %s4 = inlined_call_operand.hbm [shape: f32[1,128], index: 4, kind: input, shape index: {}]
  %s5 = inlined_call_operand.hbm [shape: f32[192,768], index: 5, kind: input, shape index: {}]
  %s6 = inlined_call_operand.hbm [shape: f32[1,768], index: 6, kind: input, shape index: {}]
  %s7 = inlined_call_operand.vmem [shape: f32[24,1,768], index: 7, kind: input, shape index: {}]
  %s8 = inlined_call_operand.vmem [shape: f32[8,768], index: 8, kind: output, shape index: {}]
  %s9 = sld [smem:[#allocation0]]
  $region62: #{ha_net_forward.2} parent=0
    _
  %s11 = ssub.s32 1, %s9
  %s12 = scalar_select 0, %s11, %s9
  $region1: #{ha_net_forward.2} parent=0
    #allocation3 [shape = 'u8[16384]{0}', space=vmem, size = 0x4000, scoped, tag = 'input window, operand 2, single buffered']
    #allocation4 [shape = 's32[1]{0}', space=sflag, size = 0x4, scoped, tag = 'scoped memory for ha_net_forward.2']
    #allocation5 [shape = 'u8[512]{0}', space=vmem, size = 0x400, scoped, tag = 'input window, operand 3, single buffered']
    #allocation6 [shape = 's32[1]{0}', space=sflag, size = 0x4, scoped, tag = 'scoped memory for ha_net_forward.2']
    #allocation7 [shape = 'u8[512]{0}', space=vmem, size = 0x400, scoped, tag = 'input window, operand 4, single buffered']
    #allocation8 [shape = 'u8[589824]{0}', space=vmem, size = 0x90000, scoped, tag = 'input window, operand 5, single buffered']
    #allocation9 [shape = 's32[1]{0}', space=sflag, size = 0x4, scoped, tag = 'scoped memory for ha_net_forward.2']
    #allocation10 [shape = 'u8[3072]{0}', space=vmem, size = 0xc00, scoped, tag = 'input window, operand 6, single buffered']
    %13 = vsyncpa [#allocation4], 0
    %14 = vsyncpa [#allocation6], 0
    %15 = vsyncpa [#allocation9], 0
    // Predicated region
    $region2: #{ha_net_forward.2} parent=1 // pred_check
      _
    $region3: #{ha_net_forward.2} parent=1 // pred_check_branch
      %17 = sbr.rel (0) target = $region5
    $region4: #{ha_net_forward.2} parent=1 // pred_region
      _
    $region5: #{ha_net_forward.2} parent=1 // pred_fallthru
      _
    // Predicated region
    $region6: #{ha_net_forward.2} parent=1 // pred_check
      _
    $region7: #{ha_net_forward.2} parent=1 // pred_check_branch
      %19 = sbr.rel (0) target = $region9
    $region8: #{ha_net_forward.2} parent=1 // pred_region
      _
    $region9: #{ha_net_forward.2} parent=1 // pred_fallthru
      _
    // Predicated region
    $region10: #{ha_net_forward.2} parent=1 // pred_check
      _
    $region11: #{ha_net_forward.2} parent=1 // pred_check_branch
      %21 = sbr.rel (0) target = $region13
    $region12: #{ha_net_forward.2} parent=1 // pred_region
      %s23 = ssub.s32 512, 512
      %24 = vsyncadd [#allocation4], %s23
      %s25 = sshll.u32 [#allocation3], 4
      %s26 = int_to_ptr.vmem [resolvable:$true] %s25
      %31 = dma.hbm_to_vmem [thread:$0]  %s2, 512, %s26, [#allocation4], 128, 128, 8
    $region13: #{ha_net_forward.2} parent=1 // pred_fallthru
      _
    // Predicated region
    $region14: #{ha_net_forward.2} parent=1 // pred_check
      _
    $region15: #{ha_net_forward.2} parent=1 // pred_check_branch
      %33 = sbr.rel (0) target = $region17
    $region16: #{ha_net_forward.2} parent=1 // pred_region
      %s35 = ssub.s32 16, 16
      %36 = vsyncadd [#allocation6], %s35
      %s38 = sshll.u32 [#allocation5], 4
      %s39 = int_to_ptr.vmem [resolvable:$true] %s38
      %41 = dma.hbm_to_vmem [thread:$0]  %s3, 16, %s39, [#allocation6]
    $region17: #{ha_net_forward.2} parent=1 // pred_fallthru
      _
    // Predicated region
    $region18: #{ha_net_forward.2} parent=1 // pred_check
      _
    $region19: #{ha_net_forward.2} parent=1 // pred_check_branch
      %43 = sbr.rel (0) target = $region21
    $region20: #{ha_net_forward.2} parent=1 // pred_region
      %s45 = ssub.s32 16, 16
      %46 = vsyncadd [#allocation6], %s45
      %s48 = sshll.u32 [#allocation7], 4
      %s49 = int_to_ptr.vmem [resolvable:$true] %s48
      %51 = dma.hbm_to_vmem [thread:$0]  %s4, 16, %s49, [#allocation6]
    $region21: #{ha_net_forward.2} parent=1 // pred_fallthru
      _
    // Predicated region
    $region22: #{ha_net_forward.2} parent=1 // pred_check
      _
    $region23: #{ha_net_forward.2} parent=1 // pred_check_branch
      %53 = sbr.rel (0) target = $region25
    $region24: #{ha_net_forward.2} parent=1 // pred_region
      %s55 = ssub.s32 18432, 18432
      %56 = vsyncadd [#allocation9], %s55
      %s57 = sshll.u32 [#allocation8], 4
      %s58 = int_to_ptr.vmem [resolvable:$true] %s57
      %63 = dma.hbm_to_vmem [thread:$0]  %s5, 18432, %s58, [#allocation9], 768, 768, 48
    $region25: #{ha_net_forward.2} parent=1 // pred_fallthru
      _
    // Predicated region
    $region26: #{ha_net_forward.2} parent=1 // pred_check
      _
    $region27: #{ha_net_forward.2} parent=1 // pred_check_branch
      %65 = sbr.rel (0) target = $region29
    $region28: #{ha_net_forward.2} parent=1 // pred_region
      %s67 = ssub.s32 96, 96
      %68 = vsyncadd [#allocation9], %s67
      %s70 = sshll.u32 [#allocation10], 4
      %s71 = int_to_ptr.vmem [resolvable:$true] %s70
      %73 = dma.hbm_to_vmem [thread:$0]  %s6, 96, %s71, [#allocation9]
    $region29: #{ha_net_forward.2} parent=1 // pred_fallthru
      _
    // Predicated region
    $region30: #{ha_net_forward.2} parent=1 // pred_check
      _
    $region31: #{ha_net_forward.2} parent=1 // pred_check_branch
      %75 = sbr.rel (0) target = $region33
    $region32: #{ha_net_forward.2} parent=1 // pred_region
      _
    $region33: #{ha_net_forward.2} parent=1 // pred_fallthru
      _
    // Predicated region
    $region34: #{ha_net_forward.2} parent=1 // pred_check
      _
    $region35: #{ha_net_forward.2} parent=1 // pred_check_branch
      %77 = sbr.rel (0) target = $region37
    $region36: #{ha_net_forward.2} parent=1 // pred_region
      %78 = dma.done [#allocation4], 512
    $region37: #{ha_net_forward.2} parent=1 // pred_fallthru
      _
    // Predicated region
    $region38: #{ha_net_forward.2} parent=1 // pred_check
      _
    $region39: #{ha_net_forward.2} parent=1 // pred_check_branch
      %80 = sbr.rel (0) target = $region41
    $region40: #{ha_net_forward.2} parent=1 // pred_region
      %81 = dma.done [#allocation6], 16
    $region41: #{ha_net_forward.2} parent=1 // pred_fallthru
      _
    // Predicated region
    $region42: #{ha_net_forward.2} parent=1 // pred_check
      _
    $region43: #{ha_net_forward.2} parent=1 // pred_check_branch
      %83 = sbr.rel (0) target = $region45
    $region44: #{ha_net_forward.2} parent=1 // pred_region
      %84 = dma.done [#allocation6], 16
    $region45: #{ha_net_forward.2} parent=1 // pred_fallthru
      _
    // Predicated region
    $region46: #{ha_net_forward.2} parent=1 // pred_check
      _
    $region47: #{ha_net_forward.2} parent=1 // pred_check_branch
      %86 = sbr.rel (0) target = $region49
    $region48: #{ha_net_forward.2} parent=1 // pred_region
      %87 = dma.done [#allocation9], 18432
    $region49: #{ha_net_forward.2} parent=1 // pred_fallthru
      _
    // Predicated region
    $region50: #{ha_net_forward.2} parent=1 // pred_check
      _
    $region51: #{ha_net_forward.2} parent=1 // pred_check_branch
      %89 = sbr.rel (0) target = $region53
    $region52: #{ha_net_forward.2} parent=1 // pred_region
      %90 = dma.done [#allocation9], 96
    $region53: #{ha_net_forward.2} parent=1 // pred_fallthru
      _
    %v92 = vld [vmem:[%s1] sm:$0xff]
    %v93 = vld [vmem:[%s1 + $0x8] sm:$0xff]
    %v94 = vpack.c.bf16 %v93, %v92
    %v95 = vld [vmem:[#allocation3] sm:$0xff]
    %v96 = vld [vmem:[#allocation3 + $0x8] sm:$0xff]
    %v97 = vld [vmem:[#allocation3 + $0x10] sm:$0xff]
    %v98 = vld [vmem:[#allocation3 + $0x18] sm:$0xff]
    %v99 = vpack.c.bf16 %v96, %v95
    %v100 = vpack.c.bf16 %v98, %v97
    %v101 = vld [vmem:[#allocation5] sm:$0x1]
    %v102 = vld [vmem:[#allocation7] sm:$0x1]
    %v103 = vld [vmem:[%s0] sm:$0xff]
    %v104 = vld [vmem:[%s0 + $0x8] sm:$0xff]
    %v105 = vld [vmem:[%s0 + $0x10] sm:$0xff]
    %v106 = vld [vmem:[%s0 + $0x18] sm:$0xff]
    %v107 = vld [vmem:[%s0 + $0x20] sm:$0xff]
    %v108 = vld [vmem:[%s0 + $0x28] sm:$0xff]
    %v109 = vld [vmem:[%s0 + $0x30] sm:$0xff]
    %v110 = vld [vmem:[%s0 + $0x38] sm:$0xff]
    %v111 = vpack.c.bf16 %v104, %v103
    %v112 = vpack.c.bf16 %v106, %v105
    %v113 = vpack.c.bf16 %v108, %v107
    %v114 = vpack.c.bf16 %v110, %v109
    %v116 = vlaneseq
    %v117 = vshrl.u32 %v116, 7
    %v118 = vsub.s32 0, %v117
    %v119 = vrot.slane %v101, %v118
    %vm121 = vcmask 130048
    %v123 = vsel %vm121, %v111, 0
    %v126 = vsel %vm121, %v112, 0
    %v129 = vsel %vm121, %v113, 0
    %v132 = vsel %vm121, %v114, 0
    %134 = vmatprep.subr.bf16.mxu0 0
    %135 = vmatpush1.bf16.msra.mxu0 %v94
    %136 = vmatprep.subr.bf16.mxu0 0
    %137 = vmatpush1.bf16.msra.mxu0 0
    %138 = vmatprep.subr.bf16.mxu0 0
    %139 = vmatpush1.bf16.msra.mxu0 0
    %140 = vmatprep.subr.bf16.mxu0 0
    %141 = vmatpush1.bf16.msra.mxu0 0
    %142 = vmatprep.subr.bf16.mxu0 0
    %143 = vmatpush1.bf16.msra.mxu0 0
    %144 = vmatprep.subr.bf16.mxu0 0
    %145 = vmatpush1.bf16.msra.mxu0 0
    %146 = vmatprep.subr.bf16.mxu0 0
    %147 = vmatpush1.bf16.msra.mxu0 0
    %148 = vmatprep.subr.bf16.mxu0 0
    %149 = vmatpush1.bf16.msra.mxu0 0
    %150 = vmatprep.subr.bf16.mxu0 0
    %151 = vmatpush1.bf16.msra.mxu0 0
    %152 = vmatprep.subr.bf16.mxu0 0
    %153 = vmatpush1.bf16.msra.mxu0 0
    %154 = vmatprep.subr.bf16.mxu0 0
    %155 = vmatpush1.bf16.msra.mxu0 0
    %156 = vmatprep.subr.bf16.mxu0 0
    %157 = vmatpush1.bf16.msra.mxu0 0
    %158 = vmatprep.subr.bf16.mxu0 0
    %159 = vmatpush1.bf16.msra.mxu0 0
    %160 = vmatprep.subr.bf16.mxu0 0
    %161 = vmatpush1.bf16.msra.mxu0 0
    %162 = vmatprep.subr.bf16.mxu0 0
    %163 = vmatpush1.bf16.msra.mxu0 0
    %164 = vmatprep.subr.bf16.mxu0 0
    %165 = vmatpush1.bf16.msra.mxu0 0
    %166 = vmatprep.mubr.bf16.mxu0 0
    %167 = vmatmul.mubr.bf16.gmra.mrb[0].mxu0 %v123
    %v168 = vpop.f32.mrb[0].mxu0
    %v169 = vadd.f32 %v119, %v168
    %v170 = vpop.f32.mrb[0].mxu0
    %v171 = vpop.f32.mrb[0].mxu0
    %v172 = vadd.f32 %v119, %v171
    %v173 = vpop.f32.mrb[0].mxu0
    %174 = vmatprep.mubr.bf16.mxu0 0
    %175 = vmatmul.mubr.bf16.gmra.mrb[0].mxu0 %v126
    %v176 = vpop.f32.mrb[0].mxu0
    %v177 = vadd.f32 %v119, %v176
    %v178 = vpop.f32.mrb[0].mxu0
    %v179 = vpop.f32.mrb[0].mxu0
    %v180 = vadd.f32 %v119, %v179
    %v181 = vpop.f32.mrb[0].mxu0
    %182 = vmatprep.mubr.bf16.mxu0 0
    %183 = vmatmul.mubr.bf16.gmra.mrb[0].mxu0 %v129
    %v184 = vpop.f32.mrb[0].mxu0
    %v185 = vadd.f32 %v119, %v184
    %v186 = vpop.f32.mrb[0].mxu0
    %v187 = vpop.f32.mrb[0].mxu0
    %v188 = vadd.f32 %v119, %v187
    %v189 = vpop.f32.mrb[0].mxu0
    %190 = vmatprep.mubr.bf16.mxu0 0
    %191 = vmatmul.mubr.bf16.gmra.mrb[0].mxu0 %v132
    %v192 = vpop.f32.mrb[0].mxu0
    %v193 = vadd.f32 %v119, %v192
    %v194 = vpop.f32.mrb[0].mxu0
    %v195 = vpop.f32.mrb[0].mxu0
    %v196 = vadd.f32 %v119, %v195
    %v197 = vpop.f32.mrb[0].mxu0
    %198 = vdwg.mxu0
    %v199 = vcombine.low %v169, %v177
    %v200 = vcombine.high %v169, %v177
    %v202 = vunpack.c.l.s4 1983009808
    %v203 = vunpack.c.0.s8 %v202
    %v204 = vlaneseq
    %v205 = vshrl.u32 %v204, 7
    %v206 = vsub.s32 %v203, %v205
    %v207 = vrot.slane %v199, %v206
    %v209 = vunpack.c.l.s4 1983009808
    %v210 = vunpack.c.0.s8 %v209
    %v211 = vlaneseq
    %v212 = vshrl.u32 %v211, 7
    %v213 = vsub.s32 %v210, %v212
    %v214 = vrot.slane %v200, %v213
    %v215 = vcombine.low %v172, %v180
    %v216 = vcombine.high %v172, %v180
    %v218 = vunpack.c.l.s4 1983009808
    %v219 = vunpack.c.0.s8 %v218
    %v220 = vlaneseq
    %v221 = vshrl.u32 %v220, 7
    %v222 = vsub.s32 %v219, %v221
    %v223 = vrot.slane %v215, %v222
    %v225 = vunpack.c.l.s4 1983009808
    %v226 = vunpack.c.0.s8 %v225
    %v227 = vlaneseq
    %v228 = vshrl.u32 %v227, 7
    %v229 = vsub.s32 %v226, %v228
    %v230 = vrot.slane %v216, %v229
    %v231 = vcombine.low %v185, %v193
    %v232 = vcombine.high %v185, %v193
    %v234 = vunpack.c.l.s4 1983009808
    %v235 = vunpack.c.0.s8 %v234
    %v236 = vlaneseq
    %v237 = vshrl.u32 %v236, 7
    %v238 = vsub.s32 %v235, %v237
    %v239 = vrot.slane %v231, %v238
    %v241 = vunpack.c.l.s4 1983009808
    %v242 = vunpack.c.0.s8 %v241
    %v243 = vlaneseq
    %v244 = vshrl.u32 %v243, 7
    %v245 = vsub.s32 %v242, %v244
    %v246 = vrot.slane %v232, %v245
    %v247 = vcombine.low %v188, %v196
    %v248 = vcombine.high %v188, %v196
    %v250 = vunpack.c.l.s4 1983009808
    %v251 = vunpack.c.0.s8 %v250
    %v252 = vlaneseq
    %v253 = vshrl.u32 %v252, 7
    %v254 = vsub.s32 %v251, %v253
    %v255 = vrot.slane %v247, %v254
    %v257 = vunpack.c.l.s4 1983009808
    %v258 = vunpack.c.0.s8 %v257
    %v259 = vlaneseq
    %v260 = vshrl.u32 %v259, 7
    %v261 = vsub.s32 %v258, %v260
    %v262 = vrot.slane %v248, %v261
    %v263 = vcombine.low %v207, %v223
    %v264 = vcombine.high %v207, %v223
    %v266 = vunpack.c.l.s4 1934713408
    %v267 = vunpack.c.0.s8 %v266
    %v268 = vlaneseq
    %v269 = vshrl.u32 %v268, 7
    %v270 = vsub.s32 %v267, %v269
    %v271 = vrot.slane %v263, %v270
    %v273 = vunpack.c.l.s4 1934713408
    %v274 = vunpack.c.0.s8 %v273
    %v275 = vlaneseq
    %v276 = vshrl.u32 %v275, 7
    %v277 = vsub.s32 %v274, %v276
    %v278 = vrot.slane %v264, %v277
    %v279 = vcombine.low %v214, %v230
    %v280 = vcombine.high %v214, %v230
    %v282 = vunpack.c.l.s4 1934713408
    %v283 = vunpack.c.0.s8 %v282
    %v284 = vlaneseq
    %v285 = vshrl.u32 %v284, 7
    %v286 = vsub.s32 %v283, %v285
    %v287 = vrot.slane %v279, %v286
    %v289 = vunpack.c.l.s4 1934713408
    %v290 = vunpack.c.0.s8 %v289
    %v291 = vlaneseq
    %v292 = vshrl.u32 %v291, 7
    %v293 = vsub.s32 %v290, %v292
    %v294 = vrot.slane %v280, %v293
    %v295 = vcombine.low %v239, %v255
    %v296 = vcombine.high %v239, %v255
    %v298 = vunpack.c.l.s4 1934713408
    %v299 = vunpack.c.0.s8 %v298
    %v300 = vlaneseq
    %v301 = vshrl.u32 %v300, 7
    %v302 = vsub.s32 %v299, %v301
    %v303 = vrot.slane %v295, %v302
    %v305 = vunpack.c.l.s4 1934713408
    %v306 = vunpack.c.0.s8 %v305
    %v307 = vlaneseq
    %v308 = vshrl.u32 %v307, 7
    %v309 = vsub.s32 %v306, %v308
    %v310 = vrot.slane %v296, %v309
    %v311 = vcombine.low %v246, %v262
    %v312 = vcombine.high %v246, %v262
    %v314 = vunpack.c.l.s4 1934713408
    %v315 = vunpack.c.0.s8 %v314
    %v316 = vlaneseq
    %v317 = vshrl.u32 %v316, 7
    %v318 = vsub.s32 %v315, %v317
    %v319 = vrot.slane %v311, %v318
    %v321 = vunpack.c.l.s4 1934713408
    %v322 = vunpack.c.0.s8 %v321
    %v323 = vlaneseq
    %v324 = vshrl.u32 %v323, 7
    %v325 = vsub.s32 %v322, %v324
    %v326 = vrot.slane %v312, %v325
    %v327 = vcombine.low %v271, %v303
    %v328 = vcombine.high %v271, %v303
    %v329 = vcombine.low %v278, %v310
    %v330 = vcombine.high %v278, %v310
    %v331 = vcombine.low %v287, %v319
    %v332 = vcombine.high %v287, %v319
    %v333 = vcombine.low %v294, %v326
    %v334 = vcombine.high %v294, %v326
    %vm335 = vcmask 261120
    %336 = vst.msk [vmem:[#allocation2] sm:$0xff] %vm335, 0.0
    %337 = vst.msk [vmem:[#allocation2 + $0x8] sm:$0xff] %vm335, 0.0
    %338 = vst.msk [vmem:[#allocation2 + $0x10] sm:$0xff] %vm335, 0.0
    %339 = vst.msk [vmem:[#allocation2 + $0x18] sm:$0xff] %vm335, 0.0
    %340 = vst.msk [vmem:[#allocation2 + $0x20] sm:$0xff] %vm335, 0.0
    %341 = vst.msk [vmem:[#allocation2 + $0x28] sm:$0xff] %vm335, 0.0
    %342 = vst.msk [vmem:[#allocation2 + $0x30] sm:$0xff] %vm335, 0.0
    %343 = vst.msk [vmem:[#allocation2 + $0x38] sm:$0xff] %vm335, 0.0
    %344 = vst.msk [vmem:[#allocation2 + $0x40] sm:$0xff] %vm335, 0.0
    %345 = vst.msk [vmem:[#allocation2 + $0x48] sm:$0xff] %vm335, 0.0
    %346 = vst.msk [vmem:[#allocation2 + $0x50] sm:$0xff] %vm335, 0.0
    %347 = vst.msk [vmem:[#allocation2 + $0x58] sm:$0xff] %vm335, 0.0
    %348 = vst.msk [vmem:[#allocation2 + $0x60] sm:$0xff] %vm335, 0.0
    %349 = vst.msk [vmem:[#allocation2 + $0x68] sm:$0xff] %vm335, 0.0
    %350 = vst.msk [vmem:[#allocation2 + $0x70] sm:$0xff] %vm335, 0.0
    %351 = vst.msk [vmem:[#allocation2 + $0x78] sm:$0xff] %vm335, 0.0
    %352 = vst.msk [vmem:[#allocation2 + $0x80] sm:$0xff] %vm335, 0.0
    %353 = vst.msk [vmem:[#allocation2 + $0x88] sm:$0xff] %vm335, 0.0
    %354 = vst.msk [vmem:[#allocation2 + $0x90] sm:$0xff] %vm335, 0.0
    %355 = vst.msk [vmem:[#allocation2 + $0x98] sm:$0xff] %vm335, 0.0
    %356 = vst.msk [vmem:[#allocation2 + $0xa0] sm:$0xff] %vm335, 0.0
    %357 = vst.msk [vmem:[#allocation2 + $0xa8] sm:$0xff] %vm335, 0.0
    %358 = vst.msk [vmem:[#allocation2 + $0xb0] sm:$0xff] %vm335, 0.0
    %359 = vst.msk [vmem:[#allocation2 + $0xb8] sm:$0xff] %vm335, 0.0
    %360 = vst.msk [vmem:[#allocation2 + $0xc0] sm:$0xff] %vm335, 0.0
    %361 = vst.msk [vmem:[#allocation2 + $0xc8] sm:$0xff] %vm335, 0.0
    %362 = vst.msk [vmem:[#allocation2 + $0xd0] sm:$0xff] %vm335, 0.0
    %363 = vst.msk [vmem:[#allocation2 + $0xd8] sm:$0xff] %vm335, 0.0
    %364 = vst.msk [vmem:[#allocation2 + $0xe0] sm:$0xff] %vm335, 0.0
    %365 = vst.msk [vmem:[#allocation2 + $0xe8] sm:$0xff] %vm335, 0.0
    %366 = vst.msk [vmem:[#allocation2 + $0xf0] sm:$0xff] %vm335, 0.0
    %367 = vst.msk [vmem:[#allocation2 + $0xf8] sm:$0xff] %vm335, 0.0
    %v369 = vlaneseq
    %v370 = vshrl.u32 %v369, 7
    %v371 = vsub.s32 0, %v370
    %v372 = vrot.slane %v102, %v371
    %v375 = vsel %vm335, 0, 0
    %377 = vmatprep.subr.bf16.mxu0 0
    %378 = vmatpush1.bf16.msra.mxu0 %v99
    %379 = vmatprep.subr.bf16.mxu0 0
    %380 = vmatpush1.bf16.msra.mxu0 %v100
    %381 = vmatprep.subr.bf16.mxu0 0
    %382 = vmatpush1.bf16.msra.mxu0 0
    %383 = vmatprep.subr.bf16.mxu0 0
    %384 = vmatpush1.bf16.msra.mxu0 0
    %385 = vmatprep.subr.bf16.mxu0 0
    %386 = vmatpush1.bf16.msra.mxu0 0
    %387 = vmatprep.subr.bf16.mxu0 0
    %388 = vmatpush1.bf16.msra.mxu0 0
    %389 = vmatprep.subr.bf16.mxu0 0
    %390 = vmatpush1.bf16.msra.mxu0 0
    %391 = vmatprep.subr.bf16.mxu0 0
    %392 = vmatpush1.bf16.msra.mxu0 0
    %393 = vmatprep.subr.bf16.mxu0 0
    %394 = vmatpush1.bf16.msra.mxu0 0
    %395 = vmatprep.subr.bf16.mxu0 0
    %396 = vmatpush1.bf16.msra.mxu0 0
    %397 = vmatprep.subr.bf16.mxu0 0
    %398 = vmatpush1.bf16.msra.mxu0 0
    %399 = vmatprep.subr.bf16.mxu0 0
    %400 = vmatpush1.bf16.msra.mxu0 0
    %401 = vmatprep.subr.bf16.mxu0 0
    %402 = vmatpush1.bf16.msra.mxu0 0
    %403 = vmatprep.subr.bf16.mxu0 0
    %404 = vmatpush1.bf16.msra.mxu0 0
    %405 = vmatprep.subr.bf16.mxu0 0
    %406 = vmatpush1.bf16.msra.mxu0 0
    %407 = vmatprep.subr.bf16.mxu0 0
    %408 = vmatpush1.bf16.msra.mxu0 0
    %409 = vmatprep.mubr.bf16.mxu0 0
    %410 = vmatmul.mubr.bf16.gmra.mrb[0].mxu0 %v375
    %v411 = vpop.f32.mrb[0].mxu0
    %v412 = vadd.f32 %v372, %v411
    %v413 = vpop.f32.mrb[0].mxu0
    %v414 = vpop.f32.mrb[0].mxu0
    %v415 = vadd.f32 %v372, %v414
    %v416 = vpop.f32.mrb[0].mxu0
    %417 = vdwg.mxu0
    %v418 = vadd.f32 %v327, %v412
    %v419 = vadd.f32 %v334, %v415
    %v420 = vxor.u32 %v418, 2147483648
    %v421 = vxor.u32 %v419, 2147483648
    %v422 = vmul.f32 %v420, 1.442695
    %v423 = vpow.pop %v422
    %v424 = vmul.f32 %v421, 1.442695
    %v425 = vpow.pop %v424
    %v426 = vadd.f32 %v423, 1.0
    %v427 = vadd.f32 %v425, 1.0
    %v428 = vrcp.pop %v426
    %v429 = vmul.f32 1.0, %v428
    %v430 = vrcp.pop %v427
    %v431 = vmul.f32 1.0, %v430
    %434 = vrot.lane.b32.xlu0 %v412, 64
    %v435 = vpop.permute.xlu0 %434
    %436 = vrot.lane.b32.xlu0 %v415, 64
    %v437 = vpop.permute.xlu0 %436
    %v440 = vmul.f32 %v429, %v435
    %v441 = vmul.f32 %v431, %v437
    %444 = vrot.lane.b32.xlu0 %v440, 64
    %v445 = vpop.permute.xlu0 %444
    %446 = vrot.lane.b32.xlu0 %v441, 64
    %v447 = vpop.permute.xlu0 %446
    %v450 = vadd.f32 %v327, %v445
    %v451 = vadd.f32 %v334, %v447
    %v452 = vtanh.pop %v450
    %v453 = vtanh.pop %v451
    %v454 = vsub.f32 1.0, %v429
    %v455 = vsub.f32 1.0, %v431
    %458 = vrot.lane.b32.xlu0 %v452, 96
    %v459 = vpop.permute.xlu0 %458
    %460 = vrot.lane.b32.xlu0 %v453, 96
    %v461 = vpop.permute.xlu0 %460
    %v464 = vmul.f32 %v454, %v459
    %v465 = vmul.f32 %v455, %v461
    %v466 = vmul.f32 %v429, 0.0
    %v467 = vmul.f32 %v431, 0.0
    %v468 = vadd.f32 %v464, %v466
    %v469 = vadd.f32 %v465, %v467
    %471 = vrot.lane.b32.xlu0 %v468, 96
    %v472 = vpop.permute.xlu0 %471
    %s474 = scalar_lea.vmem [#allocation2], 16
    %475 = vst.msk [vmem:[%s474] sm:$0xff] %vm335, %v472
    %477 = vrot.lane.b32.xlu0 %v469, 96
    %v478 = vpop.permute.xlu0 %477
    %s480 = scalar_lea.vmem [#allocation2], 136
    %481 = vst.msk [vmem:[%s480] sm:$0xff] %vm335, %v478
    %v482 = vpack.c.bf16 %v469, %v468
    %484 = vrot.lane.b32.xlu0 %v482, 96
    %v485 = vpop.permute.xlu0 %484
    %v487 = vsel %vm335, %v485, 0
    %489 = vmatprep.subr.bf16.mxu0 0
    %490 = vmatpush1.bf16.msra.mxu0 %v99
    %491 = vmatprep.subr.bf16.mxu0 0
    %492 = vmatpush1.bf16.msra.mxu0 %v100
    %493 = vmatprep.subr.bf16.mxu0 0
    %494 = vmatpush1.bf16.msra.mxu0 0
    %495 = vmatprep.subr.bf16.mxu0 0
    %496 = vmatpush1.bf16.msra.mxu0 0
    %497 = vmatprep.subr.bf16.mxu0 0
    %498 = vmatpush1.bf16.msra.mxu0 0
    %499 = vmatprep.subr.bf16.mxu0 0
    %500 = vmatpush1.bf16.msra.mxu0 0
    %501 = vmatprep.subr.bf16.mxu0 0
    %502 = vmatpush1.bf16.msra.mxu0 0
    %503 = vmatprep.subr.bf16.mxu0 0
    %504 = vmatpush1.bf16.msra.mxu0 0
    %505 = vmatprep.subr.bf16.mxu0 0
    %506 = vmatpush1.bf16.msra.mxu0 0
    %507 = vmatprep.subr.bf16.mxu0 0
    %508 = vmatpush1.bf16.msra.mxu0 0
    %509 = vmatprep.subr.bf16.mxu0 0
    %510 = vmatpush1.bf16.msra.mxu0 0
    %511 = vmatprep.subr.bf16.mxu0 0
    %512 = vmatpush1.bf16.msra.mxu0 0
    %513 = vmatprep.subr.bf16.mxu0 0
    %514 = vmatpush1.bf16.msra.mxu0 0
    %515 = vmatprep.subr.bf16.mxu0 0
    %516 = vmatpush1.bf16.msra.mxu0 0
    %517 = vmatprep.subr.bf16.mxu0 0
    %518 = vmatpush1.bf16.msra.mxu0 0
    %519 = vmatprep.subr.bf16.mxu0 0
    %520 = vmatpush1.bf16.msra.mxu0 0
    %521 = vmatprep.mubr.bf16.mxu0 0
    %522 = vmatmul.mubr.bf16.gmra.mrb[0].mxu0 %v487
    %v523 = vpop.f32.mrb[0].mxu0
    %v524 = vadd.f32 %v372, %v523
    %v525 = vpop.f32.mrb[0].mxu0
    %v526 = vpop.f32.mrb[0].mxu0
    %v527 = vadd.f32 %v372, %v526
    %v528 = vpop.f32.mrb[0].mxu0
    %529 = vdwg.mxu0
    %v530 = vadd.f32 %v328, %v524
    %v531 = vadd.f32 %v333, %v527
    %v532 = vxor.u32 %v530, 2147483648
    %v533 = vxor.u32 %v531, 2147483648
    %v534 = vmul.f32 %v532, 1.442695
    %v535 = vpow.pop %v534
    %v536 = vmul.f32 %v533, 1.442695
    %v537 = vpow.pop %v536
    %v538 = vadd.f32 %v535, 1.0
    %v539 = vadd.f32 %v537, 1.0
    %v540 = vrcp.pop %v538
    %v541 = vmul.f32 1.0, %v540
    %v542 = vrcp.pop %v539
    %v543 = vmul.f32 1.0, %v542
    %546 = vrot.lane.b32.xlu0 %v524, 64
    %v547 = vpop.permute.xlu0 %546
    %548 = vrot.lane.b32.xlu0 %v527, 64
    %v549 = vpop.permute.xlu0 %548
    %v552 = vmul.f32 %v541, %v547
    %v553 = vmul.f32 %v543, %v549
    %556 = vrot.lane.b32.xlu0 %v552, 64
    %v557 = vpop.permute.xlu0 %556
    %558 = vrot.lane.b32.xlu0 %v553, 64
    %v559 = vpop.permute.xlu0 %558
    %v562 = vadd.f32 %v328, %v557
    %v563 = vadd.f32 %v333, %v559
    %v564 = vtanh.pop %v562
    %v565 = vtanh.pop %v563
    %v566 = vsub.f32 1.0, %v541
    %v567 = vsub.f32 1.0, %v543
    %570 = vrot.lane.b32.xlu0 %v564, 96
    %v571 = vpop.permute.xlu0 %570
    %572 = vrot.lane.b32.xlu0 %v565, 96
    %v573 = vpop.permute.xlu0 %572
    %v576 = vmul.f32 %v566, %v571
    %v577 = vmul.f32 %v567, %v573
    %v578 = vmul.f32 %v541, %v468
    %v579 = vmul.f32 %v543, %v469
    %v580 = vadd.f32 %v576, %v578
    %v581 = vadd.f32 %v577, %v579
    %583 = vrot.lane.b32.xlu0 %v580, 96
    %v584 = vpop.permute.xlu0 %583
    %s586 = scalar_lea.vmem [#allocation2], 24
    %587 = vst.msk [vmem:[%s586] sm:$0xff] %vm335, %v584
    %589 = vrot.lane.b32.xlu0 %v581, 96
    %v590 = vpop.permute.xlu0 %589
    %s592 = scalar_lea.vmem [#allocation2], 128
    %593 = vst.msk [vmem:[%s592] sm:$0xff] %vm335, %v590
    %v594 = vpack.c.bf16 %v581, %v580
    %596 = vrot.lane.b32.xlu0 %v594, 96
    %v597 = vpop.permute.xlu0 %596
    %v599 = vsel %vm335, %v597, 0
    %601 = vmatprep.subr.bf16.mxu0 0
    %602 = vmatpush1.bf16.msra.mxu0 %v99
    %603 = vmatprep.subr.bf16.mxu0 0
    %604 = vmatpush1.bf16.msra.mxu0 %v100
    %605 = vmatprep.subr.bf16.mxu0 0
    %606 = vmatpush1.bf16.msra.mxu0 0
    %607 = vmatprep.subr.bf16.mxu0 0
    %608 = vmatpush1.bf16.msra.mxu0 0
    %609 = vmatprep.subr.bf16.mxu0 0
    %610 = vmatpush1.bf16.msra.mxu0 0
    %611 = vmatprep.subr.bf16.mxu0 0
    %612 = vmatpush1.bf16.msra.mxu0 0
    %613 = vmatprep.subr.bf16.mxu0 0
    %614 = vmatpush1.bf16.msra.mxu0 0
    %615 = vmatprep.subr.bf16.mxu0 0
    %616 = vmatpush1.bf16.msra.mxu0 0
    %617 = vmatprep.subr.bf16.mxu0 0
    %618 = vmatpush1.bf16.msra.mxu0 0
    %619 = vmatprep.subr.bf16.mxu0 0
    %620 = vmatpush1.bf16.msra.mxu0 0
    %621 = vmatprep.subr.bf16.mxu0 0
    %622 = vmatpush1.bf16.msra.mxu0 0
    %623 = vmatprep.subr.bf16.mxu0 0
    %624 = vmatpush1.bf16.msra.mxu0 0
    %625 = vmatprep.subr.bf16.mxu0 0
    %626 = vmatpush1.bf16.msra.mxu0 0
    %627 = vmatprep.subr.bf16.mxu0 0
    %628 = vmatpush1.bf16.msra.mxu0 0
    %629 = vmatprep.subr.bf16.mxu0 0
    %630 = vmatpush1.bf16.msra.mxu0 0
    %631 = vmatprep.subr.bf16.mxu0 0
    %632 = vmatpush1.bf16.msra.mxu0 0
    %633 = vmatprep.mubr.bf16.mxu0 0
    %634 = vmatmul.mubr.bf16.gmra.mrb[0].mxu0 %v599
    %v635 = vpop.f32.mrb[0].mxu0
    %v636 = vadd.f32 %v372, %v635
    %v637 = vpop.f32.mrb[0].mxu0
    %v638 = vpop.f32.mrb[0].mxu0
    %v639 = vadd.f32 %v372, %v638
    %v640 = vpop.f32.mrb[0].mxu0
    %641 = vdwg.mxu0
    %v642 = vadd.f32 %v329, %v636
    %v643 = vadd.f32 %v332, %v639
    %v644 = vxor.u32 %v642, 2147483648
    %v645 = vxor.u32 %v643, 2147483648
    %v646 = vmul.f32 %v644, 1.442695
    %v647 = vpow.pop %v646
    %v648 = vmul.f32 %v645, 1.442695
    %v649 = vpow.pop %v648
    %v650 = vadd.f32 %v647, 1.0
    %v651 = vadd.f32 %v649, 1.0
    %v652 = vrcp.pop %v650
    %v653 = vmul.f32 1.0, %v652
    %v654 = vrcp.pop %v651
    %v655 = vmul.f32 1.0, %v654
    %658 = vrot.lane.b32.xlu0 %v636, 64
    %v659 = vpop.permute.xlu0 %658
    %660 = vrot.lane.b32.xlu0 %v639, 64
    %v661 = vpop.permute.xlu0 %660
    %v664 = vmul.f32 %v653, %v659
    %v665 = vmul.f32 %v655, %v661
    %668 = vrot.lane.b32.xlu0 %v664, 64
    %v669 = vpop.permute.xlu0 %668
    %670 = vrot.lane.b32.xlu0 %v665, 64
    %v671 = vpop.permute.xlu0 %670
    %v674 = vadd.f32 %v329, %v669
    %v675 = vadd.f32 %v332, %v671
    %v676 = vtanh.pop %v674
    %v677 = vtanh.pop %v675
    %v678 = vsub.f32 1.0, %v653
    %v679 = vsub.f32 1.0, %v655
    %682 = vrot.lane.b32.xlu0 %v676, 96
    %v683 = vpop.permute.xlu0 %682
    %684 = vrot.lane.b32.xlu0 %v677, 96
    %v685 = vpop.permute.xlu0 %684
    %v688 = vmul.f32 %v678, %v683
    %v689 = vmul.f32 %v679, %v685
    %v690 = vmul.f32 %v653, %v580
    %v691 = vmul.f32 %v655, %v581
    %v692 = vadd.f32 %v688, %v690
    %v693 = vadd.f32 %v689, %v691
    %695 = vrot.lane.b32.xlu0 %v692, 96
    %v696 = vpop.permute.xlu0 %695
    %s698 = scalar_lea.vmem [#allocation2], 32
    %699 = vst.msk [vmem:[%s698] sm:$0xff] %vm335, %v696
    %701 = vrot.lane.b32.xlu0 %v693, 96
    %v702 = vpop.permute.xlu0 %701
    %s704 = scalar_lea.vmem [#allocation2], 120
    %705 = vst.msk [vmem:[%s704] sm:$0xff] %vm335, %v702
    %v706 = vpack.c.bf16 %v693, %v692
    %708 = vrot.lane.b32.xlu0 %v706, 96
    %v709 = vpop.permute.xlu0 %708
    %v711 = vsel %vm335, %v709, 0
    %713 = vmatprep.subr.bf16.mxu0 0
    %714 = vmatpush1.bf16.msra.mxu0 %v99
    %715 = vmatprep.subr.bf16.mxu0 0
    %716 = vmatpush1.bf16.msra.mxu0 %v100
    %717 = vmatprep.subr.bf16.mxu0 0
    %718 = vmatpush1.bf16.msra.mxu0 0
    %719 = vmatprep.subr.bf16.mxu0 0
    %720 = vmatpush1.bf16.msra.mxu0 0
    %721 = vmatprep.subr.bf16.mxu0 0
    %722 = vmatpush1.bf16.msra.mxu0 0
    %723 = vmatprep.subr.bf16.mxu0 0
    %724 = vmatpush1.bf16.msra.mxu0 0
    %725 = vmatprep.subr.bf16.mxu0 0
    %726 = vmatpush1.bf16.msra.mxu0 0
    %727 = vmatprep.subr.bf16.mxu0 0
    %728 = vmatpush1.bf16.msra.mxu0 0
    %729 = vmatprep.subr.bf16.mxu0 0
    %730 = vmatpush1.bf16.msra.mxu0 0
    %731 = vmatprep.subr.bf16.mxu0 0
    %732 = vmatpush1.bf16.msra.mxu0 0
    %733 = vmatprep.subr.bf16.mxu0 0
    %734 = vmatpush1.bf16.msra.mxu0 0
    %735 = vmatprep.subr.bf16.mxu0 0
    %736 = vmatpush1.bf16.msra.mxu0 0
    %737 = vmatprep.subr.bf16.mxu0 0
    %738 = vmatpush1.bf16.msra.mxu0 0
    %739 = vmatprep.subr.bf16.mxu0 0
    %740 = vmatpush1.bf16.msra.mxu0 0
    %741 = vmatprep.subr.bf16.mxu0 0
    %742 = vmatpush1.bf16.msra.mxu0 0
    %743 = vmatprep.subr.bf16.mxu0 0
    %744 = vmatpush1.bf16.msra.mxu0 0
    %745 = vmatprep.mubr.bf16.mxu0 0
    %746 = vmatmul.mubr.bf16.gmra.mrb[0].mxu0 %v711
    %v747 = vpop.f32.mrb[0].mxu0
    %v748 = vadd.f32 %v372, %v747
    %v749 = vpop.f32.mrb[0].mxu0
    %v750 = vpop.f32.mrb[0].mxu0
    %v751 = vadd.f32 %v372, %v750
    %v752 = vpop.f32.mrb[0].mxu0
    %753 = vdwg.mxu0
    %v754 = vadd.f32 %v330, %v748
    %v755 = vadd.f32 %v331, %v751
    %v756 = vxor.u32 %v754, 2147483648
    %v757 = vxor.u32 %v755, 2147483648
    %v758 = vmul.f32 %v756, 1.442695
    %v759 = vpow.pop %v758
    %v760 = vmul.f32 %v757, 1.442695
    %v761 = vpow.pop %v760
    %v762 = vadd.f32 %v759, 1.0
    %v763 = vadd.f32 %v761, 1.0
    %v764 = vrcp.pop %v762
    %v765 = vmul.f32 1.0, %v764
    %v766 = vrcp.pop %v763
    %v767 = vmul.f32 1.0, %v766
    %770 = vrot.lane.b32.xlu0 %v748, 64
    %v771 = vpop.permute.xlu0 %770
    %772 = vrot.lane.b32.xlu0 %v751, 64
    %v773 = vpop.permute.xlu0 %772
    %v776 = vmul.f32 %v765, %v771
    %v777 = vmul.f32 %v767, %v773
    %780 = vrot.lane.b32.xlu0 %v776, 64
    %v781 = vpop.permute.xlu0 %780
    %782 = vrot.lane.b32.xlu0 %v777, 64
    %v783 = vpop.permute.xlu0 %782
    %v786 = vadd.f32 %v330, %v781
    %v787 = vadd.f32 %v331, %v783
    %v788 = vtanh.pop %v786
    %v789 = vtanh.pop %v787
    %v790 = vsub.f32 1.0, %v765
    %v791 = vsub.f32 1.0, %v767
    %794 = vrot.lane.b32.xlu0 %v788, 96
    %v795 = vpop.permute.xlu0 %794
    %796 = vrot.lane.b32.xlu0 %v789, 96
    %v797 = vpop.permute.xlu0 %796
    %v800 = vmul.f32 %v790, %v795
    %v801 = vmul.f32 %v791, %v797
    %v802 = vmul.f32 %v765, %v692
    %v803 = vmul.f32 %v767, %v693
    %v804 = vadd.f32 %v800, %v802
    %v805 = vadd.f32 %v801, %v803
    %807 = vrot.lane.b32.xlu0 %v804, 96
    %v808 = vpop.permute.xlu0 %807
    %s810 = scalar_lea.vmem [#allocation2], 40
    %811 = vst.msk [vmem:[%s810] sm:$0xff] %vm335, %v808
    %813 = vrot.lane.b32.xlu0 %v805, 96
    %v814 = vpop.permute.xlu0 %813
    %s816 = scalar_lea.vmem [#allocation2], 112
    %817 = vst.msk [vmem:[%s816] sm:$0xff] %vm335, %v814
    %v818 = vpack.c.bf16 %v805, %v804
    %820 = vrot.lane.b32.xlu0 %v818, 96
    %v821 = vpop.permute.xlu0 %820
    %v823 = vsel %vm335, %v821, 0
    %825 = vmatprep.subr.bf16.mxu0 0
    %826 = vmatpush1.bf16.msra.mxu0 %v99
    %827 = vmatprep.subr.bf16.mxu0 0
    %828 = vmatpush1.bf16.msra.mxu0 %v100
    %829 = vmatprep.subr.bf16.mxu0 0
    %830 = vmatpush1.bf16.msra.mxu0 0
    %831 = vmatprep.subr.bf16.mxu0 0
    %832 = vmatpush1.bf16.msra.mxu0 0
    %833 = vmatprep.subr.bf16.mxu0 0
    %834 = vmatpush1.bf16.msra.mxu0 0
    %835 = vmatprep.subr.bf16.mxu0 0
    %836 = vmatpush1.bf16.msra.mxu0 0
    %837 = vmatprep.subr.bf16.mxu0 0
    %838 = vmatpush1.bf16.msra.mxu0 0
    %839 = vmatprep.subr.bf16.mxu0 0
    %840 = vmatpush1.bf16.msra.mxu0 0
    %841 = vmatprep.subr.bf16.mxu0 0
    %842 = vmatpush1.bf16.msra.mxu0 0
    %843 = vmatprep.subr.bf16.mxu0 0
    %844 = vmatpush1.bf16.msra.mxu0 0
    %845 = vmatprep.subr.bf16.mxu0 0
    %846 = vmatpush1.bf16.msra.mxu0 0
    %847 = vmatprep.subr.bf16.mxu0 0
    %848 = vmatpush1.bf16.msra.mxu0 0
    %849 = vmatprep.subr.bf16.mxu0 0
    %850 = vmatpush1.bf16.msra.mxu0 0
    %851 = vmatprep.subr.bf16.mxu0 0
    %852 = vmatpush1.bf16.msra.mxu0 0
    %853 = vmatprep.subr.bf16.mxu0 0
    %854 = vmatpush1.bf16.msra.mxu0 0
    %855 = vmatprep.subr.bf16.mxu0 0
    %856 = vmatpush1.bf16.msra.mxu0 0
    %857 = vmatprep.mubr.bf16.mxu0 0
    %858 = vmatmul.mubr.bf16.gmra.mrb[0].mxu0 %v823
    %v859 = vpop.f32.mrb[0].mxu0
    %v860 = vadd.f32 %v372, %v859
    %v861 = vpop.f32.mrb[0].mxu0
    %v862 = vpop.f32.mrb[0].mxu0
    %v863 = vadd.f32 %v372, %v862
    %v864 = vpop.f32.mrb[0].mxu0
    %865 = vdwg.mxu0
    %v866 = vadd.f32 %v331, %v860
    %v867 = vadd.f32 %v330, %v863
    %v868 = vxor.u32 %v866, 2147483648
    %v869 = vxor.u32 %v867, 2147483648
    %v870 = vmul.f32 %v868, 1.442695
    %v871 = vpow.pop %v870
    %v872 = vmul.f32 %v869, 1.442695
    %v873 = vpow.pop %v872
    %v874 = vadd.f32 %v871, 1.0
    %v875 = vadd.f32 %v873, 1.0
    %v876 = vrcp.pop %v874
    %v877 = vmul.f32 1.0, %v876
    %v878 = vrcp.pop %v875
    %v879 = vmul.f32 1.0, %v878
    %882 = vrot.lane.b32.xlu0 %v860, 64
    %v883 = vpop.permute.xlu0 %882
    %884 = vrot.lane.b32.xlu0 %v863, 64
    %v885 = vpop.permute.xlu0 %884
    %v888 = vmul.f32 %v877, %v883
    %v889 = vmul.f32 %v879, %v885
    %892 = vrot.lane.b32.xlu0 %v888, 64
    %v893 = vpop.permute.xlu0 %892
    %894 = vrot.lane.b32.xlu0 %v889, 64
    %v895 = vpop.permute.xlu0 %894
    %v898 = vadd.f32 %v331, %v893
    %v899 = vadd.f32 %v330, %v895
    %v900 = vtanh.pop %v898
    %v901 = vtanh.pop %v899
    %v902 = vsub.f32 1.0, %v877
    %v903 = vsub.f32 1.0, %v879
    %906 = vrot.lane.b32.xlu0 %v900, 96
    %v907 = vpop.permute.xlu0 %906
    %908 = vrot.lane.b32.xlu0 %v901, 96
    %v909 = vpop.permute.xlu0 %908
    %v912 = vmul.f32 %v902, %v907
    %v913 = vmul.f32 %v903, %v909
    %v914 = vmul.f32 %v877, %v804
    %v915 = vmul.f32 %v879, %v805
    %v916 = vadd.f32 %v912, %v914
    %v917 = vadd.f32 %v913, %v915
    %919 = vrot.lane.b32.xlu0 %v916, 96
    %v920 = vpop.permute.xlu0 %919
    %s922 = scalar_lea.vmem [#allocation2], 48
    %923 = vst.msk [vmem:[%s922] sm:$0xff] %vm335, %v920
    %925 = vrot.lane.b32.xlu0 %v917, 96
    %v926 = vpop.permute.xlu0 %925
    %s928 = scalar_lea.vmem [#allocation2], 104
    %929 = vst.msk [vmem:[%s928] sm:$0xff] %vm335, %v926
    %v930 = vpack.c.bf16 %v917, %v916
    %932 = vrot.lane.b32.xlu0 %v930, 96
    %v933 = vpop.permute.xlu0 %932
    %v935 = vsel %vm335, %v933, 0
    %937 = vmatprep.subr.bf16.mxu0 0
    %938 = vmatpush1.bf16.msra.mxu0 %v99
    %939 = vmatprep.subr.bf16.mxu0 0
    %940 = vmatpush1.bf16.msra.mxu0 %v100
    %941 = vmatprep.subr.bf16.mxu0 0
    %942 = vmatpush1.bf16.msra.mxu0 0
    %943 = vmatprep.subr.bf16.mxu0 0
    %944 = vmatpush1.bf16.msra.mxu0 0
    %945 = vmatprep.subr.bf16.mxu0 0
    %946 = vmatpush1.bf16.msra.mxu0 0
    %947 = vmatprep.subr.bf16.mxu0 0
    %948 = vmatpush1.bf16.msra.mxu0 0
    %949 = vmatprep.subr.bf16.mxu0 0
    %950 = vmatpush1.bf16.msra.mxu0 0
    %951 = vmatprep.subr.bf16.mxu0 0
    %952 = vmatpush1.bf16.msra.mxu0 0
    %953 = vmatprep.subr.bf16.mxu0 0
    %954 = vmatpush1.bf16.msra.mxu0 0
    %955 = vmatprep.subr.bf16.mxu0 0
    %956 = vmatpush1.bf16.msra.mxu0 0
    %957 = vmatprep.subr.bf16.mxu0 0
    %958 = vmatpush1.bf16.msra.mxu0 0
    %959 = vmatprep.subr.bf16.mxu0 0
    %960 = vmatpush1.bf16.msra.mxu0 0
    %961 = vmatprep.subr.bf16.mxu0 0
    %962 = vmatpush1.bf16.msra.mxu0 0
    %963 = vmatprep.subr.bf16.mxu0 0
    %964 = vmatpush1.bf16.msra.mxu0 0
    %965 = vmatprep.subr.bf16.mxu0 0
    %966 = vmatpush1.bf16.msra.mxu0 0
    %967 = vmatprep.subr.bf16.mxu0 0
    %968 = vmatpush1.bf16.msra.mxu0 0
    %969 = vmatprep.mubr.bf16.mxu0 0
    %970 = vmatmul.mubr.bf16.gmra.mrb[0].mxu0 %v935
    %v971 = vpop.f32.mrb[0].mxu0
    %v972 = vadd.f32 %v372, %v971
    %v973 = vpop.f32.mrb[0].mxu0
    %v974 = vpop.f32.mrb[0].mxu0
    %v975 = vadd.f32 %v372, %v974
    %v976 = vpop.f32.mrb[0].mxu0
    %977 = vdwg.mxu0
    %v978 = vadd.f32 %v332, %v972
    %v979 = vadd.f32 %v329, %v975
    %v980 = vxor.u32 %v978, 2147483648
    %v981 = vxor.u32 %v979, 2147483648
    %v982 = vmul.f32 %v980, 1.442695
    %v983 = vpow.pop %v982
    %v984 = vmul.f32 %v981, 1.442695
    %v985 = vpow.pop %v984
    %v986 = vadd.f32 %v983, 1.0
    %v987 = vadd.f32 %v985, 1.0
    %v988 = vrcp.pop %v986
    %v989 = vmul.f32 1.0, %v988
    %v990 = vrcp.pop %v987
    %v991 = vmul.f32 1.0, %v990
    %994 = vrot.lane.b32.xlu0 %v972, 64
    %v995 = vpop.permute.xlu0 %994
    %996 = vrot.lane.b32.xlu0 %v975, 64
    %v997 = vpop.permute.xlu0 %996
    %v1000 = vmul.f32 %v989, %v995
    %v1001 = vmul.f32 %v991, %v997
    %1004 = vrot.lane.b32.xlu0 %v1000, 64
    %v1005 = vpop.permute.xlu0 %1004
    %1006 = vrot.lane.b32.xlu0 %v1001, 64
    %v1007 = vpop.permute.xlu0 %1006
    %v1010 = vadd.f32 %v332, %v1005
    %v1011 = vadd.f32 %v329, %v1007
    %v1012 = vtanh.pop %v1010
    %v1013 = vtanh.pop %v1011
    %v1014 = vsub.f32 1.0, %v989
    %v1015 = vsub.f32 1.0, %v991
    %1018 = vrot.lane.b32.xlu0 %v1012, 96
    %v1019 = vpop.permute.xlu0 %1018
    %1020 = vrot.lane.b32.xlu0 %v1013, 96
    %v1021 = vpop.permute.xlu0 %1020
    %v1024 = vmul.f32 %v1014, %v1019
    %v1025 = vmul.f32 %v1015, %v1021
    %v1026 = vmul.f32 %v989, %v916
    %v1027 = vmul.f32 %v991, %v917
    %v1028 = vadd.f32 %v1024, %v1026
    %v1029 = vadd.f32 %v1025, %v1027
    %1031 = vrot.lane.b32.xlu0 %v1028, 96
    %v1032 = vpop.permute.xlu0 %1031
    %s1034 = scalar_lea.vmem [#allocation2], 56
    %1035 = vst.msk [vmem:[%s1034] sm:$0xff] %vm335, %v1032
    %1037 = vrot.lane.b32.xlu0 %v1029, 96
    %v1038 = vpop.permute.xlu0 %1037
    %s1040 = scalar_lea.vmem [#allocation2], 96
    %1041 = vst.msk [vmem:[%s1040] sm:$0xff] %vm335, %v1038
    %v1042 = vpack.c.bf16 %v1029, %v1028
    %1044 = vrot.lane.b32.xlu0 %v1042, 96
    %v1045 = vpop.permute.xlu0 %1044
    %v1047 = vsel %vm335, %v1045, 0
    %1049 = vmatprep.subr.bf16.mxu0 0
    %1050 = vmatpush1.bf16.msra.mxu0 %v99
    %1051 = vmatprep.subr.bf16.mxu0 0
    %1052 = vmatpush1.bf16.msra.mxu0 %v100
    %1053 = vmatprep.subr.bf16.mxu0 0
    %1054 = vmatpush1.bf16.msra.mxu0 0
    %1055 = vmatprep.subr.bf16.mxu0 0
    %1056 = vmatpush1.bf16.msra.mxu0 0
    %1057 = vmatprep.subr.bf16.mxu0 0
    %1058 = vmatpush1.bf16.msra.mxu0 0
    %1059 = vmatprep.subr.bf16.mxu0 0
    %1060 = vmatpush1.bf16.msra.mxu0 0
    %1061 = vmatprep.subr.bf16.mxu0 0
    %1062 = vmatpush1.bf16.msra.mxu0 0
    %1063 = vmatprep.subr.bf16.mxu0 0
    %1064 = vmatpush1.bf16.msra.mxu0 0
    %1065 = vmatprep.subr.bf16.mxu0 0
    %1066 = vmatpush1.bf16.msra.mxu0 0
    %1067 = vmatprep.subr.bf16.mxu0 0
    %1068 = vmatpush1.bf16.msra.mxu0 0
    %1069 = vmatprep.subr.bf16.mxu0 0
    %1070 = vmatpush1.bf16.msra.mxu0 0
    %1071 = vmatprep.subr.bf16.mxu0 0
    %1072 = vmatpush1.bf16.msra.mxu0 0
    %1073 = vmatprep.subr.bf16.mxu0 0
    %1074 = vmatpush1.bf16.msra.mxu0 0
    %1075 = vmatprep.subr.bf16.mxu0 0
    %1076 = vmatpush1.bf16.msra.mxu0 0
    %1077 = vmatprep.subr.bf16.mxu0 0
    %1078 = vmatpush1.bf16.msra.mxu0 0
    %1079 = vmatprep.subr.bf16.mxu0 0
    %1080 = vmatpush1.bf16.msra.mxu0 0
    %1081 = vmatprep.mubr.bf16.mxu0 0
    %1082 = vmatmul.mubr.bf16.gmra.mrb[0].mxu0 %v1047
    %v1083 = vpop.f32.mrb[0].mxu0
    %v1084 = vadd.f32 %v372, %v1083
    %v1085 = vpop.f32.mrb[0].mxu0
    %v1086 = vpop.f32.mrb[0].mxu0
    %v1087 = vadd.f32 %v372, %v1086
    %v1088 = vpop.f32.mrb[0].mxu0
    %1089 = vdwg.mxu0
    %v1090 = vadd.f32 %v333, %v1084
    %v1091 = vadd.f32 %v328, %v1087
    %v1092 = vxor.u32 %v1090, 2147483648
    %v1093 = vxor.u32 %v1091, 2147483648
    %v1094 = vmul.f32 %v1092, 1.442695
    %v1095 = vpow.pop %v1094
    %v1096 = vmul.f32 %v1093, 1.442695
    %v1097 = vpow.pop %v1096
    %v1098 = vadd.f32 %v1095, 1.0
    %v1099 = vadd.f32 %v1097, 1.0
    %v1100 = vrcp.pop %v1098
    %v1101 = vmul.f32 1.0, %v1100
    %v1102 = vrcp.pop %v1099
    %v1103 = vmul.f32 1.0, %v1102
    %1106 = vrot.lane.b32.xlu0 %v1084, 64
    %v1107 = vpop.permute.xlu0 %1106
    %1108 = vrot.lane.b32.xlu0 %v1087, 64
    %v1109 = vpop.permute.xlu0 %1108
    %v1112 = vmul.f32 %v1101, %v1107
    %v1113 = vmul.f32 %v1103, %v1109
    %1116 = vrot.lane.b32.xlu0 %v1112, 64
    %v1117 = vpop.permute.xlu0 %1116
    %1118 = vrot.lane.b32.xlu0 %v1113, 64
    %v1119 = vpop.permute.xlu0 %1118
    %v1122 = vadd.f32 %v333, %v1117
    %v1123 = vadd.f32 %v328, %v1119
    %v1124 = vtanh.pop %v1122
    %v1125 = vtanh.pop %v1123
    %v1126 = vsub.f32 1.0, %v1101
    %v1127 = vsub.f32 1.0, %v1103
    %1130 = vrot.lane.b32.xlu0 %v1124, 96
    %v1131 = vpop.permute.xlu0 %1130
    %1132 = vrot.lane.b32.xlu0 %v1125, 96
    %v1133 = vpop.permute.xlu0 %1132
    %v1136 = vmul.f32 %v1126, %v1131
    %v1137 = vmul.f32 %v1127, %v1133
    %v1138 = vmul.f32 %v1101, %v1028
    %v1139 = vmul.f32 %v1103, %v1029
    %v1140 = vadd.f32 %v1136, %v1138
    %v1141 = vadd.f32 %v1137, %v1139
    %1143 = vrot.lane.b32.xlu0 %v1140, 96
    %v1144 = vpop.permute.xlu0 %1143
    %s1146 = scalar_lea.vmem [#allocation2], 64
    %1147 = vst.msk [vmem:[%s1146] sm:$0xff] %vm335, %v1144
    %1149 = vrot.lane.b32.xlu0 %v1141, 96
    %v1150 = vpop.permute.xlu0 %1149
    %s1152 = scalar_lea.vmem [#allocation2], 88
    %1153 = vst.msk [vmem:[%s1152] sm:$0xff] %vm335, %v1150
    %v1154 = vpack.c.bf16 %v1141, %v1140
    %1156 = vrot.lane.b32.xlu0 %v1154, 96
    %v1157 = vpop.permute.xlu0 %1156
    %v1159 = vsel %vm335, %v1157, 0
    %1161 = vmatprep.subr.bf16.mxu0 0
    %1162 = vmatpush1.bf16.msra.mxu0 %v99
    %1163 = vmatprep.subr.bf16.mxu0 0
    %1164 = vmatpush1.bf16.msra.mxu0 %v100
    %1165 = vmatprep.subr.bf16.mxu0 0
    %1166 = vmatpush1.bf16.msra.mxu0 0
    %1167 = vmatprep.subr.bf16.mxu0 0
    %1168 = vmatpush1.bf16.msra.mxu0 0
    %1169 = vmatprep.subr.bf16.mxu0 0
    %1170 = vmatpush1.bf16.msra.mxu0 0
    %1171 = vmatprep.subr.bf16.mxu0 0
    %1172 = vmatpush1.bf16.msra.mxu0 0
    %1173 = vmatprep.subr.bf16.mxu0 0
    %1174 = vmatpush1.bf16.msra.mxu0 0
    %1175 = vmatprep.subr.bf16.mxu0 0
    %1176 = vmatpush1.bf16.msra.mxu0 0
    %1177 = vmatprep.subr.bf16.mxu0 0
    %1178 = vmatpush1.bf16.msra.mxu0 0
    %1179 = vmatprep.subr.bf16.mxu0 0
    %1180 = vmatpush1.bf16.msra.mxu0 0
    %1181 = vmatprep.subr.bf16.mxu0 0
    %1182 = vmatpush1.bf16.msra.mxu0 0
    %1183 = vmatprep.subr.bf16.mxu0 0
    %1184 = vmatpush1.bf16.msra.mxu0 0
    %1185 = vmatprep.subr.bf16.mxu0 0
    %1186 = vmatpush1.bf16.msra.mxu0 0
    %1187 = vmatprep.subr.bf16.mxu0 0
    %1188 = vmatpush1.bf16.msra.mxu0 0
    %1189 = vmatprep.subr.bf16.mxu0 0
    %1190 = vmatpush1.bf16.msra.mxu0 0
    %1191 = vmatprep.subr.bf16.mxu0 0
    %1192 = vmatpush1.bf16.msra.mxu0 0
    %1193 = vmatprep.mubr.bf16.mxu0 0
    %1194 = vmatmul.mubr.bf16.gmra.mrb[0].mxu0 %v1159
    %v1195 = vpop.f32.mrb[0].mxu0
    %v1196 = vadd.f32 %v372, %v1195
    %v1197 = vpop.f32.mrb[0].mxu0
    %v1198 = vpop.f32.mrb[0].mxu0
    %v1199 = vadd.f32 %v372, %v1198
    %v1200 = vpop.f32.mrb[0].mxu0
    %1201 = vdwg.mxu0
    %v1202 = vadd.f32 %v334, %v1196
    %v1203 = vadd.f32 %v327, %v1199
    %v1204 = vxor.u32 %v1202, 2147483648
    %v1205 = vxor.u32 %v1203, 2147483648
    %v1206 = vmul.f32 %v1204, 1.442695
    %v1207 = vpow.pop %v1206
    %v1208 = vmul.f32 %v1205, 1.442695
    %v1209 = vpow.pop %v1208
    %v1210 = vadd.f32 %v1207, 1.0
    %v1211 = vadd.f32 %v1209, 1.0
    %v1212 = vrcp.pop %v1210
    %v1213 = vmul.f32 1.0, %v1212
    %v1214 = vrcp.pop %v1211
    %v1215 = vmul.f32 1.0, %v1214
    %1218 = vrot.lane.b32.xlu0 %v1196, 64
    %v1219 = vpop.permute.xlu0 %1218
    %1220 = vrot.lane.b32.xlu0 %v1199, 64
    %v1221 = vpop.permute.xlu0 %1220
    %v1224 = vmul.f32 %v1213, %v1219
    %v1225 = vmul.f32 %v1215, %v1221
    %1228 = vrot.lane.b32.xlu0 %v1224, 64
    %v1229 = vpop.permute.xlu0 %1228
    %1230 = vrot.lane.b32.xlu0 %v1225, 64
    %v1231 = vpop.permute.xlu0 %1230
    %v1234 = vadd.f32 %v334, %v1229
    %v1235 = vadd.f32 %v327, %v1231
    %v1236 = vtanh.pop %v1234
    %v1237 = vtanh.pop %v1235
    %v1238 = vsub.f32 1.0, %v1213
    %v1239 = vsub.f32 1.0, %v1215
    %1242 = vrot.lane.b32.xlu0 %v1236, 96
    %v1243 = vpop.permute.xlu0 %1242
    %1244 = vrot.lane.b32.xlu0 %v1237, 96
    %v1245 = vpop.permute.xlu0 %1244
    %v1248 = vmul.f32 %v1238, %v1243
    %v1249 = vmul.f32 %v1239, %v1245
    %v1250 = vmul.f32 %v1213, %v1140
    %v1251 = vmul.f32 %v1215, %v1141
    %v1252 = vadd.f32 %v1248, %v1250
    %v1253 = vadd.f32 %v1249, %v1251
    %1255 = vrot.lane.b32.xlu0 %v1252, 96
    %v1256 = vpop.permute.xlu0 %1255
    %s1258 = scalar_lea.vmem [#allocation2], 72
    %1259 = vst.msk [vmem:[%s1258] sm:$0xff] %vm335, %v1256
    %1261 = vrot.lane.b32.xlu0 %v1253, 96
    %v1262 = vpop.permute.xlu0 %1261
    %s1264 = scalar_lea.vmem [#allocation2], 80
    %1265 = vst.msk [vmem:[%s1264] sm:$0xff] %vm335, %v1262
    %v1266 = vld [vmem:[#allocation2] sm:$0xff]
    %v1267 = vld [vmem:[#allocation2 + $0x8] sm:$0xff]
    %v1268 = vld [vmem:[#allocation2 + $0x10] sm:$0xff]
    %v1269 = vld [vmem:[#allocation2 + $0x18] sm:$0xff]
    %v1270 = vld [vmem:[#allocation2 + $0x20] sm:$0xff]
    %v1271 = vld [vmem:[#allocation2 + $0x28] sm:$0xff]
    %v1272 = vld [vmem:[#allocation2 + $0x30] sm:$0xff]
    %v1273 = vld [vmem:[#allocation2 + $0x38] sm:$0xff]
    %v1274 = vld [vmem:[#allocation2 + $0x40] sm:$0xff]
    %v1275 = vld [vmem:[#allocation2 + $0x48] sm:$0xff]
    %v1276 = vld [vmem:[#allocation2 + $0x50] sm:$0xff]
    %v1277 = vld [vmem:[#allocation2 + $0x58] sm:$0xff]
    %v1278 = vld [vmem:[#allocation2 + $0x60] sm:$0xff]
    %v1279 = vld [vmem:[#allocation2 + $0x68] sm:$0xff]
    %v1280 = vld [vmem:[#allocation2 + $0x70] sm:$0xff]
    %v1281 = vld [vmem:[#allocation2 + $0x78] sm:$0xff]
    %v1282 = vld [vmem:[#allocation2 + $0x80] sm:$0xff]
    %v1283 = vld [vmem:[#allocation2 + $0x88] sm:$0xff]
    %v1284 = vld [vmem:[#allocation2 + $0x90] sm:$0xff]
    %v1285 = vld [vmem:[#allocation2 + $0x98] sm:$0xff]
    %v1286 = vld [vmem:[#allocation2 + $0xa0] sm:$0xff]
    %v1287 = vld [vmem:[#allocation2 + $0xa8] sm:$0xff]
    %v1288 = vld [vmem:[#allocation2 + $0xb0] sm:$0xff]
    %v1289 = vld [vmem:[#allocation2 + $0xb8] sm:$0xff]
    %v1290 = vld [vmem:[#allocation2 + $0xc0] sm:$0xff]
    %v1291 = vld [vmem:[#allocation2 + $0xc8] sm:$0xff]
    %v1292 = vld [vmem:[#allocation2 + $0xd0] sm:$0xff]
    %v1293 = vld [vmem:[#allocation2 + $0xd8] sm:$0xff]
    %v1294 = vld [vmem:[#allocation2 + $0xe0] sm:$0xff]
    %1319 = vrot.lane.b32.xlu0 %v1267, 32
    %v1320 = vpop.permute.xlu0 %1319
    %1321 = vrot.lane.b32.xlu0 %v1268, 32
    %v1322 = vpop.permute.xlu0 %1321
    %1323 = vrot.lane.b32.xlu0 %v1269, 32
    %v1324 = vpop.permute.xlu0 %1323
    %1325 = vrot.lane.b32.xlu0 %v1270, 32
    %v1326 = vpop.permute.xlu0 %1325
    %1327 = vrot.lane.b32.xlu0 %v1271, 32
    %v1328 = vpop.permute.xlu0 %1327
    %1329 = vrot.lane.b32.xlu0 %v1272, 32
    %v1330 = vpop.permute.xlu0 %1329
    %1331 = vrot.lane.b32.xlu0 %v1273, 32
    %v1332 = vpop.permute.xlu0 %1331
    %1333 = vrot.lane.b32.xlu0 %v1274, 32
    %v1334 = vpop.permute.xlu0 %1333
    %1335 = vrot.lane.b32.xlu0 %v1275, 32
    %v1336 = vpop.permute.xlu0 %1335
    %1337 = vrot.lane.b32.xlu0 %v1276, 32
    %v1338 = vpop.permute.xlu0 %1337
    %1339 = vrot.lane.b32.xlu0 %v1277, 32
    %v1340 = vpop.permute.xlu0 %1339
    %1341 = vrot.lane.b32.xlu0 %v1278, 32
    %v1342 = vpop.permute.xlu0 %1341
    %1343 = vrot.lane.b32.xlu0 %v1279, 32
    %v1344 = vpop.permute.xlu0 %1343
    %1345 = vrot.lane.b32.xlu0 %v1280, 32
    %v1346 = vpop.permute.xlu0 %1345
    %1347 = vrot.lane.b32.xlu0 %v1281, 32
    %v1348 = vpop.permute.xlu0 %1347
    %1349 = vrot.lane.b32.xlu0 %v1282, 32
    %v1350 = vpop.permute.xlu0 %1349
    %1351 = vrot.lane.b32.xlu0 %v1283, 32
    %v1352 = vpop.permute.xlu0 %1351
    %1353 = vrot.lane.b32.xlu0 %v1284, 32
    %v1354 = vpop.permute.xlu0 %1353
    %1355 = vrot.lane.b32.xlu0 %v1285, 32
    %v1356 = vpop.permute.xlu0 %1355
    %1357 = vrot.lane.b32.xlu0 %v1286, 32
    %v1358 = vpop.permute.xlu0 %1357
    %1359 = vrot.lane.b32.xlu0 %v1287, 32
    %v1360 = vpop.permute.xlu0 %1359
    %1361 = vrot.lane.b32.xlu0 %v1288, 32
    %v1362 = vpop.permute.xlu0 %1361
    %1363 = vrot.lane.b32.xlu0 %v1289, 32
    %v1364 = vpop.permute.xlu0 %1363
    %1365 = vrot.lane.b32.xlu0 %v1290, 32
    %v1366 = vpop.permute.xlu0 %1365
    %1392 = vrot.lane.b32.xlu0 %v1268, 64
    %v1393 = vpop.permute.xlu0 %1392
    %1394 = vrot.lane.b32.xlu0 %v1269, 64
    %v1395 = vpop.permute.xlu0 %1394
    %1396 = vrot.lane.b32.xlu0 %v1270, 64
    %v1397 = vpop.permute.xlu0 %1396
    %1398 = vrot.lane.b32.xlu0 %v1271, 64
    %v1399 = vpop.permute.xlu0 %1398
    %1400 = vrot.lane.b32.xlu0 %v1272, 64
    %v1401 = vpop.permute.xlu0 %1400
    %1402 = vrot.lane.b32.xlu0 %v1273, 64
    %v1403 = vpop.permute.xlu0 %1402
    %1404 = vrot.lane.b32.xlu0 %v1274, 64
    %v1405 = vpop.permute.xlu0 %1404
    %1406 = vrot.lane.b32.xlu0 %v1275, 64
    %v1407 = vpop.permute.xlu0 %1406
    %1408 = vrot.lane.b32.xlu0 %v1276, 64
    %v1409 = vpop.permute.xlu0 %1408
    %1410 = vrot.lane.b32.xlu0 %v1277, 64
    %v1411 = vpop.permute.xlu0 %1410
    %1412 = vrot.lane.b32.xlu0 %v1278, 64
    %v1413 = vpop.permute.xlu0 %1412
    %1414 = vrot.lane.b32.xlu0 %v1279, 64
    %v1415 = vpop.permute.xlu0 %1414
    %1416 = vrot.lane.b32.xlu0 %v1280, 64
    %v1417 = vpop.permute.xlu0 %1416
    %1418 = vrot.lane.b32.xlu0 %v1281, 64
    %v1419 = vpop.permute.xlu0 %1418
    %1420 = vrot.lane.b32.xlu0 %v1282, 64
    %v1421 = vpop.permute.xlu0 %1420
    %1422 = vrot.lane.b32.xlu0 %v1283, 64
    %v1423 = vpop.permute.xlu0 %1422
    %1424 = vrot.lane.b32.xlu0 %v1284, 64
    %v1425 = vpop.permute.xlu0 %1424
    %1426 = vrot.lane.b32.xlu0 %v1285, 64
    %v1427 = vpop.permute.xlu0 %1426
    %1428 = vrot.lane.b32.xlu0 %v1286, 64
    %v1429 = vpop.permute.xlu0 %1428
    %1430 = vrot.lane.b32.xlu0 %v1287, 64
    %v1431 = vpop.permute.xlu0 %1430
    %1432 = vrot.lane.b32.xlu0 %v1288, 64
    %v1433 = vpop.permute.xlu0 %1432
    %1434 = vrot.lane.b32.xlu0 %v1289, 64
    %v1435 = vpop.permute.xlu0 %1434
    %1436 = vrot.lane.b32.xlu0 %v1290, 64
    %v1437 = vpop.permute.xlu0 %1436
    %1438 = vrot.lane.b32.xlu0 %v1291, 64
    %v1439 = vpop.permute.xlu0 %1438
    %1465 = vrot.lane.b32.xlu0 %v1269, 96
    %v1466 = vpop.permute.xlu0 %1465
    %1467 = vrot.lane.b32.xlu0 %v1270, 96
    %v1468 = vpop.permute.xlu0 %1467
    %1469 = vrot.lane.b32.xlu0 %v1271, 96
    %v1470 = vpop.permute.xlu0 %1469
    %1471 = vrot.lane.b32.xlu0 %v1272, 96
    %v1472 = vpop.permute.xlu0 %1471
    %1473 = vrot.lane.b32.xlu0 %v1273, 96
    %v1474 = vpop.permute.xlu0 %1473
    %1475 = vrot.lane.b32.xlu0 %v1274, 96
    %v1476 = vpop.permute.xlu0 %1475
    %1477 = vrot.lane.b32.xlu0 %v1275, 96
    %v1478 = vpop.permute.xlu0 %1477
    %1479 = vrot.lane.b32.xlu0 %v1276, 96
    %v1480 = vpop.permute.xlu0 %1479
    %1481 = vrot.lane.b32.xlu0 %v1277, 96
    %v1482 = vpop.permute.xlu0 %1481
    %1483 = vrot.lane.b32.xlu0 %v1278, 96
    %v1484 = vpop.permute.xlu0 %1483
    %1485 = vrot.lane.b32.xlu0 %v1279, 96
    %v1486 = vpop.permute.xlu0 %1485
    %1487 = vrot.lane.b32.xlu0 %v1280, 96
    %v1488 = vpop.permute.xlu0 %1487
    %1489 = vrot.lane.b32.xlu0 %v1281, 96
    %v1490 = vpop.permute.xlu0 %1489
    %1491 = vrot.lane.b32.xlu0 %v1282, 96
    %v1492 = vpop.permute.xlu0 %1491
    %1493 = vrot.lane.b32.xlu0 %v1283, 96
    %v1494 = vpop.permute.xlu0 %1493
    %1495 = vrot.lane.b32.xlu0 %v1284, 96
    %v1496 = vpop.permute.xlu0 %1495
    %1497 = vrot.lane.b32.xlu0 %v1285, 96
    %v1498 = vpop.permute.xlu0 %1497
    %1499 = vrot.lane.b32.xlu0 %v1286, 96
    %v1500 = vpop.permute.xlu0 %1499
    %1501 = vrot.lane.b32.xlu0 %v1287, 96
    %v1502 = vpop.permute.xlu0 %1501
    %1503 = vrot.lane.b32.xlu0 %v1288, 96
    %v1504 = vpop.permute.xlu0 %1503
    %1505 = vrot.lane.b32.xlu0 %v1289, 96
    %v1506 = vpop.permute.xlu0 %1505
    %1507 = vrot.lane.b32.xlu0 %v1290, 96
    %v1508 = vpop.permute.xlu0 %1507
    %1509 = vrot.lane.b32.xlu0 %v1291, 96
    %v1510 = vpop.permute.xlu0 %1509
    %1511 = vrot.lane.b32.xlu0 %v1292, 96
    %v1512 = vpop.permute.xlu0 %1511
    %1539 = vrot.lane.b32.xlu0 %v1291, 32
    %v1540 = vpop.permute.xlu0 %1539
    %1541 = vrot.lane.b32.xlu0 %v1292, 32
    %v1542 = vpop.permute.xlu0 %1541
    %1543 = vrot.lane.b32.xlu0 %v1293, 32
    %v1544 = vpop.permute.xlu0 %1543
    %1545 = vrot.lane.b32.xlu0 %v1294, 32
    %v1546 = vpop.permute.xlu0 %1545
    %v1551 = vsel %vm335, %v1266, %v1320
    %v1552 = vsel %vm335, %v1267, %v1322
    %v1553 = vsel %vm335, %v1268, %v1324
    %v1554 = vsel %vm335, %v1269, %v1326
    %v1555 = vsel %vm335, %v1270, %v1328
    %v1556 = vsel %vm335, %v1271, %v1330
    %v1557 = vsel %vm335, %v1272, %v1332
    %v1558 = vsel %vm335, %v1273, %v1334
    %v1559 = vsel %vm335, %v1274, %v1336
    %v1560 = vsel %vm335, %v1275, %v1338
    %v1561 = vsel %vm335, %v1276, %v1340
    %v1562 = vsel %vm335, %v1277, %v1342
    %v1563 = vsel %vm335, %v1278, %v1344
    %v1564 = vsel %vm335, %v1279, %v1346
    %v1565 = vsel %vm335, %v1280, %v1348
    %v1566 = vsel %vm335, %v1281, %v1350
    %v1567 = vsel %vm335, %v1282, %v1352
    %v1568 = vsel %vm335, %v1283, %v1354
    %v1569 = vsel %vm335, %v1284, %v1356
    %v1570 = vsel %vm335, %v1285, %v1358
    %v1571 = vsel %vm335, %v1286, %v1360
    %v1572 = vsel %vm335, %v1287, %v1362
    %v1573 = vsel %vm335, %v1288, %v1364
    %v1574 = vsel %vm335, %v1289, %v1366
    %vm1575 = vcmask 523264
    %v1576 = vsel %vm1575, %v1551, %v1393
    %v1577 = vsel %vm1575, %v1552, %v1395
    %v1578 = vsel %vm1575, %v1553, %v1397
    %v1579 = vsel %vm1575, %v1554, %v1399
    %v1580 = vsel %vm1575, %v1555, %v1401
    %v1581 = vsel %vm1575, %v1556, %v1403
    %v1582 = vsel %vm1575, %v1557, %v1405
    %v1583 = vsel %vm1575, %v1558, %v1407
    %v1584 = vsel %vm1575, %v1559, %v1409
    %v1585 = vsel %vm1575, %v1560, %v1411
    %v1586 = vsel %vm1575, %v1561, %v1413
    %v1587 = vsel %vm1575, %v1562, %v1415
    %v1588 = vsel %vm1575, %v1563, %v1417
    %v1589 = vsel %vm1575, %v1564, %v1419
    %v1590 = vsel %vm1575, %v1565, %v1421
    %v1591 = vsel %vm1575, %v1566, %v1423
    %v1592 = vsel %vm1575, %v1567, %v1425
    %v1593 = vsel %vm1575, %v1568, %v1427
    %v1594 = vsel %vm1575, %v1569, %v1429
    %v1595 = vsel %vm1575, %v1570, %v1431
    %v1596 = vsel %vm1575, %v1571, %v1433
    %v1597 = vsel %vm1575, %v1572, %v1435
    %v1598 = vsel %vm1575, %v1573, %v1437
    %v1599 = vsel %vm1575, %v1574, %v1439
    %vm1600 = vcmask 785408
    %v1601 = vsel %vm1600, %v1576, %v1466
    %v1602 = vsel %vm1600, %v1577, %v1468
    %v1603 = vsel %vm1600, %v1578, %v1470
    %v1604 = vsel %vm1600, %v1579, %v1472
    %v1605 = vsel %vm1600, %v1580, %v1474
    %v1606 = vsel %vm1600, %v1581, %v1476
    %v1607 = vsel %vm1600, %v1582, %v1478
    %v1608 = vsel %vm1600, %v1583, %v1480
    %v1609 = vsel %vm1600, %v1584, %v1482
    %v1610 = vsel %vm1600, %v1585, %v1484
    %v1611 = vsel %vm1600, %v1586, %v1486
    %v1612 = vsel %vm1600, %v1587, %v1488
    %v1613 = vsel %vm1600, %v1588, %v1490
    %v1614 = vsel %vm1600, %v1589, %v1492
    %v1615 = vsel %vm1600, %v1590, %v1494
    %v1616 = vsel %vm1600, %v1591, %v1496
    %v1617 = vsel %vm1600, %v1592, %v1498
    %v1618 = vsel %vm1600, %v1593, %v1500
    %v1619 = vsel %vm1600, %v1594, %v1502
    %v1620 = vsel %vm1600, %v1595, %v1504
    %v1621 = vsel %vm1600, %v1596, %v1506
    %v1622 = vsel %vm1600, %v1597, %v1508
    %v1623 = vsel %vm1600, %v1598, %v1510
    %v1624 = vsel %vm1600, %v1599, %v1512
    %v1625 = vsel %vm335, %v1290, %v1540
    %v1626 = vsel %vm335, %v1291, %v1542
    %v1627 = vsel %vm335, %v1292, %v1544
    %v1628 = vsel %vm335, %v1293, %v1546
    %v1629 = vpack.c.bf16 %v1602, %v1601
    %v1630 = vpack.c.bf16 %v1556, %v1555
    %v1631 = vpack.c.bf16 %v1604, %v1603
    %v1632 = vpack.c.bf16 %v1558, %v1557
    %v1633 = vpack.c.bf16 %v1606, %v1605
    %v1634 = vpack.c.bf16 %v1560, %v1559
    %v1635 = vpack.c.bf16 %v1608, %v1607
    %v1636 = vpack.c.bf16 %v1562, %v1561
    %v1637 = vpack.c.bf16 %v1610, %v1609
    %v1638 = vpack.c.bf16 %v1564, %v1563
    %v1639 = vpack.c.bf16 %v1612, %v1611
    %v1640 = vpack.c.bf16 %v1566, %v1565
    %v1641 = vpack.c.bf16 %v1614, %v1613
    %v1642 = vpack.c.bf16 %v1568, %v1567
    %v1643 = vpack.c.bf16 %v1616, %v1615
    %v1644 = vpack.c.bf16 %v1570, %v1569
    %v1645 = vpack.c.bf16 %v1618, %v1617
    %v1646 = vpack.c.bf16 %v1572, %v1571
    %v1647 = vpack.c.bf16 %v1620, %v1619
    %v1648 = vpack.c.bf16 %v1574, %v1573
    %v1649 = vpack.c.bf16 %v1622, %v1621
    %v1650 = vpack.c.bf16 %v1626, %v1625
    %v1651 = vpack.c.bf16 %v1624, %v1623
    %v1652 = vpack.c.bf16 %v1628, %v1627
    %v1653 = vld [vmem:[#allocation8] sm:$0xff]
    %v1654 = vld [vmem:[#allocation8 + $0x8] sm:$0xff]
    %v1655 = vld [vmem:[#allocation8 + $0x10] sm:$0xff]
    %v1656 = vld [vmem:[#allocation8 + $0x18] sm:$0xff]
    %v1657 = vld [vmem:[#allocation8 + $0x20] sm:$0xff]
    %v1658 = vld [vmem:[#allocation8 + $0x28] sm:$0xff]
    %v1659 = vld [vmem:[#allocation8 + $0x30] sm:$0xff]
    %v1660 = vld [vmem:[#allocation8 + $0x38] sm:$0xff]
    %v1661 = vld [vmem:[#allocation8 + $0x40] sm:$0xff]
    %v1662 = vld [vmem:[#allocation8 + $0x48] sm:$0xff]
    %v1663 = vld [vmem:[#allocation8 + $0x50] sm:$0xff]
    %v1664 = vld [vmem:[#allocation8 + $0x58] sm:$0xff]
    %v1665 = vld [vmem:[#allocation8 + $0x60] sm:$0xff]
    %v1666 = vld [vmem:[#allocation8 + $0x68] sm:$0xff]
    %v1667 = vld [vmem:[#allocation8 + $0x70] sm:$0xff]
    %v1668 = vld [vmem:[#allocation8 + $0x78] sm:$0xff]
    %v1669 = vld [vmem:[#allocation8 + $0x80] sm:$0xff]
    %v1670 = vld [vmem:[#allocation8 + $0x88] sm:$0xff]
    %v1671 = vld [vmem:[#allocation8 + $0x90] sm:$0xff]
    %v1672 = vld [vmem:[#allocation8 + $0x98] sm:$0xff]
    %v1673 = vld [vmem:[#allocation8 + $0xa0] sm:$0xff]
    %v1674 = vld [vmem:[#allocation8 + $0xa8] sm:$0xff]
    %v1675 = vld [vmem:[#allocation8 + $0xb0] sm:$0xff]
    %v1676 = vld [vmem:[#allocation8 + $0xb8] sm:$0xff]
    %v1677 = vld [vmem:[#allocation8 + $0xc0] sm:$0xff]
    %v1678 = vld [vmem:[#allocation8 + $0xc8] sm:$0xff]
    %v1679 = vld [vmem:[#allocation8 + $0xd0] sm:$0xff]
    %v1680 = vld [vmem:[#allocation8 + $0xd8] sm:$0xff]
    %v1681 = vld [vmem:[#allocation8 + $0xe0] sm:$0xff]
    %v1682 = vld [vmem:[#allocation8 + $0xe8] sm:$0xff]
    %v1683 = vld [vmem:[#allocation8 + $0xf0] sm:$0xff]
    %v1684 = vld [vmem:[#allocation8 + $0xf8] sm:$0xff]
    %v1685 = vld [vmem:[#allocation8 + $0x100] sm:$0xff]
    %v1686 = vld [vmem:[#allocation8 + $0x108] sm:$0xff]
    %v1687 = vld [vmem:[#allocation8 + $0x110] sm:$0xff]
    %v1688 = vld [vmem:[#allocation8 + $0x118] sm:$0xff]
    %v1689 = vld [vmem:[#allocation8 + $0x120] sm:$0xff]
    %v1690 = vld [vmem:[#allocation8 + $0x128] sm:$0xff]
    %v1691 = vld [vmem:[#allocation8 + $0x130] sm:$0xff]
    %v1692 = vld [vmem:[#allocation8 + $0x138] sm:$0xff]
    %v1693 = vld [vmem:[#allocation8 + $0x140] sm:$0xff]
    %v1694 = vld [vmem:[#allocation8 + $0x148] sm:$0xff]
    %v1695 = vld [vmem:[#allocation8 + $0x150] sm:$0xff]
    %v1696 = vld [vmem:[#allocation8 + $0x158] sm:$0xff]
    %v1697 = vld [vmem:[#allocation8 + $0x160] sm:$0xff]
    %v1698 = vld [vmem:[#allocation8 + $0x168] sm:$0xff]
    %v1699 = vld [vmem:[#allocation8 + $0x170] sm:$0xff]
    %v1700 = vld [vmem:[#allocation8 + $0x178] sm:$0xff]
    %v1701 = vld [vmem:[#allocation8 + $0x180] sm:$0xff]
    %v1702 = vld [vmem:[#allocation8 + $0x188] sm:$0xff]
    %v1703 = vld [vmem:[#allocation8 + $0x190] sm:$0xff]
    %v1704 = vld [vmem:[#allocation8 + $0x198] sm:$0xff]
    %v1705 = vld [vmem:[#allocation8 + $0x1a0] sm:$0xff]
    %v1706 = vld [vmem:[#allocation8 + $0x1a8] sm:$0xff]
    %v1707 = vld [vmem:[#allocation8 + $0x1b0] sm:$0xff]
    %v1708 = vld [vmem:[#allocation8 + $0x1b8] sm:$0xff]
    %v1709 = vld [vmem:[#allocation8 + $0x1c0] sm:$0xff]
    %v1710 = vld [vmem:[#allocation8 + $0x1c8] sm:$0xff]
    %v1711 = vld [vmem:[#allocation8 + $0x1d0] sm:$0xff]
    %v1712 = vld [vmem:[#allocation8 + $0x1d8] sm:$0xff]
    %v1713 = vld [vmem:[#allocation8 + $0x1e0] sm:$0xff]
    %v1714 = vld [vmem:[#allocation8 + $0x1e8] sm:$0xff]
    %v1715 = vld [vmem:[#allocation8 + $0x1f0] sm:$0xff]
    %v1716 = vld [vmem:[#allocation8 + $0x1f8] sm:$0xff]
    %v1717 = vld [vmem:[#allocation8 + $0x200] sm:$0xff]
    %v1718 = vld [vmem:[#allocation8 + $0x208] sm:$0xff]
    %v1719 = vld [vmem:[#allocation8 + $0x210] sm:$0xff]
    %v1720 = vld [vmem:[#allocation8 + $0x218] sm:$0xff]
    %v1721 = vld [vmem:[#allocation8 + $0x220] sm:$0xff]
    %v1722 = vld [vmem:[#allocation8 + $0x228] sm:$0xff]
    %v1723 = vld [vmem:[#allocation8 + $0x230] sm:$0xff]
    %v1724 = vld [vmem:[#allocation8 + $0x238] sm:$0xff]
    %v1725 = vld [vmem:[#allocation8 + $0x240] sm:$0xff]
    %v1726 = vld [vmem:[#allocation8 + $0x248] sm:$0xff]
    %v1727 = vld [vmem:[#allocation8 + $0x250] sm:$0xff]
    %v1728 = vld [vmem:[#allocation8 + $0x258] sm:$0xff]
    %v1729 = vld [vmem:[#allocation8 + $0x260] sm:$0xff]
    %v1730 = vld [vmem:[#allocation8 + $0x268] sm:$0xff]
    %v1731 = vld [vmem:[#allocation8 + $0x270] sm:$0xff]
    %v1732 = vld [vmem:[#allocation8 + $0x278] sm:$0xff]
    %v1733 = vld [vmem:[#allocation8 + $0x280] sm:$0xff]
    %v1734 = vld [vmem:[#allocation8 + $0x288] sm:$0xff]
    %v1735 = vld [vmem:[#allocation8 + $0x290] sm:$0xff]
    %v1736 = vld [vmem:[#allocation8 + $0x298] sm:$0xff]
    %v1737 = vld [vmem:[#allocation8 + $0x2a0] sm:$0xff]
    %v1738 = vld [vmem:[#allocation8 + $0x2a8] sm:$0xff]
    %v1739 = vld [vmem:[#allocation8 + $0x2b0] sm:$0xff]
    %v1740 = vld [vmem:[#allocation8 + $0x2b8] sm:$0xff]
    %v1741 = vld [vmem:[#allocation8 + $0x2c0] sm:$0xff]
    %v1742 = vld [vmem:[#allocation8 + $0x2c8] sm:$0xff]
    %v1743 = vld [vmem:[#allocation8 + $0x2d0] sm:$0xff]
    %v1744 = vld [vmem:[#allocation8 + $0x2d8] sm:$0xff]
    %v1745 = vld [vmem:[#allocation8 + $0x2e0] sm:$0xff]
    %v1746 = vld [vmem:[#allocation8 + $0x2e8] sm:$0xff]
    %v1747 = vld [vmem:[#allocation8 + $0x2f0] sm:$0xff]
    %v1748 = vld [vmem:[#allocation8 + $0x2f8] sm:$0xff]
    %v1749 = vld [vmem:[#allocation8 + $0x300] sm:$0xff]
    %v1750 = vld [vmem:[#allocation8 + $0x308] sm:$0xff]
    %v1751 = vld [vmem:[#allocation8 + $0x310] sm:$0xff]
    %v1752 = vld [vmem:[#allocation8 + $0x318] sm:$0xff]
    %v1753 = vld [vmem:[#allocation8 + $0x320] sm:$0xff]
    %v1754 = vld [vmem:[#allocation8 + $0x328] sm:$0xff]
    %v1755 = vld [vmem:[#allocation8 + $0x330] sm:$0xff]
    %v1756 = vld [vmem:[#allocation8 + $0x338] sm:$0xff]
    %v1757 = vld [vmem:[#allocation8 + $0x340] sm:$0xff]
    %v1758 = vld [vmem:[#allocation8 + $0x348] sm:$0xff]
    %v1759 = vld [vmem:[#allocation8 + $0x350] sm:$0xff]
    %v1760 = vld [vmem:[#allocation8 + $0x358] sm:$0xff]
    %v1761 = vld [vmem:[#allocation8 + $0x360] sm:$0xff]
    %v1762 = vld [vmem:[#allocation8 + $0x368] sm:$0xff]
    %v1763 = vld [vmem:[#allocation8 + $0x370] sm:$0xff]
    %v1764 = vld [vmem:[#allocation8 + $0x378] sm:$0xff]
    %v1765 = vld [vmem:[#allocation8 + $0x380] sm:$0xff]
    %v1766 = vld [vmem:[#allocation8 + $0x388] sm:$0xff]
    %v1767 = vld [vmem:[#allocation8 + $0x390] sm:$0xff]
    %v1768 = vld [vmem:[#allocation8 + $0x398] sm:$0xff]
    %v1769 = vld [vmem:[#allocation8 + $0x3a0] sm:$0xff]
    %v1770 = vld [vmem:[#allocation8 + $0x3a8] sm:$0xff]
    %v1771 = vld [vmem:[#allocation8 + $0x3b0] sm:$0xff]
    %v1772 = vld [vmem:[#allocation8 + $0x3b8] sm:$0xff]
    %v1773 = vld [vmem:[#allocation8 + $0x3c0] sm:$0xff]
    %v1774 = vld [vmem:[#allocation8 + $0x3c8] sm:$0xff]
    %v1775 = vld [vmem:[#allocation8 + $0x3d0] sm:$0xff]
    %v1776 = vld [vmem:[#allocation8 + $0x3d8] sm:$0xff]
    %v1777 = vld [vmem:[#allocation8 + $0x3e0] sm:$0xff]
    %v1778 = vld [vmem:[#allocation8 + $0x3e8] sm:$0xff]
    %v1779 = vld [vmem:[#allocation8 + $0x3f0] sm:$0xff]
    %v1780 = vld [vmem:[#allocation8 + $0x3f8] sm:$0xff]
    %v1781 = vld [vmem:[#allocation8 + $0x400] sm:$0xff]
    %v1782 = vld [vmem:[#allocation8 + $0x408] sm:$0xff]
    %v1783 = vld [vmem:[#allocation8 + $0x410] sm:$0xff]
    %v1784 = vld [vmem:[#allocation8 + $0x418] sm:$0xff]
    %v1785 = vld [vmem:[#allocation8 + $0x420] sm:$0xff]
    %v1786 = vld [vmem:[#allocation8 + $0x428] sm:$0xff]
    %v1787 = vld [vmem:[#allocation8 + $0x430] sm:$0xff]
    %v1788 = vld [vmem:[#allocation8 + $0x438] sm:$0xff]
    %v1789 = vld [vmem:[#allocation8 + $0x440] sm:$0xff]
    %v1790 = vld [vmem:[#allocation8 + $0x448] sm:$0xff]
    %v1791 = vld [vmem:[#allocation8 + $0x450] sm:$0xff]
    %v1792 = vld [vmem:[#allocation8 + $0x458] sm:$0xff]
    %v1793 = vld [vmem:[#allocation8 + $0x460] sm:$0xff]
    %v1794 = vld [vmem:[#allocation8 + $0x468] sm:$0xff]
    %v1795 = vld [vmem:[#allocation8 + $0x470] sm:$0xff]
    %v1796 = vld [vmem:[#allocation8 + $0x478] sm:$0xff]
    %v1797 = vpack.c.bf16 %v1659, %v1653
    %v1798 = vpack.c.bf16 %v1660, %v1654
    %v1799 = vpack.c.bf16 %v1661, %v1655
    %v1800 = vpack.c.bf16 %v1662, %v1656
    %v1801 = vpack.c.bf16 %v1663, %v1657
    %v1802 = vpack.c.bf16 %v1664, %v1658
    %v1803 = vpack.c.bf16 %v1671, %v1665
    %v1804 = vpack.c.bf16 %v1672, %v1666
    %v1805 = vpack.c.bf16 %v1673, %v1667
    %v1806 = vpack.c.bf16 %v1674, %v1668
    %v1807 = vpack.c.bf16 %v1675, %v1669
    %v1808 = vpack.c.bf16 %v1676, %v1670
    %v1809 = vpack.c.bf16 %v1683, %v1677
    %v1810 = vpack.c.bf16 %v1684, %v1678
    %v1811 = vpack.c.bf16 %v1685, %v1679
    %v1812 = vpack.c.bf16 %v1686, %v1680
    %v1813 = vpack.c.bf16 %v1687, %v1681
    %v1814 = vpack.c.bf16 %v1688, %v1682
    %v1815 = vpack.c.bf16 %v1695, %v1689
    %v1816 = vpack.c.bf16 %v1696, %v1690
    %v1817 = vpack.c.bf16 %v1697, %v1691
    %v1818 = vpack.c.bf16 %v1698, %v1692
    %v1819 = vpack.c.bf16 %v1699, %v1693
    %v1820 = vpack.c.bf16 %v1700, %v1694
    %v1821 = vpack.c.bf16 %v1707, %v1701
    %v1822 = vpack.c.bf16 %v1708, %v1702
    %v1823 = vpack.c.bf16 %v1709, %v1703
    %v1824 = vpack.c.bf16 %v1710, %v1704
    %v1825 = vpack.c.bf16 %v1711, %v1705
    %v1826 = vpack.c.bf16 %v1712, %v1706
    %v1827 = vpack.c.bf16 %v1719, %v1713
    %v1828 = vpack.c.bf16 %v1720, %v1714
    %v1829 = vpack.c.bf16 %v1721, %v1715
    %v1830 = vpack.c.bf16 %v1722, %v1716
    %v1831 = vpack.c.bf16 %v1723, %v1717
    %v1832 = vpack.c.bf16 %v1724, %v1718
    %v1833 = vpack.c.bf16 %v1731, %v1725
    %v1834 = vpack.c.bf16 %v1732, %v1726
    %v1835 = vpack.c.bf16 %v1733, %v1727
    %v1836 = vpack.c.bf16 %v1734, %v1728
    %v1837 = vpack.c.bf16 %v1735, %v1729
    %v1838 = vpack.c.bf16 %v1736, %v1730
    %v1839 = vpack.c.bf16 %v1743, %v1737
    %v1840 = vpack.c.bf16 %v1744, %v1738
    %v1841 = vpack.c.bf16 %v1745, %v1739
    %v1842 = vpack.c.bf16 %v1746, %v1740
    %v1843 = vpack.c.bf16 %v1747, %v1741
    %v1844 = vpack.c.bf16 %v1748, %v1742
    %v1845 = vpack.c.bf16 %v1755, %v1749
    %v1846 = vpack.c.bf16 %v1756, %v1750
    %v1847 = vpack.c.bf16 %v1757, %v1751
    %v1848 = vpack.c.bf16 %v1758, %v1752
    %v1849 = vpack.c.bf16 %v1759, %v1753
    %v1850 = vpack.c.bf16 %v1760, %v1754
    %v1851 = vpack.c.bf16 %v1767, %v1761
    %v1852 = vpack.c.bf16 %v1768, %v1762
    %v1853 = vpack.c.bf16 %v1769, %v1763
    %v1854 = vpack.c.bf16 %v1770, %v1764
    %v1855 = vpack.c.bf16 %v1771, %v1765
    %v1856 = vpack.c.bf16 %v1772, %v1766
    %v1857 = vpack.c.bf16 %v1779, %v1773
    %v1858 = vpack.c.bf16 %v1780, %v1774
    %v1859 = vpack.c.bf16 %v1781, %v1775
    %v1860 = vpack.c.bf16 %v1782, %v1776
    %v1861 = vpack.c.bf16 %v1783, %v1777
    %v1862 = vpack.c.bf16 %v1784, %v1778
    %v1863 = vpack.c.bf16 %v1791, %v1785
    %v1864 = vpack.c.bf16 %v1792, %v1786
    %v1865 = vpack.c.bf16 %v1793, %v1787
    %v1866 = vpack.c.bf16 %v1794, %v1788
    %v1867 = vpack.c.bf16 %v1795, %v1789
    %v1868 = vpack.c.bf16 %v1796, %v1790
    %v1869 = vld [vmem:[#allocation10] sm:$0x3f]
    %v1871 = vlaneseq
    %v1872 = vshrl.u32 %v1871, 7
    %v1873 = vsub.s32 0, %v1872
    %v1874 = vrot.slane %v1869, %v1873
    %v1875 = vlaneseq
    %v1876 = vshrl.u32 %v1875, 7
    %v1877 = vsub.s32 1, %v1876
    %v1878 = vrot.slane %v1869, %v1877
    %v1879 = vlaneseq
    %v1880 = vshrl.u32 %v1879, 7
    %v1881 = vsub.s32 2, %v1880
    %v1882 = vrot.slane %v1869, %v1881
    %v1883 = vlaneseq
    %v1884 = vshrl.u32 %v1883, 7
    %v1885 = vsub.s32 3, %v1884
    %v1886 = vrot.slane %v1869, %v1885
    %v1887 = vlaneseq
    %v1888 = vshrl.u32 %v1887, 7
    %v1889 = vsub.s32 4, %v1888
    %v1890 = vrot.slane %v1869, %v1889
    %v1891 = vlaneseq
    %v1892 = vshrl.u32 %v1891, 7
    %v1893 = vsub.s32 5, %v1892
    %v1894 = vrot.slane %v1869, %v1893
    %v1902 = vsel %vm1575, %v1630, 0
    %v1905 = vsel %vm1575, %v1632, 0
    %v1908 = vsel %vm1575, %v1634, 0
    %v1911 = vsel %vm1575, %v1636, 0
    %v1914 = vsel %vm1575, %v1638, 0
    %v1917 = vsel %vm1575, %v1640, 0
    %v1920 = vsel %vm1575, %v1642, 0
    %v1923 = vsel %vm1575, %v1644, 0
    %v1926 = vsel %vm1575, %v1646, 0
    %v1929 = vsel %vm1575, %v1648, 0
    %v1932 = vsel %vm1575, %v1650, 0
    %v1935 = vsel %vm1575, %v1652, 0
    %1937 = vmatprep.subr.bf16.mxu0 %v1798
    %1938 = vmatpush1.bf16.msra.mxu0 %v1797
    %1939 = vmatprep.subr.bf16.mxu0 %v1804
    %1940 = vmatpush1.bf16.msra.mxu0 %v1803
    %1941 = vmatprep.subr.bf16.mxu0 %v1810
    %1942 = vmatpush1.bf16.msra.mxu0 %v1809
    %1943 = vmatprep.subr.bf16.mxu0 %v1816
    %1944 = vmatpush1.bf16.msra.mxu0 %v1815
    %1945 = vmatprep.subr.bf16.mxu0 %v1822
    %1946 = vmatpush1.bf16.msra.mxu0 %v1821
    %1947 = vmatprep.subr.bf16.mxu0 %v1828
    %1948 = vmatpush1.bf16.msra.mxu0 %v1827
    %1949 = vmatprep.subr.bf16.mxu0 %v1834
    %1950 = vmatpush1.bf16.msra.mxu0 %v1833
    %1951 = vmatprep.subr.bf16.mxu0 %v1840
    %1952 = vmatpush1.bf16.msra.mxu0 %v1839
    %1953 = vmatprep.subr.bf16.mxu0 %v1846
    %1954 = vmatpush1.bf16.msra.mxu0 %v1845
    %1955 = vmatprep.subr.bf16.mxu0 %v1852
    %1956 = vmatpush1.bf16.msra.mxu0 %v1851
    %1957 = vmatprep.subr.bf16.mxu0 %v1858
    %1958 = vmatpush1.bf16.msra.mxu0 %v1857
    %1959 = vmatprep.subr.bf16.mxu0 %v1864
    %1960 = vmatpush1.bf16.msra.mxu0 %v1863
    %1961 = vmatprep.subr.bf16.mxu0 0
    %1962 = vmatpush1.bf16.msra.mxu0 0
    %1963 = vmatprep.subr.bf16.mxu0 0
    %1964 = vmatpush1.bf16.msra.mxu0 0
    %1965 = vmatprep.subr.bf16.mxu0 0
    %1966 = vmatpush1.bf16.msra.mxu0 0
    %1967 = vmatprep.subr.bf16.mxu0 0
    %1968 = vmatpush1.bf16.msra.mxu0 0
    %1969 = vmatprep.mubr.bf16.mxu0 %v1902
    %1970 = vmatmul.mubr.bf16.gmra.mrb[0].mxu0 %v1629
    %v1971 = vpop.f32.mrb[0].mxu0
    %v1972 = vadd.f32 %v1874, %v1971
    %v1973 = vpop.f32.mrb[0].mxu0
    %v1974 = vadd.f32 %v1878, %v1973
    %v1975 = vpop.f32.mrb[0].mxu0
    %v1976 = vadd.f32 %v1874, %v1975
    %v1977 = vpop.f32.mrb[0].mxu0
    %v1978 = vadd.f32 %v1878, %v1977
    %1979 = vmatprep.mubr.bf16.mxu0 %v1905
    %1980 = vmatmul.mubr.bf16.gmra.mrb[0].mxu0 %v1631
    %v1981 = vpop.f32.mrb[0].mxu0
    %v1982 = vadd.f32 %v1874, %v1981
    %v1983 = vpop.f32.mrb[0].mxu0
    %v1984 = vadd.f32 %v1878, %v1983
    %v1985 = vpop.f32.mrb[0].mxu0
    %v1986 = vadd.f32 %v1874, %v1985
    %v1987 = vpop.f32.mrb[0].mxu0
    %v1988 = vadd.f32 %v1878, %v1987
    %1989 = vmatprep.mubr.bf16.mxu0 %v1908
    %1990 = vmatmul.mubr.bf16.gmra.mrb[0].mxu0 %v1633
    %v1991 = vpop.f32.mrb[0].mxu0
    %v1992 = vadd.f32 %v1874, %v1991
    %v1993 = vpop.f32.mrb[0].mxu0
    %v1994 = vadd.f32 %v1878, %v1993
    %v1995 = vpop.f32.mrb[0].mxu0
    %v1996 = vadd.f32 %v1874, %v1995
    %v1997 = vpop.f32.mrb[0].mxu0
    %v1998 = vadd.f32 %v1878, %v1997
    %1999 = vmatprep.mubr.bf16.mxu0 %v1911
    %2000 = vmatmul.mubr.bf16.gmra.mrb[0].mxu0 %v1635
    %v2001 = vpop.f32.mrb[0].mxu0
    %v2002 = vadd.f32 %v1874, %v2001
    %v2003 = vpop.f32.mrb[0].mxu0
    %v2004 = vadd.f32 %v1878, %v2003
    %v2005 = vpop.f32.mrb[0].mxu0
    %v2006 = vadd.f32 %v1874, %v2005
    %v2007 = vpop.f32.mrb[0].mxu0
    %v2008 = vadd.f32 %v1878, %v2007
    %2009 = vmatprep.mubr.bf16.mxu0 %v1914
    %2010 = vmatmul.mubr.bf16.gmra.mrb[0].mxu0 %v1637
    %v2011 = vpop.f32.mrb[0].mxu0
    %v2012 = vadd.f32 %v1874, %v2011
    %v2013 = vpop.f32.mrb[0].mxu0
    %v2014 = vadd.f32 %v1878, %v2013
    %v2015 = vpop.f32.mrb[0].mxu0
    %v2016 = vadd.f32 %v1874, %v2015
    %v2017 = vpop.f32.mrb[0].mxu0
    %v2018 = vadd.f32 %v1878, %v2017
    %2019 = vmatprep.mubr.bf16.mxu0 %v1917
    %2020 = vmatmul.mubr.bf16.gmra.mrb[0].mxu0 %v1639
    %v2021 = vpop.f32.mrb[0].mxu0
    %v2022 = vadd.f32 %v1874, %v2021
    %v2023 = vpop.f32.mrb[0].mxu0
    %v2024 = vadd.f32 %v1878, %v2023
    %v2025 = vpop.f32.mrb[0].mxu0
    %v2026 = vadd.f32 %v1874, %v2025
    %v2027 = vpop.f32.mrb[0].mxu0
    %v2028 = vadd.f32 %v1878, %v2027
    %2029 = vmatprep.mubr.bf16.mxu0 %v1920
    %2030 = vmatmul.mubr.bf16.gmra.mrb[0].mxu0 %v1641
    %v2031 = vpop.f32.mrb[0].mxu0
    %v2032 = vadd.f32 %v1874, %v2031
    %v2033 = vpop.f32.mrb[0].mxu0
    %v2034 = vadd.f32 %v1878, %v2033
    %v2035 = vpop.f32.mrb[0].mxu0
    %v2036 = vadd.f32 %v1874, %v2035
    %v2037 = vpop.f32.mrb[0].mxu0
    %v2038 = vadd.f32 %v1878, %v2037
    %2039 = vmatprep.mubr.bf16.mxu0 %v1923
    %2040 = vmatmul.mubr.bf16.gmra.mrb[0].mxu0 %v1643
    %v2041 = vpop.f32.mrb[0].mxu0
    %v2042 = vadd.f32 %v1874, %v2041
    %v2043 = vpop.f32.mrb[0].mxu0
    %v2044 = vadd.f32 %v1878, %v2043
    %v2045 = vpop.f32.mrb[0].mxu0
    %v2046 = vadd.f32 %v1874, %v2045
    %v2047 = vpop.f32.mrb[0].mxu0
    %v2048 = vadd.f32 %v1878, %v2047
    %2049 = vmatprep.mubr.bf16.mxu0 %v1926
    %2050 = vmatmul.mubr.bf16.gmra.mrb[0].mxu0 %v1645
    %v2051 = vpop.f32.mrb[0].mxu0
    %v2052 = vadd.f32 %v1874, %v2051
    %v2053 = vpop.f32.mrb[0].mxu0
    %v2054 = vadd.f32 %v1878, %v2053
    %v2055 = vpop.f32.mrb[0].mxu0
    %v2056 = vadd.f32 %v1874, %v2055
    %v2057 = vpop.f32.mrb[0].mxu0
    %v2058 = vadd.f32 %v1878, %v2057
    %2059 = vmatprep.mubr.bf16.mxu0 %v1929
    %2060 = vmatmul.mubr.bf16.gmra.mrb[0].mxu0 %v1647
    %v2061 = vpop.f32.mrb[0].mxu0
    %v2062 = vadd.f32 %v1874, %v2061
    %v2063 = vpop.f32.mrb[0].mxu0
    %v2064 = vadd.f32 %v1878, %v2063
    %v2065 = vpop.f32.mrb[0].mxu0
    %v2066 = vadd.f32 %v1874, %v2065
    %v2067 = vpop.f32.mrb[0].mxu0
    %v2068 = vadd.f32 %v1878, %v2067
    %2069 = vmatprep.mubr.bf16.mxu0 %v1932
    %2070 = vmatmul.mubr.bf16.gmra.mrb[0].mxu0 %v1649
    %v2071 = vpop.f32.mrb[0].mxu0
    %v2072 = vadd.f32 %v1874, %v2071
    %v2073 = vpop.f32.mrb[0].mxu0
    %v2074 = vadd.f32 %v1878, %v2073
    %v2075 = vpop.f32.mrb[0].mxu0
    %v2076 = vadd.f32 %v1874, %v2075
    %v2077 = vpop.f32.mrb[0].mxu0
    %v2078 = vadd.f32 %v1878, %v2077
    %2079 = vmatprep.mubr.bf16.mxu0 %v1935
    %2080 = vmatmul.mubr.bf16.gmra.mrb[0].mxu0 %v1651
    %v2081 = vpop.f32.mrb[0].mxu0
    %v2082 = vadd.f32 %v1874, %v2081
    %v2083 = vpop.f32.mrb[0].mxu0
    %v2084 = vadd.f32 %v1878, %v2083
    %v2085 = vpop.f32.mrb[0].mxu0
    %v2086 = vadd.f32 %v1874, %v2085
    %v2087 = vpop.f32.mrb[0].mxu0
    %v2088 = vadd.f32 %v1878, %v2087
    %2089 = vdwg.mxu0
    %2090 = vmatprep.subr.bf16.mxu0 %v1800
    %2091 = vmatpush1.bf16.msra.mxu0 %v1799
    %2092 = vmatprep.subr.bf16.mxu0 %v1806
    %2093 = vmatpush1.bf16.msra.mxu0 %v1805
    %2094 = vmatprep.subr.bf16.mxu0 %v1812
    %2095 = vmatpush1.bf16.msra.mxu0 %v1811
    %2096 = vmatprep.subr.bf16.mxu0 %v1818
    %2097 = vmatpush1.bf16.msra.mxu0 %v1817
    %2098 = vmatprep.subr.bf16.mxu0 %v1824
    %2099 = vmatpush1.bf16.msra.mxu0 %v1823
    %2100 = vmatprep.subr.bf16.mxu0 %v1830
    %2101 = vmatpush1.bf16.msra.mxu0 %v1829
    %2102 = vmatprep.subr.bf16.mxu0 %v1836
    %2103 = vmatpush1.bf16.msra.mxu0 %v1835
    %2104 = vmatprep.subr.bf16.mxu0 %v1842
    %2105 = vmatpush1.bf16.msra.mxu0 %v1841
    %2106 = vmatprep.subr.bf16.mxu0 %v1848
    %2107 = vmatpush1.bf16.msra.mxu0 %v1847
    %2108 = vmatprep.subr.bf16.mxu0 %v1854
    %2109 = vmatpush1.bf16.msra.mxu0 %v1853
    %2110 = vmatprep.subr.bf16.mxu0 %v1860
    %2111 = vmatpush1.bf16.msra.mxu0 %v1859
    %2112 = vmatprep.subr.bf16.mxu0 %v1866
    %2113 = vmatpush1.bf16.msra.mxu0 %v1865
    %2114 = vmatprep.subr.bf16.mxu0 0
    %2115 = vmatpush1.bf16.msra.mxu0 0
    %2116 = vmatprep.subr.bf16.mxu0 0
    %2117 = vmatpush1.bf16.msra.mxu0 0
    %2118 = vmatprep.subr.bf16.mxu0 0
    %2119 = vmatpush1.bf16.msra.mxu0 0
    %2120 = vmatprep.subr.bf16.mxu0 0
    %2121 = vmatpush1.bf16.msra.mxu0 0
    %2122 = vmatprep.mubr.bf16.mxu0 %v1902
    %2123 = vmatmul.mubr.bf16.gmra.mrb[0].mxu0 %v1629
    %v2124 = vpop.f32.mrb[0].mxu0
    %v2125 = vadd.f32 %v1882, %v2124
    %v2126 = vpop.f32.mrb[0].mxu0
    %v2127 = vadd.f32 %v1886, %v2126
    %v2128 = vpop.f32.mrb[0].mxu0
    %v2129 = vadd.f32 %v1882, %v2128
    %v2130 = vpop.f32.mrb[0].mxu0
    %v2131 = vadd.f32 %v1886, %v2130
    %2132 = vmatprep.mubr.bf16.mxu0 %v1905
    %2133 = vmatmul.mubr.bf16.gmra.mrb[0].mxu0 %v1631
    %v2134 = vpop.f32.mrb[0].mxu0
    %v2135 = vadd.f32 %v1882, %v2134
    %v2136 = vpop.f32.mrb[0].mxu0
    %v2137 = vadd.f32 %v1886, %v2136
    %v2138 = vpop.f32.mrb[0].mxu0
    %v2139 = vadd.f32 %v1882, %v2138
    %v2140 = vpop.f32.mrb[0].mxu0
    %v2141 = vadd.f32 %v1886, %v2140
    %2142 = vmatprep.mubr.bf16.mxu0 %v1908
    %2143 = vmatmul.mubr.bf16.gmra.mrb[0].mxu0 %v1633
    %v2144 = vpop.f32.mrb[0].mxu0
    %v2145 = vadd.f32 %v1882, %v2144
    %v2146 = vpop.f32.mrb[0].mxu0
    %v2147 = vadd.f32 %v1886, %v2146
    %v2148 = vpop.f32.mrb[0].mxu0
    %v2149 = vadd.f32 %v1882, %v2148
    %v2150 = vpop.f32.mrb[0].mxu0
    %v2151 = vadd.f32 %v1886, %v2150
    %2152 = vmatprep.mubr.bf16.mxu0 %v1911
    %2153 = vmatmul.mubr.bf16.gmra.mrb[0].mxu0 %v1635
    %v2154 = vpop.f32.mrb[0].mxu0
    %v2155 = vadd.f32 %v1882, %v2154
    %v2156 = vpop.f32.mrb[0].mxu0
    %v2157 = vadd.f32 %v1886, %v2156
    %v2158 = vpop.f32.mrb[0].mxu0
    %v2159 = vadd.f32 %v1882, %v2158
    %v2160 = vpop.f32.mrb[0].mxu0
    %v2161 = vadd.f32 %v1886, %v2160
    %2162 = vmatprep.mubr.bf16.mxu0 %v1914
    %2163 = vmatmul.mubr.bf16.gmra.mrb[0].mxu0 %v1637
    %v2164 = vpop.f32.mrb[0].mxu0
    %v2165 = vadd.f32 %v1882, %v2164
    %v2166 = vpop.f32.mrb[0].mxu0
    %v2167 = vadd.f32 %v1886, %v2166
    %v2168 = vpop.f32.mrb[0].mxu0
    %v2169 = vadd.f32 %v1882, %v2168
    %v2170 = vpop.f32.mrb[0].mxu0
    %v2171 = vadd.f32 %v1886, %v2170
    %2172 = vmatprep.mubr.bf16.mxu0 %v1917
    %2173 = vmatmul.mubr.bf16.gmra.mrb[0].mxu0 %v1639
    %v2174 = vpop.f32.mrb[0].mxu0
    %v2175 = vadd.f32 %v1882, %v2174
    %v2176 = vpop.f32.mrb[0].mxu0
    %v2177 = vadd.f32 %v1886, %v2176
    %v2178 = vpop.f32.mrb[0].mxu0
    %v2179 = vadd.f32 %v1882, %v2178
    %v2180 = vpop.f32.mrb[0].mxu0
    %v2181 = vadd.f32 %v1886, %v2180
    %2182 = vmatprep.mubr.bf16.mxu0 %v1920
    %2183 = vmatmul.mubr.bf16.gmra.mrb[0].mxu0 %v1641
    %v2184 = vpop.f32.mrb[0].mxu0
    %v2185 = vadd.f32 %v1882, %v2184
    %v2186 = vpop.f32.mrb[0].mxu0
    %v2187 = vadd.f32 %v1886, %v2186
    %v2188 = vpop.f32.mrb[0].mxu0
    %v2189 = vadd.f32 %v1882, %v2188
    %v2190 = vpop.f32.mrb[0].mxu0
    %v2191 = vadd.f32 %v1886, %v2190
    %2192 = vmatprep.mubr.bf16.mxu0 %v1923
    %2193 = vmatmul.mubr.bf16.gmra.mrb[0].mxu0 %v1643
    %v2194 = vpop.f32.mrb[0].mxu0
    %v2195 = vadd.f32 %v1882, %v2194
    %v2196 = vpop.f32.mrb[0].mxu0
    %v2197 = vadd.f32 %v1886, %v2196
    %v2198 = vpop.f32.mrb[0].mxu0
    %v2199 = vadd.f32 %v1882, %v2198
    %v2200 = vpop.f32.mrb[0].mxu0
    %v2201 = vadd.f32 %v1886, %v2200
    %2202 = vmatprep.mubr.bf16.mxu0 %v1926
    %2203 = vmatmul.mubr.bf16.gmra.mrb[0].mxu0 %v1645
    %v2204 = vpop.f32.mrb[0].mxu0
    %v2205 = vadd.f32 %v1882, %v2204
    %v2206 = vpop.f32.mrb[0].mxu0
    %v2207 = vadd.f32 %v1886, %v2206
    %v2208 = vpop.f32.mrb[0].mxu0
    %v2209 = vadd.f32 %v1882, %v2208
    %v2210 = vpop.f32.mrb[0].mxu0
    %v2211 = vadd.f32 %v1886, %v2210
    %2212 = vmatprep.mubr.bf16.mxu0 %v1929
    %2213 = vmatmul.mubr.bf16.gmra.mrb[0].mxu0 %v1647
    %v2214 = vpop.f32.mrb[0].mxu0
    %v2215 = vadd.f32 %v1882, %v2214
    %v2216 = vpop.f32.mrb[0].mxu0
    %v2217 = vadd.f32 %v1886, %v2216
    %v2218 = vpop.f32.mrb[0].mxu0
    %v2219 = vadd.f32 %v1882, %v2218
    %v2220 = vpop.f32.mrb[0].mxu0
    %v2221 = vadd.f32 %v1886, %v2220
    %2222 = vmatprep.mubr.bf16.mxu0 %v1932
    %2223 = vmatmul.mubr.bf16.gmra.mrb[0].mxu0 %v1649
    %v2224 = vpop.f32.mrb[0].mxu0
    %v2225 = vadd.f32 %v1882, %v2224
    %v2226 = vpop.f32.mrb[0].mxu0
    %v2227 = vadd.f32 %v1886, %v2226
    %v2228 = vpop.f32.mrb[0].mxu0
    %v2229 = vadd.f32 %v1882, %v2228
    %v2230 = vpop.f32.mrb[0].mxu0
    %v2231 = vadd.f32 %v1886, %v2230
    %2232 = vmatprep.mubr.bf16.mxu0 %v1935
    %2233 = vmatmul.mubr.bf16.gmra.mrb[0].mxu0 %v1651
    %v2234 = vpop.f32.mrb[0].mxu0
    %v2235 = vadd.f32 %v1882, %v2234
    %v2236 = vpop.f32.mrb[0].mxu0
    %v2237 = vadd.f32 %v1886, %v2236
    %v2238 = vpop.f32.mrb[0].mxu0
    %v2239 = vadd.f32 %v1882, %v2238
    %v2240 = vpop.f32.mrb[0].mxu0
    %v2241 = vadd.f32 %v1886, %v2240
    %2242 = vdwg.mxu0
    %2243 = vmatprep.subr.bf16.mxu0 %v1802
    %2244 = vmatpush1.bf16.msra.mxu0 %v1801
    %2245 = vmatprep.subr.bf16.mxu0 %v1808
    %2246 = vmatpush1.bf16.msra.mxu0 %v1807
    %2247 = vmatprep.subr.bf16.mxu0 %v1814
    %2248 = vmatpush1.bf16.msra.mxu0 %v1813
    %2249 = vmatprep.subr.bf16.mxu0 %v1820
    %2250 = vmatpush1.bf16.msra.mxu0 %v1819
    %2251 = vmatprep.subr.bf16.mxu0 %v1826
    %2252 = vmatpush1.bf16.msra.mxu0 %v1825
    %2253 = vmatprep.subr.bf16.mxu0 %v1832
    %2254 = vmatpush1.bf16.msra.mxu0 %v1831
    %2255 = vmatprep.subr.bf16.mxu0 %v1838
    %2256 = vmatpush1.bf16.msra.mxu0 %v1837
    %2257 = vmatprep.subr.bf16.mxu0 %v1844
    %2258 = vmatpush1.bf16.msra.mxu0 %v1843
    %2259 = vmatprep.subr.bf16.mxu0 %v1850
    %2260 = vmatpush1.bf16.msra.mxu0 %v1849
    %2261 = vmatprep.subr.bf16.mxu0 %v1856
    %2262 = vmatpush1.bf16.msra.mxu0 %v1855
    %2263 = vmatprep.subr.bf16.mxu0 %v1862
    %2264 = vmatpush1.bf16.msra.mxu0 %v1861
    %2265 = vmatprep.subr.bf16.mxu0 %v1868
    %2266 = vmatpush1.bf16.msra.mxu0 %v1867
    %2267 = vmatprep.subr.bf16.mxu0 0
    %2268 = vmatpush1.bf16.msra.mxu0 0
    %2269 = vmatprep.subr.bf16.mxu0 0
    %2270 = vmatpush1.bf16.msra.mxu0 0
    %2271 = vmatprep.subr.bf16.mxu0 0
    %2272 = vmatpush1.bf16.msra.mxu0 0
    %2273 = vmatprep.subr.bf16.mxu0 0
    %2274 = vmatpush1.bf16.msra.mxu0 0
    %2275 = vmatprep.mubr.bf16.mxu0 %v1902
    %2276 = vmatmul.mubr.bf16.gmra.mrb[0].mxu0 %v1629
    %v2277 = vpop.f32.mrb[0].mxu0
    %v2278 = vadd.f32 %v1890, %v2277
    %v2279 = vpop.f32.mrb[0].mxu0
    %v2280 = vadd.f32 %v1894, %v2279
    %v2281 = vpop.f32.mrb[0].mxu0
    %v2282 = vadd.f32 %v1890, %v2281
    %v2283 = vpop.f32.mrb[0].mxu0
    %v2284 = vadd.f32 %v1894, %v2283
    %2285 = vmatprep.mubr.bf16.mxu0 %v1905
    %2286 = vmatmul.mubr.bf16.gmra.mrb[0].mxu0 %v1631
    %v2287 = vpop.f32.mrb[0].mxu0
    %v2288 = vadd.f32 %v1890, %v2287
    %v2289 = vpop.f32.mrb[0].mxu0
    %v2290 = vadd.f32 %v1894, %v2289
    %v2291 = vpop.f32.mrb[0].mxu0
    %v2292 = vadd.f32 %v1890, %v2291
    %v2293 = vpop.f32.mrb[0].mxu0
    %v2294 = vadd.f32 %v1894, %v2293
    %2295 = vmatprep.mubr.bf16.mxu0 %v1908
    %2296 = vmatmul.mubr.bf16.gmra.mrb[0].mxu0 %v1633
    %v2297 = vpop.f32.mrb[0].mxu0
    %v2298 = vadd.f32 %v1890, %v2297
    %v2299 = vpop.f32.mrb[0].mxu0
    %v2300 = vadd.f32 %v1894, %v2299
    %v2301 = vpop.f32.mrb[0].mxu0
    %v2302 = vadd.f32 %v1890, %v2301
    %v2303 = vpop.f32.mrb[0].mxu0
    %v2304 = vadd.f32 %v1894, %v2303
    %2305 = vmatprep.mubr.bf16.mxu0 %v1911
    %2306 = vmatmul.mubr.bf16.gmra.mrb[0].mxu0 %v1635
    %v2307 = vpop.f32.mrb[0].mxu0
    %v2308 = vadd.f32 %v1890, %v2307
    %v2309 = vpop.f32.mrb[0].mxu0
    %v2310 = vadd.f32 %v1894, %v2309
    %v2311 = vpop.f32.mrb[0].mxu0
    %v2312 = vadd.f32 %v1890, %v2311
    %v2313 = vpop.f32.mrb[0].mxu0
    %v2314 = vadd.f32 %v1894, %v2313
    %2315 = vmatprep.mubr.bf16.mxu0 %v1914
    %2316 = vmatmul.mubr.bf16.gmra.mrb[0].mxu0 %v1637
    %v2317 = vpop.f32.mrb[0].mxu0
    %v2318 = vadd.f32 %v1890, %v2317
    %v2319 = vpop.f32.mrb[0].mxu0
    %v2320 = vadd.f32 %v1894, %v2319
    %v2321 = vpop.f32.mrb[0].mxu0
    %v2322 = vadd.f32 %v1890, %v2321
    %v2323 = vpop.f32.mrb[0].mxu0
    %v2324 = vadd.f32 %v1894, %v2323
    %2325 = vmatprep.mubr.bf16.mxu0 %v1917
    %2326 = vmatmul.mubr.bf16.gmra.mrb[0].mxu0 %v1639
    %v2327 = vpop.f32.mrb[0].mxu0
    %v2328 = vadd.f32 %v1890, %v2327
    %v2329 = vpop.f32.mrb[0].mxu0
    %v2330 = vadd.f32 %v1894, %v2329
    %v2331 = vpop.f32.mrb[0].mxu0
    %v2332 = vadd.f32 %v1890, %v2331
    %v2333 = vpop.f32.mrb[0].mxu0
    %v2334 = vadd.f32 %v1894, %v2333
    %2335 = vmatprep.mubr.bf16.mxu0 %v1920
    %2336 = vmatmul.mubr.bf16.gmra.mrb[0].mxu0 %v1641
    %v2337 = vpop.f32.mrb[0].mxu0
    %v2338 = vadd.f32 %v1890, %v2337
    %v2339 = vpop.f32.mrb[0].mxu0
    %v2340 = vadd.f32 %v1894, %v2339
    %v2341 = vpop.f32.mrb[0].mxu0
    %v2342 = vadd.f32 %v1890, %v2341
    %v2343 = vpop.f32.mrb[0].mxu0
    %v2344 = vadd.f32 %v1894, %v2343
    %2345 = vmatprep.mubr.bf16.mxu0 %v1923
    %2346 = vmatmul.mubr.bf16.gmra.mrb[0].mxu0 %v1643
    %v2347 = vpop.f32.mrb[0].mxu0
    %v2348 = vadd.f32 %v1890, %v2347
    %v2349 = vpop.f32.mrb[0].mxu0
    %v2350 = vadd.f32 %v1894, %v2349
    %v2351 = vpop.f32.mrb[0].mxu0
    %v2352 = vadd.f32 %v1890, %v2351
    %v2353 = vpop.f32.mrb[0].mxu0
    %v2354 = vadd.f32 %v1894, %v2353
    %2355 = vmatprep.mubr.bf16.mxu0 %v1926
    %2356 = vmatmul.mubr.bf16.gmra.mrb[0].mxu0 %v1645
    %v2357 = vpop.f32.mrb[0].mxu0
    %v2358 = vadd.f32 %v1890, %v2357
    %v2359 = vpop.f32.mrb[0].mxu0
    %v2360 = vadd.f32 %v1894, %v2359
    %v2361 = vpop.f32.mrb[0].mxu0
    %v2362 = vadd.f32 %v1890, %v2361
    %v2363 = vpop.f32.mrb[0].mxu0
    %v2364 = vadd.f32 %v1894, %v2363
    %2365 = vmatprep.mubr.bf16.mxu0 %v1929
    %2366 = vmatmul.mubr.bf16.gmra.mrb[0].mxu0 %v1647
    %v2367 = vpop.f32.mrb[0].mxu0
    %v2368 = vadd.f32 %v1890, %v2367
    %v2369 = vpop.f32.mrb[0].mxu0
    %v2370 = vadd.f32 %v1894, %v2369
    %v2371 = vpop.f32.mrb[0].mxu0
    %v2372 = vadd.f32 %v1890, %v2371
    %v2373 = vpop.f32.mrb[0].mxu0
    %v2374 = vadd.f32 %v1894, %v2373
    %2375 = vmatprep.mubr.bf16.mxu0 %v1932
    %2376 = vmatmul.mubr.bf16.gmra.mrb[0].mxu0 %v1649
    %v2377 = vpop.f32.mrb[0].mxu0
    %v2378 = vadd.f32 %v1890, %v2377
    %v2379 = vpop.f32.mrb[0].mxu0
    %v2380 = vadd.f32 %v1894, %v2379
    %v2381 = vpop.f32.mrb[0].mxu0
    %v2382 = vadd.f32 %v1890, %v2381
    %v2383 = vpop.f32.mrb[0].mxu0
    %v2384 = vadd.f32 %v1894, %v2383
    %2385 = vmatprep.mubr.bf16.mxu0 %v1935
    %2386 = vmatmul.mubr.bf16.gmra.mrb[0].mxu0 %v1651
    %v2387 = vpop.f32.mrb[0].mxu0
    %v2388 = vadd.f32 %v1890, %v2387
    %v2389 = vpop.f32.mrb[0].mxu0
    %v2390 = vadd.f32 %v1894, %v2389
    %v2391 = vpop.f32.mrb[0].mxu0
    %v2392 = vadd.f32 %v1890, %v2391
    %v2393 = vpop.f32.mrb[0].mxu0
    %v2394 = vadd.f32 %v1894, %v2393
    %2395 = vdwg.mxu0
    %v2396 = vld [vmem:[%s7] sm:$0x3f]
    %v2397 = vld [vmem:[%s7 + $0x6] sm:$0x3f]
    %v2398 = vld [vmem:[%s7 + $0xc] sm:$0x3f]
    %v2399 = vld [vmem:[%s7 + $0x12] sm:$0x3f]
    %v2400 = vld [vmem:[%s7 + $0x18] sm:$0x3f]
    %v2401 = vld [vmem:[%s7 + $0x1e] sm:$0x3f]
    %v2402 = vld [vmem:[%s7 + $0x24] sm:$0x3f]
    %v2403 = vld [vmem:[%s7 + $0x2a] sm:$0x3f]
    %v2404 = vld [vmem:[%s7 + $0x30] sm:$0x3f]
    %v2405 = vld [vmem:[%s7 + $0x36] sm:$0x3f]
    %v2406 = vld [vmem:[%s7 + $0x3c] sm:$0x3f]
    %v2407 = vld [vmem:[%s7 + $0x42] sm:$0x3f]
    %v2408 = vld [vmem:[%s7 + $0x48] sm:$0x3f]
    %v2409 = vld [vmem:[%s7 + $0x4e] sm:$0x3f]
    %v2410 = vld [vmem:[%s7 + $0x54] sm:$0x3f]
    %v2411 = vld [vmem:[%s7 + $0x5a] sm:$0x3f]
    %v2412 = vld [vmem:[%s7 + $0x60] sm:$0x3f]
    %v2413 = vld [vmem:[%s7 + $0x66] sm:$0x3f]
    %v2414 = vld [vmem:[%s7 + $0x6c] sm:$0x3f]
    %v2415 = vld [vmem:[%s7 + $0x72] sm:$0x3f]
    %v2416 = vld [vmem:[%s7 + $0x78] sm:$0x3f]
    %v2417 = vld [vmem:[%s7 + $0x7e] sm:$0x3f]
    %v2418 = vld [vmem:[%s7 + $0x84] sm:$0x3f]
    %v2419 = vld [vmem:[%s7 + $0x8a] sm:$0x3f]
    %v2444 = vlaneseq
    %v2445 = vshrl.u32 %v2444, 7
    %v2446 = vsub.s32 0, %v2445
    %v2447 = vrot.slane %v2396, %v2446
    %v2448 = vlaneseq
    %v2449 = vshrl.u32 %v2448, 7
    %v2450 = vsub.s32 1, %v2449
    %v2451 = vrot.slane %v2396, %v2450
    %v2452 = vlaneseq
    %v2453 = vshrl.u32 %v2452, 7
    %v2454 = vsub.s32 2, %v2453
    %v2455 = vrot.slane %v2396, %v2454
    %v2456 = vlaneseq
    %v2457 = vshrl.u32 %v2456, 7
    %v2458 = vsub.s32 3, %v2457
    %v2459 = vrot.slane %v2396, %v2458
    %v2460 = vlaneseq
    %v2461 = vshrl.u32 %v2460, 7
    %v2462 = vsub.s32 4, %v2461
    %v2463 = vrot.slane %v2396, %v2462
    %v2464 = vlaneseq
    %v2465 = vshrl.u32 %v2464, 7
    %v2466 = vsub.s32 5, %v2465
    %v2467 = vrot.slane %v2396, %v2466
    %v2468 = vlaneseq
    %v2469 = vshrl.u32 %v2468, 7
    %v2470 = vsub.s32 0, %v2469
    %v2471 = vrot.slane %v2397, %v2470
    %v2472 = vlaneseq
    %v2473 = vshrl.u32 %v2472, 7
    %v2474 = vsub.s32 1, %v2473
    %v2475 = vrot.slane %v2397, %v2474
    %v2476 = vlaneseq
    %v2477 = vshrl.u32 %v2476, 7
    %v2478 = vsub.s32 2, %v2477
    %v2479 = vrot.slane %v2397, %v2478
    %v2480 = vlaneseq
    %v2481 = vshrl.u32 %v2480, 7
    %v2482 = vsub.s32 3, %v2481
    %v2483 = vrot.slane %v2397, %v2482
    %v2484 = vlaneseq
    %v2485 = vshrl.u32 %v2484, 7
    %v2486 = vsub.s32 4, %v2485
    %v2487 = vrot.slane %v2397, %v2486
    %v2488 = vlaneseq
    %v2489 = vshrl.u32 %v2488, 7
    %v2490 = vsub.s32 5, %v2489
    %v2491 = vrot.slane %v2397, %v2490
    %v2492 = vlaneseq
    %v2493 = vshrl.u32 %v2492, 7
    %v2494 = vsub.s32 0, %v2493
    %v2495 = vrot.slane %v2398, %v2494
    %v2496 = vlaneseq
    %v2497 = vshrl.u32 %v2496, 7
    %v2498 = vsub.s32 1, %v2497
    %v2499 = vrot.slane %v2398, %v2498
    %v2500 = vlaneseq
    %v2501 = vshrl.u32 %v2500, 7
    %v2502 = vsub.s32 2, %v2501
    %v2503 = vrot.slane %v2398, %v2502
    %v2504 = vlaneseq
    %v2505 = vshrl.u32 %v2504, 7
    %v2506 = vsub.s32 3, %v2505
    %v2507 = vrot.slane %v2398, %v2506
    %v2508 = vlaneseq
    %v2509 = vshrl.u32 %v2508, 7
    %v2510 = vsub.s32 4, %v2509
    %v2511 = vrot.slane %v2398, %v2510
    %v2512 = vlaneseq
    %v2513 = vshrl.u32 %v2512, 7
    %v2514 = vsub.s32 5, %v2513
    %v2515 = vrot.slane %v2398, %v2514
    %v2516 = vlaneseq
    %v2517 = vshrl.u32 %v2516, 7
    %v2518 = vsub.s32 0, %v2517
    %v2519 = vrot.slane %v2399, %v2518
    %v2520 = vlaneseq
    %v2521 = vshrl.u32 %v2520, 7
    %v2522 = vsub.s32 1, %v2521
    %v2523 = vrot.slane %v2399, %v2522
    %v2524 = vlaneseq
    %v2525 = vshrl.u32 %v2524, 7
    %v2526 = vsub.s32 2, %v2525
    %v2527 = vrot.slane %v2399, %v2526
    %v2528 = vlaneseq
    %v2529 = vshrl.u32 %v2528, 7
    %v2530 = vsub.s32 3, %v2529
    %v2531 = vrot.slane %v2399, %v2530
    %v2532 = vlaneseq
    %v2533 = vshrl.u32 %v2532, 7
    %v2534 = vsub.s32 4, %v2533
    %v2535 = vrot.slane %v2399, %v2534
    %v2536 = vlaneseq
    %v2537 = vshrl.u32 %v2536, 7
    %v2538 = vsub.s32 5, %v2537
    %v2539 = vrot.slane %v2399, %v2538
    %v2540 = vlaneseq
    %v2541 = vshrl.u32 %v2540, 7
    %v2542 = vsub.s32 0, %v2541
    %v2543 = vrot.slane %v2400, %v2542
    %v2544 = vlaneseq
    %v2545 = vshrl.u32 %v2544, 7
    %v2546 = vsub.s32 1, %v2545
    %v2547 = vrot.slane %v2400, %v2546
    %v2548 = vlaneseq
    %v2549 = vshrl.u32 %v2548, 7
    %v2550 = vsub.s32 2, %v2549
    %v2551 = vrot.slane %v2400, %v2550
    %v2552 = vlaneseq
    %v2553 = vshrl.u32 %v2552, 7
    %v2554 = vsub.s32 3, %v2553
    %v2555 = vrot.slane %v2400, %v2554
    %v2556 = vlaneseq
    %v2557 = vshrl.u32 %v2556, 7
    %v2558 = vsub.s32 4, %v2557
    %v2559 = vrot.slane %v2400, %v2558
    %v2560 = vlaneseq
    %v2561 = vshrl.u32 %v2560, 7
    %v2562 = vsub.s32 5, %v2561
    %v2563 = vrot.slane %v2400, %v2562
    %v2564 = vlaneseq
    %v2565 = vshrl.u32 %v2564, 7
    %v2566 = vsub.s32 0, %v2565
    %v2567 = vrot.slane %v2401, %v2566
    %v2568 = vlaneseq
    %v2569 = vshrl.u32 %v2568, 7
    %v2570 = vsub.s32 1, %v2569
    %v2571 = vrot.slane %v2401, %v2570
    %v2572 = vlaneseq
    %v2573 = vshrl.u32 %v2572, 7
    %v2574 = vsub.s32 2, %v2573
    %v2575 = vrot.slane %v2401, %v2574
    %v2576 = vlaneseq
    %v2577 = vshrl.u32 %v2576, 7
    %v2578 = vsub.s32 3, %v2577
    %v2579 = vrot.slane %v2401, %v2578
    %v2580 = vlaneseq
    %v2581 = vshrl.u32 %v2580, 7
    %v2582 = vsub.s32 4, %v2581
    %v2583 = vrot.slane %v2401, %v2582
    %v2584 = vlaneseq
    %v2585 = vshrl.u32 %v2584, 7
    %v2586 = vsub.s32 5, %v2585
    %v2587 = vrot.slane %v2401, %v2586
    %v2588 = vlaneseq
    %v2589 = vshrl.u32 %v2588, 7
    %v2590 = vsub.s32 0, %v2589
    %v2591 = vrot.slane %v2402, %v2590
    %v2592 = vlaneseq
    %v2593 = vshrl.u32 %v2592, 7
    %v2594 = vsub.s32 1, %v2593
    %v2595 = vrot.slane %v2402, %v2594
    %v2596 = vlaneseq
    %v2597 = vshrl.u32 %v2596, 7
    %v2598 = vsub.s32 2, %v2597
    %v2599 = vrot.slane %v2402, %v2598
    %v2600 = vlaneseq
    %v2601 = vshrl.u32 %v2600, 7
    %v2602 = vsub.s32 3, %v2601
    %v2603 = vrot.slane %v2402, %v2602
    %v2604 = vlaneseq
    %v2605 = vshrl.u32 %v2604, 7
    %v2606 = vsub.s32 4, %v2605
    %v2607 = vrot.slane %v2402, %v2606
    %v2608 = vlaneseq
    %v2609 = vshrl.u32 %v2608, 7
    %v2610 = vsub.s32 5, %v2609
    %v2611 = vrot.slane %v2402, %v2610
    %v2612 = vlaneseq
    %v2613 = vshrl.u32 %v2612, 7
    %v2614 = vsub.s32 0, %v2613
    %v2615 = vrot.slane %v2403, %v2614
    %v2616 = vlaneseq
    %v2617 = vshrl.u32 %v2616, 7
    %v2618 = vsub.s32 1, %v2617
    %v2619 = vrot.slane %v2403, %v2618
    %v2620 = vlaneseq
    %v2621 = vshrl.u32 %v2620, 7
    %v2622 = vsub.s32 2, %v2621
    %v2623 = vrot.slane %v2403, %v2622
    %v2624 = vlaneseq
    %v2625 = vshrl.u32 %v2624, 7
    %v2626 = vsub.s32 3, %v2625
    %v2627 = vrot.slane %v2403, %v2626
    %v2628 = vlaneseq
    %v2629 = vshrl.u32 %v2628, 7
    %v2630 = vsub.s32 4, %v2629
    %v2631 = vrot.slane %v2403, %v2630
    %v2632 = vlaneseq
    %v2633 = vshrl.u32 %v2632, 7
    %v2634 = vsub.s32 5, %v2633
    %v2635 = vrot.slane %v2403, %v2634
    %v2636 = vlaneseq
    %v2637 = vshrl.u32 %v2636, 7
    %v2638 = vsub.s32 0, %v2637
    %v2639 = vrot.slane %v2404, %v2638
    %v2640 = vlaneseq
    %v2641 = vshrl.u32 %v2640, 7
    %v2642 = vsub.s32 1, %v2641
    %v2643 = vrot.slane %v2404, %v2642
    %v2644 = vlaneseq
    %v2645 = vshrl.u32 %v2644, 7
    %v2646 = vsub.s32 2, %v2645
    %v2647 = vrot.slane %v2404, %v2646
    %v2648 = vlaneseq
    %v2649 = vshrl.u32 %v2648, 7
    %v2650 = vsub.s32 3, %v2649
    %v2651 = vrot.slane %v2404, %v2650
    %v2652 = vlaneseq
    %v2653 = vshrl.u32 %v2652, 7
    %v2654 = vsub.s32 4, %v2653
    %v2655 = vrot.slane %v2404, %v2654
    %v2656 = vlaneseq
    %v2657 = vshrl.u32 %v2656, 7
    %v2658 = vsub.s32 5, %v2657
    %v2659 = vrot.slane %v2404, %v2658
    %v2660 = vlaneseq
    %v2661 = vshrl.u32 %v2660, 7
    %v2662 = vsub.s32 0, %v2661
    %v2663 = vrot.slane %v2405, %v2662
    %v2664 = vlaneseq
    %v2665 = vshrl.u32 %v2664, 7
    %v2666 = vsub.s32 1, %v2665
    %v2667 = vrot.slane %v2405, %v2666
    %v2668 = vlaneseq
    %v2669 = vshrl.u32 %v2668, 7
    %v2670 = vsub.s32 2, %v2669
    %v2671 = vrot.slane %v2405, %v2670
    %v2672 = vlaneseq
    %v2673 = vshrl.u32 %v2672, 7
    %v2674 = vsub.s32 3, %v2673
    %v2675 = vrot.slane %v2405, %v2674
    %v2676 = vlaneseq
    %v2677 = vshrl.u32 %v2676, 7
    %v2678 = vsub.s32 4, %v2677
    %v2679 = vrot.slane %v2405, %v2678
    %v2680 = vlaneseq
    %v2681 = vshrl.u32 %v2680, 7
    %v2682 = vsub.s32 5, %v2681
    %v2683 = vrot.slane %v2405, %v2682
    %v2684 = vlaneseq
    %v2685 = vshrl.u32 %v2684, 7
    %v2686 = vsub.s32 0, %v2685
    %v2687 = vrot.slane %v2406, %v2686
    %v2688 = vlaneseq
    %v2689 = vshrl.u32 %v2688, 7
    %v2690 = vsub.s32 1, %v2689
    %v2691 = vrot.slane %v2406, %v2690
    %v2692 = vlaneseq
    %v2693 = vshrl.u32 %v2692, 7
    %v2694 = vsub.s32 2, %v2693
    %v2695 = vrot.slane %v2406, %v2694
    %v2696 = vlaneseq
    %v2697 = vshrl.u32 %v2696, 7
    %v2698 = vsub.s32 3, %v2697
    %v2699 = vrot.slane %v2406, %v2698
    %v2700 = vlaneseq
    %v2701 = vshrl.u32 %v2700, 7
    %v2702 = vsub.s32 4, %v2701
    %v2703 = vrot.slane %v2406, %v2702
    %v2704 = vlaneseq
    %v2705 = vshrl.u32 %v2704, 7
    %v2706 = vsub.s32 5, %v2705
    %v2707 = vrot.slane %v2406, %v2706
    %v2708 = vlaneseq
    %v2709 = vshrl.u32 %v2708, 7
    %v2710 = vsub.s32 0, %v2709
    %v2711 = vrot.slane %v2407, %v2710
    %v2712 = vlaneseq
    %v2713 = vshrl.u32 %v2712, 7
    %v2714 = vsub.s32 1, %v2713
    %v2715 = vrot.slane %v2407, %v2714
    %v2716 = vlaneseq
    %v2717 = vshrl.u32 %v2716, 7
    %v2718 = vsub.s32 2, %v2717
    %v2719 = vrot.slane %v2407, %v2718
    %v2720 = vlaneseq
    %v2721 = vshrl.u32 %v2720, 7
    %v2722 = vsub.s32 3, %v2721
    %v2723 = vrot.slane %v2407, %v2722
    %v2724 = vlaneseq
    %v2725 = vshrl.u32 %v2724, 7
    %v2726 = vsub.s32 4, %v2725
    %v2727 = vrot.slane %v2407, %v2726
    %v2728 = vlaneseq
    %v2729 = vshrl.u32 %v2728, 7
    %v2730 = vsub.s32 5, %v2729
    %v2731 = vrot.slane %v2407, %v2730
    %v2732 = vlaneseq
    %v2733 = vshrl.u32 %v2732, 7
    %v2734 = vsub.s32 0, %v2733
    %v2735 = vrot.slane %v2408, %v2734
    %v2736 = vlaneseq
    %v2737 = vshrl.u32 %v2736, 7
    %v2738 = vsub.s32 1, %v2737
    %v2739 = vrot.slane %v2408, %v2738
    %v2740 = vlaneseq
    %v2741 = vshrl.u32 %v2740, 7
    %v2742 = vsub.s32 2, %v2741
    %v2743 = vrot.slane %v2408, %v2742
    %v2744 = vlaneseq
    %v2745 = vshrl.u32 %v2744, 7
    %v2746 = vsub.s32 3, %v2745
    %v2747 = vrot.slane %v2408, %v2746
    %v2748 = vlaneseq
    %v2749 = vshrl.u32 %v2748, 7
    %v2750 = vsub.s32 4, %v2749
    %v2751 = vrot.slane %v2408, %v2750
    %v2752 = vlaneseq
    %v2753 = vshrl.u32 %v2752, 7
    %v2754 = vsub.s32 5, %v2753
    %v2755 = vrot.slane %v2408, %v2754
    %v2756 = vlaneseq
    %v2757 = vshrl.u32 %v2756, 7
    %v2758 = vsub.s32 0, %v2757
    %v2759 = vrot.slane %v2409, %v2758
    %v2760 = vlaneseq
    %v2761 = vshrl.u32 %v2760, 7
    %v2762 = vsub.s32 1, %v2761
    %v2763 = vrot.slane %v2409, %v2762
    %v2764 = vlaneseq
    %v2765 = vshrl.u32 %v2764, 7
    %v2766 = vsub.s32 2, %v2765
    %v2767 = vrot.slane %v2409, %v2766
    %v2768 = vlaneseq
    %v2769 = vshrl.u32 %v2768, 7
    %v2770 = vsub.s32 3, %v2769
    %v2771 = vrot.slane %v2409, %v2770
    %v2772 = vlaneseq
    %v2773 = vshrl.u32 %v2772, 7
    %v2774 = vsub.s32 4, %v2773
    %v2775 = vrot.slane %v2409, %v2774
    %v2776 = vlaneseq
    %v2777 = vshrl.u32 %v2776, 7
    %v2778 = vsub.s32 5, %v2777
    %v2779 = vrot.slane %v2409, %v2778
    %v2780 = vlaneseq
    %v2781 = vshrl.u32 %v2780, 7
    %v2782 = vsub.s32 0, %v2781
    %v2783 = vrot.slane %v2410, %v2782
    %v2784 = vlaneseq
    %v2785 = vshrl.u32 %v2784, 7
    %v2786 = vsub.s32 1, %v2785
    %v2787 = vrot.slane %v2410, %v2786
    %v2788 = vlaneseq
    %v2789 = vshrl.u32 %v2788, 7
    %v2790 = vsub.s32 2, %v2789
    %v2791 = vrot.slane %v2410, %v2790
    %v2792 = vlaneseq
    %v2793 = vshrl.u32 %v2792, 7
    %v2794 = vsub.s32 3, %v2793
    %v2795 = vrot.slane %v2410, %v2794
    %v2796 = vlaneseq
    %v2797 = vshrl.u32 %v2796, 7
    %v2798 = vsub.s32 4, %v2797
    %v2799 = vrot.slane %v2410, %v2798
    %v2800 = vlaneseq
    %v2801 = vshrl.u32 %v2800, 7
    %v2802 = vsub.s32 5, %v2801
    %v2803 = vrot.slane %v2410, %v2802
    %v2804 = vlaneseq
    %v2805 = vshrl.u32 %v2804, 7
    %v2806 = vsub.s32 0, %v2805
    %v2807 = vrot.slane %v2411, %v2806
    %v2808 = vlaneseq
    %v2809 = vshrl.u32 %v2808, 7
    %v2810 = vsub.s32 1, %v2809
    %v2811 = vrot.slane %v2411, %v2810
    %v2812 = vlaneseq
    %v2813 = vshrl.u32 %v2812, 7
    %v2814 = vsub.s32 2, %v2813
    %v2815 = vrot.slane %v2411, %v2814
    %v2816 = vlaneseq
    %v2817 = vshrl.u32 %v2816, 7
    %v2818 = vsub.s32 3, %v2817
    %v2819 = vrot.slane %v2411, %v2818
    %v2820 = vlaneseq
    %v2821 = vshrl.u32 %v2820, 7
    %v2822 = vsub.s32 4, %v2821
    %v2823 = vrot.slane %v2411, %v2822
    %v2824 = vlaneseq
    %v2825 = vshrl.u32 %v2824, 7
    %v2826 = vsub.s32 5, %v2825
    %v2827 = vrot.slane %v2411, %v2826
    %v2828 = vlaneseq
    %v2829 = vshrl.u32 %v2828, 7
    %v2830 = vsub.s32 0, %v2829
    %v2831 = vrot.slane %v2412, %v2830
    %v2832 = vlaneseq
    %v2833 = vshrl.u32 %v2832, 7
    %v2834 = vsub.s32 1, %v2833
    %v2835 = vrot.slane %v2412, %v2834
    %v2836 = vlaneseq
    %v2837 = vshrl.u32 %v2836, 7
    %v2838 = vsub.s32 2, %v2837
    %v2839 = vrot.slane %v2412, %v2838
    %v2840 = vlaneseq
    %v2841 = vshrl.u32 %v2840, 7
    %v2842 = vsub.s32 3, %v2841
    %v2843 = vrot.slane %v2412, %v2842
    %v2844 = vlaneseq
    %v2845 = vshrl.u32 %v2844, 7
    %v2846 = vsub.s32 4, %v2845
    %v2847 = vrot.slane %v2412, %v2846
    %v2848 = vlaneseq
    %v2849 = vshrl.u32 %v2848, 7
    %v2850 = vsub.s32 5, %v2849
    %v2851 = vrot.slane %v2412, %v2850
    %v2852 = vlaneseq
    %v2853 = vshrl.u32 %v2852, 7
    %v2854 = vsub.s32 0, %v2853
    %v2855 = vrot.slane %v2413, %v2854
    %v2856 = vlaneseq
    %v2857 = vshrl.u32 %v2856, 7
    %v2858 = vsub.s32 1, %v2857
    %v2859 = vrot.slane %v2413, %v2858
    %v2860 = vlaneseq
    %v2861 = vshrl.u32 %v2860, 7
    %v2862 = vsub.s32 2, %v2861
    %v2863 = vrot.slane %v2413, %v2862
    %v2864 = vlaneseq
    %v2865 = vshrl.u32 %v2864, 7
    %v2866 = vsub.s32 3, %v2865
    %v2867 = vrot.slane %v2413, %v2866
    %v2868 = vlaneseq
    %v2869 = vshrl.u32 %v2868, 7
    %v2870 = vsub.s32 4, %v2869
    %v2871 = vrot.slane %v2413, %v2870
    %v2872 = vlaneseq
    %v2873 = vshrl.u32 %v2872, 7
    %v2874 = vsub.s32 5, %v2873
    %v2875 = vrot.slane %v2413, %v2874
    %v2876 = vlaneseq
    %v2877 = vshrl.u32 %v2876, 7
    %v2878 = vsub.s32 0, %v2877
    %v2879 = vrot.slane %v2414, %v2878
    %v2880 = vlaneseq
    %v2881 = vshrl.u32 %v2880, 7
    %v2882 = vsub.s32 1, %v2881
    %v2883 = vrot.slane %v2414, %v2882
    %v2884 = vlaneseq
    %v2885 = vshrl.u32 %v2884, 7
    %v2886 = vsub.s32 2, %v2885
    %v2887 = vrot.slane %v2414, %v2886
    %v2888 = vlaneseq
    %v2889 = vshrl.u32 %v2888, 7
    %v2890 = vsub.s32 3, %v2889
    %v2891 = vrot.slane %v2414, %v2890
    %v2892 = vlaneseq
    %v2893 = vshrl.u32 %v2892, 7
    %v2894 = vsub.s32 4, %v2893
    %v2895 = vrot.slane %v2414, %v2894
    %v2896 = vlaneseq
    %v2897 = vshrl.u32 %v2896, 7
    %v2898 = vsub.s32 5, %v2897
    %v2899 = vrot.slane %v2414, %v2898
    %v2900 = vlaneseq
    %v2901 = vshrl.u32 %v2900, 7
    %v2902 = vsub.s32 0, %v2901
    %v2903 = vrot.slane %v2415, %v2902
    %v2904 = vlaneseq
    %v2905 = vshrl.u32 %v2904, 7
    %v2906 = vsub.s32 1, %v2905
    %v2907 = vrot.slane %v2415, %v2906
    %v2908 = vlaneseq
    %v2909 = vshrl.u32 %v2908, 7
    %v2910 = vsub.s32 2, %v2909
    %v2911 = vrot.slane %v2415, %v2910
    %v2912 = vlaneseq
    %v2913 = vshrl.u32 %v2912, 7
    %v2914 = vsub.s32 3, %v2913
    %v2915 = vrot.slane %v2415, %v2914
    %v2916 = vlaneseq
    %v2917 = vshrl.u32 %v2916, 7
    %v2918 = vsub.s32 4, %v2917
    %v2919 = vrot.slane %v2415, %v2918
    %v2920 = vlaneseq
    %v2921 = vshrl.u32 %v2920, 7
    %v2922 = vsub.s32 5, %v2921
    %v2923 = vrot.slane %v2415, %v2922
    %v2924 = vlaneseq
    %v2925 = vshrl.u32 %v2924, 7
    %v2926 = vsub.s32 0, %v2925
    %v2927 = vrot.slane %v2416, %v2926
    %v2928 = vlaneseq
    %v2929 = vshrl.u32 %v2928, 7
    %v2930 = vsub.s32 1, %v2929
    %v2931 = vrot.slane %v2416, %v2930
    %v2932 = vlaneseq
    %v2933 = vshrl.u32 %v2932, 7
    %v2934 = vsub.s32 2, %v2933
    %v2935 = vrot.slane %v2416, %v2934
    %v2936 = vlaneseq
    %v2937 = vshrl.u32 %v2936, 7
    %v2938 = vsub.s32 3, %v2937
    %v2939 = vrot.slane %v2416, %v2938
    %v2940 = vlaneseq
    %v2941 = vshrl.u32 %v2940, 7
    %v2942 = vsub.s32 4, %v2941
    %v2943 = vrot.slane %v2416, %v2942
    %v2944 = vlaneseq
    %v2945 = vshrl.u32 %v2944, 7
    %v2946 = vsub.s32 5, %v2945
    %v2947 = vrot.slane %v2416, %v2946
    %v2948 = vlaneseq
    %v2949 = vshrl.u32 %v2948, 7
    %v2950 = vsub.s32 0, %v2949
    %v2951 = vrot.slane %v2417, %v2950
    %v2952 = vlaneseq
    %v2953 = vshrl.u32 %v2952, 7
    %v2954 = vsub.s32 1, %v2953
    %v2955 = vrot.slane %v2417, %v2954
    %v2956 = vlaneseq
    %v2957 = vshrl.u32 %v2956, 7
    %v2958 = vsub.s32 2, %v2957
    %v2959 = vrot.slane %v2417, %v2958
    %v2960 = vlaneseq
    %v2961 = vshrl.u32 %v2960, 7
    %v2962 = vsub.s32 3, %v2961
    %v2963 = vrot.slane %v2417, %v2962
    %v2964 = vlaneseq
    %v2965 = vshrl.u32 %v2964, 7
    %v2966 = vsub.s32 4, %v2965
    %v2967 = vrot.slane %v2417, %v2966
    %v2968 = vlaneseq
    %v2969 = vshrl.u32 %v2968, 7
    %v2970 = vsub.s32 5, %v2969
    %v2971 = vrot.slane %v2417, %v2970
    %v2972 = vlaneseq
    %v2973 = vshrl.u32 %v2972, 7
    %v2974 = vsub.s32 0, %v2973
    %v2975 = vrot.slane %v2418, %v2974
    %v2976 = vlaneseq
    %v2977 = vshrl.u32 %v2976, 7
    %v2978 = vsub.s32 1, %v2977
    %v2979 = vrot.slane %v2418, %v2978
    %v2980 = vlaneseq
    %v2981 = vshrl.u32 %v2980, 7
    %v2982 = vsub.s32 2, %v2981
    %v2983 = vrot.slane %v2418, %v2982
    %v2984 = vlaneseq
    %v2985 = vshrl.u32 %v2984, 7
    %v2986 = vsub.s32 3, %v2985
    %v2987 = vrot.slane %v2418, %v2986
    %v2988 = vlaneseq
    %v2989 = vshrl.u32 %v2988, 7
    %v2990 = vsub.s32 4, %v2989
    %v2991 = vrot.slane %v2418, %v2990
    %v2992 = vlaneseq
    %v2993 = vshrl.u32 %v2992, 7
    %v2994 = vsub.s32 5, %v2993
    %v2995 = vrot.slane %v2418, %v2994
    %v2996 = vlaneseq
    %v2997 = vshrl.u32 %v2996, 7
    %v2998 = vsub.s32 0, %v2997
    %v2999 = vrot.slane %v2419, %v2998
    %v3000 = vlaneseq
    %v3001 = vshrl.u32 %v3000, 7
    %v3002 = vsub.s32 1, %v3001
    %v3003 = vrot.slane %v2419, %v3002
    %v3004 = vlaneseq
    %v3005 = vshrl.u32 %v3004, 7
    %v3006 = vsub.s32 2, %v3005
    %v3007 = vrot.slane %v2419, %v3006
    %v3008 = vlaneseq
    %v3009 = vshrl.u32 %v3008, 7
    %v3010 = vsub.s32 3, %v3009
    %v3011 = vrot.slane %v2419, %v3010
    %v3012 = vlaneseq
    %v3013 = vshrl.u32 %v3012, 7
    %v3014 = vsub.s32 4, %v3013
    %v3015 = vrot.slane %v2419, %v3014
    %v3016 = vlaneseq
    %v3017 = vshrl.u32 %v3016, 7
    %v3018 = vsub.s32 5, %v3017
    %v3019 = vrot.slane %v2419, %v3018
    %v3164 = vadd.f32 %v1972, %v2447
    %v3165 = vadd.f32 %v1974, %v2451
    %v3166 = vadd.f32 %v2125, %v2455
    %v3167 = vadd.f32 %v2127, %v2459
    %v3168 = vadd.f32 %v2278, %v2463
    %v3169 = vadd.f32 %v2280, %v2467
    %v3170 = vadd.f32 %v1976, %v2471
    %v3171 = vadd.f32 %v1978, %v2475
    %v3172 = vadd.f32 %v2129, %v2479
    %v3173 = vadd.f32 %v2131, %v2483
    %v3174 = vadd.f32 %v2282, %v2487
    %v3175 = vadd.f32 %v2284, %v2491
    %v3176 = vadd.f32 %v1982, %v2495
    %v3177 = vadd.f32 %v1984, %v2499
    %v3178 = vadd.f32 %v2135, %v2503
    %v3179 = vadd.f32 %v2137, %v2507
    %v3180 = vadd.f32 %v2288, %v2511
    %v3181 = vadd.f32 %v2290, %v2515
    %v3182 = vadd.f32 %v1986, %v2519
    %v3183 = vadd.f32 %v1988, %v2523
    %v3184 = vadd.f32 %v2139, %v2527
    %v3185 = vadd.f32 %v2141, %v2531
    %v3186 = vadd.f32 %v2292, %v2535
    %v3187 = vadd.f32 %v2294, %v2539
    %v3188 = vadd.f32 %v1992, %v2543
    %v3189 = vadd.f32 %v1994, %v2547
    %v3190 = vadd.f32 %v2145, %v2551
    %v3191 = vadd.f32 %v2147, %v2555
    %v3192 = vadd.f32 %v2298, %v2559
    %v3193 = vadd.f32 %v2300, %v2563
    %v3194 = vadd.f32 %v1996, %v2567
    %v3195 = vadd.f32 %v1998, %v2571
    %v3196 = vadd.f32 %v2149, %v2575
    %v3197 = vadd.f32 %v2151, %v2579
    %v3198 = vadd.f32 %v2302, %v2583
    %v3199 = vadd.f32 %v2304, %v2587
    %v3200 = vadd.f32 %v2002, %v2591
    %v3201 = vadd.f32 %v2004, %v2595
    %v3202 = vadd.f32 %v2155, %v2599
    %v3203 = vadd.f32 %v2157, %v2603
    %v3204 = vadd.f32 %v2308, %v2607
    %v3205 = vadd.f32 %v2310, %v2611
    %v3206 = vadd.f32 %v2006, %v2615
    %v3207 = vadd.f32 %v2008, %v2619
    %v3208 = vadd.f32 %v2159, %v2623
    %v3209 = vadd.f32 %v2161, %v2627
    %v3210 = vadd.f32 %v2312, %v2631
    %v3211 = vadd.f32 %v2314, %v2635
    %v3212 = vadd.f32 %v2012, %v2639
    %v3213 = vadd.f32 %v2014, %v2643
    %v3214 = vadd.f32 %v2165, %v2647
    %v3215 = vadd.f32 %v2167, %v2651
    %v3216 = vadd.f32 %v2318, %v2655
    %v3217 = vadd.f32 %v2320, %v2659
    %v3218 = vadd.f32 %v2016, %v2663
    %v3219 = vadd.f32 %v2018, %v2667
    %v3220 = vadd.f32 %v2169, %v2671
    %v3221 = vadd.f32 %v2171, %v2675
    %v3222 = vadd.f32 %v2322, %v2679
    %v3223 = vadd.f32 %v2324, %v2683
    %v3224 = vadd.f32 %v2022, %v2687
    %v3225 = vadd.f32 %v2024, %v2691
    %v3226 = vadd.f32 %v2175, %v2695
    %v3227 = vadd.f32 %v2177, %v2699
    %v3228 = vadd.f32 %v2328, %v2703
    %v3229 = vadd.f32 %v2330, %v2707
    %v3230 = vadd.f32 %v2026, %v2711
    %v3231 = vadd.f32 %v2028, %v2715
    %v3232 = vadd.f32 %v2179, %v2719
    %v3233 = vadd.f32 %v2181, %v2723
    %v3234 = vadd.f32 %v2332, %v2727
    %v3235 = vadd.f32 %v2334, %v2731
    %v3236 = vadd.f32 %v2032, %v2735
    %v3237 = vadd.f32 %v2034, %v2739
    %v3238 = vadd.f32 %v2185, %v2743
    %v3239 = vadd.f32 %v2187, %v2747
    %v3240 = vadd.f32 %v2338, %v2751
    %v3241 = vadd.f32 %v2340, %v2755
    %v3242 = vadd.f32 %v2036, %v2759
    %v3243 = vadd.f32 %v2038, %v2763
    %v3244 = vadd.f32 %v2189, %v2767
    %v3245 = vadd.f32 %v2191, %v2771
    %v3246 = vadd.f32 %v2342, %v2775
    %v3247 = vadd.f32 %v2344, %v2779
    %v3248 = vadd.f32 %v2042, %v2783
    %v3249 = vadd.f32 %v2044, %v2787
    %v3250 = vadd.f32 %v2195, %v2791
    %v3251 = vadd.f32 %v2197, %v2795
    %v3252 = vadd.f32 %v2348, %v2799
    %v3253 = vadd.f32 %v2350, %v2803
    %v3254 = vadd.f32 %v2046, %v2807
    %v3255 = vadd.f32 %v2048, %v2811
    %v3256 = vadd.f32 %v2199, %v2815
    %v3257 = vadd.f32 %v2201, %v2819
    %v3258 = vadd.f32 %v2352, %v2823
    %v3259 = vadd.f32 %v2354, %v2827
    %v3260 = vadd.f32 %v2052, %v2831
    %v3261 = vadd.f32 %v2054, %v2835
    %v3262 = vadd.f32 %v2205, %v2839
    %v3263 = vadd.f32 %v2207, %v2843
    %v3264 = vadd.f32 %v2358, %v2847
    %v3265 = vadd.f32 %v2360, %v2851
    %v3266 = vadd.f32 %v2056, %v2855
    %v3267 = vadd.f32 %v2058, %v2859
    %v3268 = vadd.f32 %v2209, %v2863
    %v3269 = vadd.f32 %v2211, %v2867
    %v3270 = vadd.f32 %v2362, %v2871
    %v3271 = vadd.f32 %v2364, %v2875
    %v3272 = vadd.f32 %v2062, %v2879
    %v3273 = vadd.f32 %v2064, %v2883
    %v3274 = vadd.f32 %v2215, %v2887
    %v3275 = vadd.f32 %v2217, %v2891
    %v3276 = vadd.f32 %v2368, %v2895
    %v3277 = vadd.f32 %v2370, %v2899
    %v3278 = vadd.f32 %v2066, %v2903
    %v3279 = vadd.f32 %v2068, %v2907
    %v3280 = vadd.f32 %v2219, %v2911
    %v3281 = vadd.f32 %v2221, %v2915
    %v3282 = vadd.f32 %v2372, %v2919
    %v3283 = vadd.f32 %v2374, %v2923
    %v3284 = vadd.f32 %v2072, %v2927
    %v3285 = vadd.f32 %v2074, %v2931
    %v3286 = vadd.f32 %v2225, %v2935
    %v3287 = vadd.f32 %v2227, %v2939
    %v3288 = vadd.f32 %v2378, %v2943
    %v3289 = vadd.f32 %v2380, %v2947
    %v3290 = vadd.f32 %v2076, %v2951
    %v3291 = vadd.f32 %v2078, %v2955
    %v3292 = vadd.f32 %v2229, %v2959
    %v3293 = vadd.f32 %v2231, %v2963
    %v3294 = vadd.f32 %v2382, %v2967
    %v3295 = vadd.f32 %v2384, %v2971
    %v3296 = vadd.f32 %v2082, %v2975
    %v3297 = vadd.f32 %v2084, %v2979
    %v3298 = vadd.f32 %v2235, %v2983
    %v3299 = vadd.f32 %v2237, %v2987
    %v3300 = vadd.f32 %v2388, %v2991
    %v3301 = vadd.f32 %v2390, %v2995
    %v3302 = vadd.f32 %v2086, %v2999
    %v3303 = vadd.f32 %v2088, %v3003
    %v3304 = vadd.f32 %v2239, %v3007
    %v3305 = vadd.f32 %v2241, %v3011
    %v3306 = vadd.f32 %v2392, %v3015
    %v3307 = vadd.f32 %v2394, %v3019
    %v3308 = vmax.f32 %v3164, %v3170
    %v3309 = vmax.f32 %v3308, %v3176
    %v3310 = vmax.f32 %v3309, %v3182
    %v3311 = vmax.f32 %v3310, %v3188
    %v3312 = vmax.f32 %v3311, %v3194
    %v3313 = vmax.f32 %v3312, %v3200
    %v3314 = vmax.f32 %v3313, %v3206
    %v3315 = vmax.f32 %v3314, %v3212
    %v3316 = vmax.f32 %v3315, %v3218
    %v3317 = vmax.f32 %v3316, %v3224
    %v3318 = vmax.f32 %v3317, %v3230
    %v3319 = vmax.f32 %v3318, %v3236
    %v3320 = vmax.f32 %v3319, %v3242
    %v3321 = vmax.f32 %v3320, %v3248
    %v3322 = vmax.f32 %v3321, %v3254
    %v3323 = vmax.f32 %v3322, %v3260
    %v3324 = vmax.f32 %v3323, %v3266
    %v3325 = vmax.f32 %v3324, %v3272
    %v3326 = vmax.f32 %v3325, %v3278
    %v3327 = vmax.f32 %v3326, %v3284
    %v3328 = vmax.f32 %v3327, %v3290
    %v3329 = vmax.f32 %v3328, %v3296
    %v3330 = vmax.f32 %v3329, %v3302
    %v3331 = vmax.f32 %v3165, %v3171
    %v3332 = vmax.f32 %v3331, %v3177
    %v3333 = vmax.f32 %v3332, %v3183
    %v3334 = vmax.f32 %v3333, %v3189
    %v3335 = vmax.f32 %v3334, %v3195
    %v3336 = vmax.f32 %v3335, %v3201
    %v3337 = vmax.f32 %v3336, %v3207
    %v3338 = vmax.f32 %v3337, %v3213
    %v3339 = vmax.f32 %v3338, %v3219
    %v3340 = vmax.f32 %v3339, %v3225
    %v3341 = vmax.f32 %v3340, %v3231
    %v3342 = vmax.f32 %v3341, %v3237
    %v3343 = vmax.f32 %v3342, %v3243
    %v3344 = vmax.f32 %v3343, %v3249
    %v3345 = vmax.f32 %v3344, %v3255
    %v3346 = vmax.f32 %v3345, %v3261
    %v3347 = vmax.f32 %v3346, %v3267
    %v3348 = vmax.f32 %v3347, %v3273
    %v3349 = vmax.f32 %v3348, %v3279
    %v3350 = vmax.f32 %v3349, %v3285
    %v3351 = vmax.f32 %v3350, %v3291
    %v3352 = vmax.f32 %v3351, %v3297
    %v3353 = vmax.f32 %v3352, %v3303
    %v3354 = vmax.f32 %v3166, %v3172
    %v3355 = vmax.f32 %v3354, %v3178
    %v3356 = vmax.f32 %v3355, %v3184
    %v3357 = vmax.f32 %v3356, %v3190
    %v3358 = vmax.f32 %v3357, %v3196
    %v3359 = vmax.f32 %v3358, %v3202
    %v3360 = vmax.f32 %v3359, %v3208
    %v3361 = vmax.f32 %v3360, %v3214
    %v3362 = vmax.f32 %v3361, %v3220
    %v3363 = vmax.f32 %v3362, %v3226
    %v3364 = vmax.f32 %v3363, %v3232
    %v3365 = vmax.f32 %v3364, %v3238
    %v3366 = vmax.f32 %v3365, %v3244
    %v3367 = vmax.f32 %v3366, %v3250
    %v3368 = vmax.f32 %v3367, %v3256
    %v3369 = vmax.f32 %v3368, %v3262
    %v3370 = vmax.f32 %v3369, %v3268
    %v3371 = vmax.f32 %v3370, %v3274
    %v3372 = vmax.f32 %v3371, %v3280
    %v3373 = vmax.f32 %v3372, %v3286
    %v3374 = vmax.f32 %v3373, %v3292
    %v3375 = vmax.f32 %v3374, %v3298
    %v3376 = vmax.f32 %v3375, %v3304
    %v3377 = vmax.f32 %v3167, %v3173
    %v3378 = vmax.f32 %v3377, %v3179
    %v3379 = vmax.f32 %v3378, %v3185
    %v3380 = vmax.f32 %v3379, %v3191
    %v3381 = vmax.f32 %v3380, %v3197
    %v3382 = vmax.f32 %v3381, %v3203
    %v3383 = vmax.f32 %v3382, %v3209
    %v3384 = vmax.f32 %v3383, %v3215
    %v3385 = vmax.f32 %v3384, %v3221
    %v3386 = vmax.f32 %v3385, %v3227
    %v3387 = vmax.f32 %v3386, %v3233
    %v3388 = vmax.f32 %v3387, %v3239
    %v3389 = vmax.f32 %v3388, %v3245
    %v3390 = vmax.f32 %v3389, %v3251
    %v3391 = vmax.f32 %v3390, %v3257
    %v3392 = vmax.f32 %v3391, %v3263
    %v3393 = vmax.f32 %v3392, %v3269
    %v3394 = vmax.f32 %v3393, %v3275
    %v3395 = vmax.f32 %v3394, %v3281
    %v3396 = vmax.f32 %v3395, %v3287
    %v3397 = vmax.f32 %v3396, %v3293
    %v3398 = vmax.f32 %v3397, %v3299
    %v3399 = vmax.f32 %v3398, %v3305
    %v3400 = vmax.f32 %v3168, %v3174
    %v3401 = vmax.f32 %v3400, %v3180
    %v3402 = vmax.f32 %v3401, %v3186
    %v3403 = vmax.f32 %v3402, %v3192
    %v3404 = vmax.f32 %v3403, %v3198
    %v3405 = vmax.f32 %v3404, %v3204
    %v3406 = vmax.f32 %v3405, %v3210
    %v3407 = vmax.f32 %v3406, %v3216
    %v3408 = vmax.f32 %v3407, %v3222
    %v3409 = vmax.f32 %v3408, %v3228
    %v3410 = vmax.f32 %v3409, %v3234
    %v3411 = vmax.f32 %v3410, %v3240
    %v3412 = vmax.f32 %v3411, %v3246
    %v3413 = vmax.f32 %v3412, %v3252
    %v3414 = vmax.f32 %v3413, %v3258
    %v3415 = vmax.f32 %v3414, %v3264
    %v3416 = vmax.f32 %v3415, %v3270
    %v3417 = vmax.f32 %v3416, %v3276
    %v3418 = vmax.f32 %v3417, %v3282
    %v3419 = vmax.f32 %v3418, %v3288
    %v3420 = vmax.f32 %v3419, %v3294
    %v3421 = vmax.f32 %v3420, %v3300
    %v3422 = vmax.f32 %v3421, %v3306
    %v3423 = vmax.f32 %v3169, %v3175
    %v3424 = vmax.f32 %v3423, %v3181
    %v3425 = vmax.f32 %v3424, %v3187
    %v3426 = vmax.f32 %v3425, %v3193
    %v3427 = vmax.f32 %v3426, %v3199
    %v3428 = vmax.f32 %v3427, %v3205
    %v3429 = vmax.f32 %v3428, %v3211
    %v3430 = vmax.f32 %v3429, %v3217
    %v3431 = vmax.f32 %v3430, %v3223
    %v3432 = vmax.f32 %v3431, %v3229
    %v3433 = vmax.f32 %v3432, %v3235
    %v3434 = vmax.f32 %v3433, %v3241
    %v3435 = vmax.f32 %v3434, %v3247
    %v3436 = vmax.f32 %v3435, %v3253
    %v3437 = vmax.f32 %v3436, %v3259
    %v3438 = vmax.f32 %v3437, %v3265
    %v3439 = vmax.f32 %v3438, %v3271
    %v3440 = vmax.f32 %v3439, %v3277
    %v3441 = vmax.f32 %v3440, %v3283
    %v3442 = vmax.f32 %v3441, %v3289
    %v3443 = vmax.f32 %v3442, %v3295
    %v3444 = vmax.f32 %v3443, %v3301
    %v3445 = vmax.f32 %v3444, %v3307
    %v3446 = vxor.u32 %v3330, 2147483648
    %v3447 = vxor.u32 %v3353, 2147483648
    %v3448 = vxor.u32 %v3376, 2147483648
    %v3449 = vxor.u32 %v3399, 2147483648
    %v3450 = vxor.u32 %v3422, 2147483648
    %v3451 = vxor.u32 %v3445, 2147483648
    %v3452 = vmul.f32 %v3446, 1.442695
    %v3453 = vpow.pop %v3452
    %v3454 = vmul.f32 %v3447, 1.442695
    %v3455 = vpow.pop %v3454
    %v3456 = vmul.f32 %v3448, 1.442695
    %v3457 = vpow.pop %v3456
    %v3458 = vmul.f32 %v3449, 1.442695
    %v3459 = vpow.pop %v3458
    %v3460 = vmul.f32 %v3450, 1.442695
    %v3461 = vpow.pop %v3460
    %v3462 = vmul.f32 %v3451, 1.442695
    %v3463 = vpow.pop %v3462
    %v3464 = vadd.f32 %v3453, 1.0
    %v3465 = vadd.f32 %v3455, 1.0
    %v3466 = vadd.f32 %v3457, 1.0
    %v3467 = vadd.f32 %v3459, 1.0
    %v3468 = vadd.f32 %v3461, 1.0
    %v3469 = vadd.f32 %v3463, 1.0
    %v3470 = vrcp.pop %v3464
    %v3471 = vmul.f32 1.0, %v3470
    %v3472 = vrcp.pop %v3465
    %v3473 = vmul.f32 1.0, %v3472
    %v3474 = vrcp.pop %v3466
    %v3475 = vmul.f32 1.0, %v3474
    %v3476 = vrcp.pop %v3467
    %v3477 = vmul.f32 1.0, %v3476
    %v3478 = vrcp.pop %v3468
    %v3479 = vmul.f32 1.0, %v3478
    %v3480 = vrcp.pop %v3469
    %v3481 = vmul.f32 1.0, %v3480
    %3482 = vst [vmem:[%s8] sm:$0xff] %v3471
    %3483 = vst [vmem:[%s8 + $0x8] sm:$0xff] %v3473
    %3484 = vst [vmem:[%s8 + $0x10] sm:$0xff] %v3475
    %3485 = vst [vmem:[%s8 + $0x18] sm:$0xff] %v3477
    %3486 = vst [vmem:[%s8 + $0x20] sm:$0xff] %v3479
    %3487 = vst [vmem:[%s8 + $0x28] sm:$0xff] %v3481
    // Predicated region
    $region54: #{ha_net_forward.2} parent=1 // pred_check
      _
    $region55: #{ha_net_forward.2} parent=1 // pred_check_branch
      %3489 = sbr.rel (0) target = $region57
    $region56: #{ha_net_forward.2} parent=1 // pred_region
      _
    $region57: #{ha_net_forward.2} parent=1 // pred_fallthru
      _
    // Predicated region
    $region58: #{ha_net_forward.2} parent=1 // pred_check
      _
    $region59: #{ha_net_forward.2} parent=1 // pred_check_branch
      %3491 = sbr.rel (0) target = $region61
    $region60: #{ha_net_forward.2} parent=1 // pred_region
      _
    $region61: #{ha_net_forward.2} parent=1 // pred_fallthru
      _
    %3492 = vsyncpa [#allocation4], 1
    %3493 = vsyncpa [#allocation6], 1
    %3494 = vsyncpa [#allocation9], 1

</llo_original>
